<compile_context>
chip_gen: v7x
topology: tpu7x:2x2x1
jax: 0.10.0
libtpu: 0.0.40
codegen_flags: <defaults>
</compile_context>

<pallas_src>
import functools

import jax
import jax.numpy as jnp
from jax import lax
from jax.experimental import pallas as pl
from jax.experimental.pallas import tpu as pltpu


# Row indices of the packed (NV, D) f32 vector table (biases + LayerNorm params).
V_SA_BQ, V_SA_BK, V_SA_BV, V_SA_BO = 0, 1, 2, 3
V_CA_BQ, V_CA_BK, V_CA_BV, V_CA_BO = 4, 5, 6, 7
V_FFN_B2 = 8
V_G1, V_BT1, V_G2, V_BT2, V_G3, V_BT3 = 9, 10, 11, 12, 13, 14
NV = 15


# ----------------------------------------------------------------------------
# Single fused kernel: one invocation == whole decoder layer, both streams.
# ----------------------------------------------------------------------------
def _decoder_layer_kernel(
    x_real_ref, x_phase_ref, enc_real_ref, enc_phase_ref,
    slf_mask_ref, ca_mask_ref,
    sa_wqkv_ref, sa_wo_ref, ca_wq_ref, ca_wkv_ref, ca_wo_ref,
    w1_ref, w2_ref, b1_ref, vecs_ref,
    o_real_ref, o_phase_ref,
    ctx_ref,                                  # VMEM scratch (2B, S, D) f32
    *, n_head, eps=1e-5,
):
    f32, bf16 = jnp.float32, jnp.bfloat16
    B, S, D = x_real_ref.shape
    Se = enc_real_ref.shape[1]
    B2 = 2 * B
    dh = D // n_head

    vecs = vecs_ref[...]                      # (NV, D) packed biases / LN params

    # Concatenate real/phase streams in VMEM (shared weights -> one fat batch).
    x = jnp.concatenate([x_real_ref[...], x_phase_ref[...]], axis=0)     # (2B,S,D)
    enc = jnp.concatenate([enc_real_ref[...], enc_phase_ref[...]], axis=0)
    x2 = x.reshape(B2 * S, D).astype(f32)                                # (M,D)
    enc2 = enc.reshape(B2 * Se, D).astype(f32)

    # Additive biases built on the VPU from the (stream-shared) masks.
    NEG = jnp.float32(1e9)
    slf_bias = (slf_mask_ref[...].astype(f32) - 1.0) * NEG               # (B,S,S)
    slf_bias = jnp.concatenate([slf_bias, slf_bias], axis=0)             # (2B,S,S)
    ca_bias = (ca_mask_ref[...].astype(f32) - 1.0) * NEG                 # (B,S,Se)
    ca_bias = jnp.concatenate([ca_bias, ca_bias], axis=0)                # (2B,S,Se)

    def attention(q2, k2, v2, bias, Sk):
        # q already carries the 1/sqrt(dh) scale (folded into the projection).
        q3 = q2.reshape(B2, S, D).astype(bf16)
        k3 = k2.reshape(B2, Sk, D).astype(bf16)
        v3 = v2.reshape(B2, Sk, D).astype(bf16)
        for h in range(n_head):               # static loop; each dot is batched over 2B
            lo = h * dh
            qh = q3[:, :, lo:lo + dh]
            kh = k3[:, :, lo:lo + dh]
            vh = v3[:, :, lo:lo + dh]
            s = lax.dot_general(qh, kh, (((2,), (2,)), ((0,), (0,))),
                                preferred_element_type=f32)              # (2B,S,Sk)
            s = s + bias
            s = s - jnp.max(s, axis=-1, keepdims=True)
            p = jnp.exp(s)
            p = p / jnp.sum(p, axis=-1, keepdims=True)                   # exact divide
            ctx_ref[:, :, lo:lo + dh] = lax.dot_general(
                p.astype(bf16), vh, (((2,), (1,)), ((0,), (0,))),
                preferred_element_type=f32)                              # (2B,S,dh)
        return ctx_ref[...].reshape(B2 * S, D)

    def add_ln(res, y, gi, bi):
        z = res + y                           # dropout = identity (eval mode)
        mu = jnp.mean(z, axis=-1, keepdims=True)
        c = z - mu
        var = jnp.mean(c * c, axis=-1, keepdims=True)
        return c * lax.rsqrt(var + eps) * vecs[gi] + vecs[bi]

    # --- masked self-attention (fused QKV projection) -----------------------
    qkv = jnp.dot(x2.astype(bf16), sa_wqkv_ref[...], preferred_element_type=f32)
    q = qkv[:, :D] + vecs[V_SA_BQ]
    k = qkv[:, D:2 * D] + vecs[V_SA_BK]
    v = qkv[:, 2 * D:] + vecs[V_SA_BV]
    a = attention(q, k, v, slf_bias, S)
    a = jnp.dot(a.astype(bf16), sa_wo_ref[...], preferred_element_type=f32) + vecs[V_SA_BO]
    x2 = add_ln(x2, a, V_G1, V_BT1)

    # --- encoder-decoder attention (fused KV projection) ---------------------
    q = jnp.dot(x2.astype(bf16), ca_wq_ref[...], preferred_element_type=f32) + vecs[V_CA_BQ]
    kv = jnp.dot(enc2.astype(bf16), ca_wkv_ref[...], preferred_element_type=f32)
    k = kv[:, :D] + vecs[V_CA_BK]
    v = kv[:, D:] + vecs[V_CA_BV]
    a = attention(q, k, v, ca_bias, Se)
    a = jnp.dot(a.astype(bf16), ca_wo_ref[...], preferred_element_type=f32) + vecs[V_CA_BO]
    x2 = add_ln(x2, a, V_G2, V_BT2)

    # --- position-wise feed forward ------------------------------------------
    h1 = jnp.maximum(
        jnp.dot(x2.astype(bf16), w1_ref[...], preferred_element_type=f32) + b1_ref[...],
        0.0)
    f = jnp.dot(h1.astype(bf16), w2_ref[...], preferred_element_type=f32) + vecs[V_FFN_B2]
    x2 = add_ln(x2, f, V_G3, V_BT3)

    y = x2.reshape(B2, S, D)
    o_real_ref[...] = y[:B].astype(o_real_ref.dtype)
    o_phase_ref[...] = y[B:].astype(o_phase_ref.dtype)


# ----------------------------------------------------------------------------
# One-time parameter preparation (hoisted out of the forward path).
# ----------------------------------------------------------------------------
def prepare_params(params, n_head):
    sa = params["masked_self_attn"]
    ca = params["enc_dec_attn"]
    ffn = params["pos_ffn"]
    D = sa["wq"].shape[0]
    dh = D // n_head
    scale = 1.0 / float(dh) ** 0.5
    bf16 = jnp.bfloat16

    vecs = jnp.stack([
        sa["bq"] * scale, sa["bk"], sa["bv"], sa["bo"],
        ca["bq"] * scale, ca["bk"], ca["bv"], ca["bo"],
        ffn["b2"],
        params["norm_1"]["gamma"], params["norm_1"]["beta"],
        params["norm_2"]["gamma"], params["norm_2"]["beta"],
        params["norm_3"]["gamma"], params["norm_3"]["beta"],
    ], axis=0).astype(jnp.float32)                                # (NV, D)

    return dict(
        sa_wqkv=jnp.concatenate([sa["wq"] * scale, sa["wk"], sa["wv"]], axis=1).astype(bf16),
        sa_wo=sa["wo"].astype(bf16),
        ca_wq=(ca["wq"] * scale).astype(bf16),
        ca_wkv=jnp.concatenate([ca["wk"], ca["wv"]], axis=1).astype(bf16),
        ca_wo=ca["wo"].astype(bf16),
        w1=ffn["w1"].astype(bf16),
        w2=ffn["w2"].astype(bf16),
        b1=ffn["b1"][None, :].astype(jnp.float32),                # (1, Dffn)
        vecs=vecs,
    )


# ----------------------------------------------------------------------------
# Forward wrapper: single pallas_call, no HBM concats / duplications.
# ----------------------------------------------------------------------------
def decoder_layer(fused, x_real, x_phase, enc_out_real, enc_out_phase,
                  dec_enc_attn_mask, slf_attn_mask, n_head):
    B, S, D = x_real.shape
    Se = enc_out_real.shape[1]
    Dffn = fused["w1"].shape[1]

    def full(shape):
        nd = len(shape)
        return pl.BlockSpec(shape, lambda i, _nd=nd: (0,) * _nd)

    out_real, out_phase = pl.pallas_call(
        functools.partial(_decoder_layer_kernel, n_head=n_head),
        out_shape=(jax.ShapeDtypeStruct((B, S, D), x_real.dtype),
                   jax.ShapeDtypeStruct((B, S, D), x_phase.dtype)),
        grid=(1,),
        in_specs=[
            full((B, S, D)), full((B, S, D)),          # x_real, x_phase
            full((B, Se, D)), full((B, Se, D)),        # enc_real, enc_phase
            full((B, S, S)), full((B, S, Se)),         # masks (shared by streams)
            full((D, 3 * D)), full((D, D)),            # sa_wqkv, sa_wo
            full((D, D)), full((D, 2 * D)), full((D, D)),  # ca_wq, ca_wkv, ca_wo
            full((D, Dffn)), full((Dffn, D)),          # w1, w2
            full((1, Dffn)), full((NV, D)),            # b1, packed vectors
        ],
        out_specs=[full((B, S, D)), full((B, S, D))],
        scratch_shapes=[pltpu.VMEM((2 * B, S, D), jnp.float32)],
        compiler_params=pltpu.CompilerParams(
            dimension_semantics=("arbitrary",),
            vmem_limit_bytes=32 * 1024 * 1024),
    )(x_real, x_phase, enc_out_real, enc_out_phase,
      slf_attn_mask.astype(jnp.float32), dec_enc_attn_mask.astype(jnp.float32),
      fused["sa_wqkv"], fused["sa_wo"],
      fused["ca_wq"], fused["ca_wkv"], fused["ca_wo"],
      fused["w1"], fused["w2"], fused["b1"], fused["vecs"])

    return out_real, out_phase


# ----------------------------------------------------------------------------
# Deterministic parameter init (PyTorch-layout params, f32)
# ----------------------------------------------------------------------------
def init_params(key, d_model, d_ffn):
    def lin(k, din, dout):
        kw, kb = jax.random.split(k)
        return (0.02 * jax.random.normal(kw, (din, dout), jnp.float32),
                0.02 * jax.random.normal(kb, (dout,), jnp.float32))

    def mha(k):
        ks = jax.random.split(k, 4)
        wq, bq = lin(ks[0], d_model, d_model)
        wk, bk = lin(ks[1], d_model, d_model)
        wv, bv = lin(ks[2], d_model, d_model)
        wo, bo = lin(ks[3], d_model, d_model)
        return dict(wq=wq, bq=bq, wk=wk, bk=bk, wv=wv, bv=bv, wo=wo, bo=bo)

    def ln():
        return dict(gamma=jnp.ones((d_model,), jnp.float32),
                    beta=jnp.zeros((d_model,), jnp.float32))

    ks = jax.random.split(key, 4)
    w1, b1 = lin(ks[2], d_model, d_ffn)
    w2, b2 = lin(ks[3], d_ffn, d_model)
    return dict(
        masked_self_attn=mha(ks[0]),
        enc_dec_attn=mha(ks[1]),
        pos_ffn=dict(w1=w1, b1=b1, w2=w2, b2=b2),
        norm_1=ln(), norm_2=ln(), norm_3=ln(),
    )


# ----------------------------------------------------------------------------
if __name__ == "__main__":
    B, S, S_ENC = 2, 8, 8
    D_MODEL, D_FFN, N_HEAD = 32, 64, 4

    key = jax.random.PRNGKey(0)
    kp, k1, k2, k3, k4 = jax.random.split(key, 5)
    params = init_params(kp, D_MODEL, D_FFN)
    fused = prepare_params(params, N_HEAD)          # one-time, outside forward

    x_real = jax.random.normal(k1, (B, S, D_MODEL), jnp.float32)
    x_phase = jax.random.normal(k2, (B, S, D_MODEL), jnp.float32)
    enc_out_real = jax.random.normal(k3, (B, S_ENC, D_MODEL), jnp.float32)
    enc_out_phase = jax.random.normal(k4, (B, S_ENC, D_MODEL), jnp.float32)

    # causal mask for masked self-attention, full mask for enc-dec attention
    # (convention: 1 = attend, 0 = masked)
    slf_attn_mask = jnp.tril(jnp.ones((S, S), jnp.float32))[None].repeat(B, axis=0)
    dec_enc_attn_mask = jnp.ones((B, S, S_ENC), jnp.float32)

    fn = jax.jit(functools.partial(decoder_layer, n_head=N_HEAD))
    out_real, out_phase = fn(fused, x_real, x_phase, enc_out_real,
                             enc_out_phase, dec_enc_attn_mask, slf_attn_mask)
    jax.block_until_ready((out_real, out_phase))

    assert out_real.shape == (B, S, D_MODEL) and out_phase.shape == (B, S, D_MODEL)
    assert jnp.all(jnp.isfinite(out_real)) and jnp.all(jnp.isfinite(out_phase))
    print("KERNEL_OK")
</pallas_src>

<mosaic_0001>
module attributes {stable_mosaic.version = 11 : i64} {
  func.func @_decoder_layer_kernel(%arg0: i32, %arg1: memref<2x8x32xf32, #tpu.memory_space<vmem>>, %arg2: memref<2x8x32xf32, #tpu.memory_space<vmem>>, %arg3: memref<2x8x32xf32, #tpu.memory_space<vmem>>, %arg4: memref<2x8x32xf32, #tpu.memory_space<vmem>>, %arg5: memref<2x8x8xf32, #tpu.memory_space<vmem>>, %arg6: memref<2x8x8xf32, #tpu.memory_space<vmem>>, %arg7: memref<32x96xbf16, #tpu.memory_space<vmem>>, %arg8: memref<32x32xbf16, #tpu.memory_space<vmem>>, %arg9: memref<32x32xbf16, #tpu.memory_space<vmem>>, %arg10: memref<32x64xbf16, #tpu.memory_space<vmem>>, %arg11: memref<32x32xbf16, #tpu.memory_space<vmem>>, %arg12: memref<32x64xbf16, #tpu.memory_space<vmem>>, %arg13: memref<64x32xbf16, #tpu.memory_space<vmem>>, %arg14: memref<1x64xf32, #tpu.memory_space<vmem>>, %arg15: memref<15x32xf32, #tpu.memory_space<vmem>>, %arg16: memref<2x8x32xf32, #tpu.memory_space<vmem>>, %arg17: memref<2x8x32xf32, #tpu.memory_space<vmem>>, %arg18: memref<4x8x32xf32, #tpu.memory_space<vmem>>) attributes {dimension_semantics = [#tpu.dimension_semantics<arbitrary>], iteration_bounds = array<i64: 1>, scalar_prefetch = 0 : i64, scratch_operands = 1 : i64, tpu.core_type = #tpu.core_type<tc>, window_params = [{pipeline_mode = #tpu.pipeline_mode<synchronous>, transform_indices = @transform_0, window_bounds = array<i64: 2, 8, 32>}, {pipeline_mode = #tpu.pipeline_mode<synchronous>, transform_indices = @transform_1, window_bounds = array<i64: 2, 8, 32>}, {pipeline_mode = #tpu.pipeline_mode<synchronous>, transform_indices = @transform_2, window_bounds = array<i64: 2, 8, 32>}, {pipeline_mode = #tpu.pipeline_mode<synchronous>, transform_indices = @transform_3, window_bounds = array<i64: 2, 8, 32>}, {pipeline_mode = #tpu.pipeline_mode<synchronous>, transform_indices = @transform_4, window_bounds = array<i64: 2, 8, 8>}, {pipeline_mode = #tpu.pipeline_mode<synchronous>, transform_indices = @transform_5, window_bounds = array<i64: 2, 8, 8>}, {pipeline_mode = #tpu.pipeline_mode<synchronous>, transform_indices = @transform_6, window_bounds = array<i64: 32, 96>}, {pipeline_mode = #tpu.pipeline_mode<synchronous>, transform_indices = @transform_7, window_bounds = array<i64: 32, 32>}, {pipeline_mode = #tpu.pipeline_mode<synchronous>, transform_indices = @transform_8, window_bounds = array<i64: 32, 32>}, {pipeline_mode = #tpu.pipeline_mode<synchronous>, transform_indices = @transform_9, window_bounds = array<i64: 32, 64>}, {pipeline_mode = #tpu.pipeline_mode<synchronous>, transform_indices = @transform_10, window_bounds = array<i64: 32, 32>}, {pipeline_mode = #tpu.pipeline_mode<synchronous>, transform_indices = @transform_11, window_bounds = array<i64: 32, 64>}, {pipeline_mode = #tpu.pipeline_mode<synchronous>, transform_indices = @transform_12, window_bounds = array<i64: 64, 32>}, {pipeline_mode = #tpu.pipeline_mode<synchronous>, transform_indices = @transform_13, window_bounds = array<i64: 1, 64>}, {pipeline_mode = #tpu.pipeline_mode<synchronous>, transform_indices = @transform_14, window_bounds = array<i64: 15, 32>}, {pipeline_mode = #tpu.pipeline_mode<synchronous>, transform_indices = @transform_15, window_bounds = array<i64: 2, 8, 32>}, {pipeline_mode = #tpu.pipeline_mode<synchronous>, transform_indices = @transform_16, window_bounds = array<i64: 2, 8, 32>}]} {
    %c0 = arith.constant 0 : index
    %c0_0 = arith.constant 0 : index
    %0 = vector.load %arg15[%c0, %c0_0] : memref<15x32xf32, #tpu.memory_space<vmem>>, vector<15x32xf32>
    %c0_1 = arith.constant 0 : index
    %c0_2 = arith.constant 0 : index
    %c0_3 = arith.constant 0 : index
    %1 = vector.load %arg1[%c0_1, %c0_2, %c0_3] : memref<2x8x32xf32, #tpu.memory_space<vmem>>, vector<2x8x32xf32>
    %c0_4 = arith.constant 0 : index
    %c0_5 = arith.constant 0 : index
    %c0_6 = arith.constant 0 : index
    %2 = vector.load %arg2[%c0_4, %c0_5, %c0_6] : memref<2x8x32xf32, #tpu.memory_space<vmem>>, vector<2x8x32xf32>
    %3 = tpu.concatenate %1, %2 in 0 : vector<2x8x32xf32>, vector<2x8x32xf32> -> vector<4x8x32xf32>
    %c0_7 = arith.constant 0 : index
    %c0_8 = arith.constant 0 : index
    %c0_9 = arith.constant 0 : index
    %4 = vector.load %arg3[%c0_7, %c0_8, %c0_9] : memref<2x8x32xf32, #tpu.memory_space<vmem>>, vector<2x8x32xf32>
    %c0_10 = arith.constant 0 : index
    %c0_11 = arith.constant 0 : index
    %c0_12 = arith.constant 0 : index
    %5 = vector.load %arg4[%c0_10, %c0_11, %c0_12] : memref<2x8x32xf32, #tpu.memory_space<vmem>>, vector<2x8x32xf32>
    %6 = tpu.concatenate %4, %5 in 0 : vector<2x8x32xf32>, vector<2x8x32xf32> -> vector<4x8x32xf32>
    %7 = vector.shape_cast %3 : vector<4x8x32xf32> to vector<32x32xf32>
    %8 = vector.shape_cast %6 : vector<4x8x32xf32> to vector<32x32xf32>
    %c0_13 = arith.constant 0 : index
    %c0_14 = arith.constant 0 : index
    %c0_15 = arith.constant 0 : index
    %9 = vector.load %arg5[%c0_13, %c0_14, %c0_15] : memref<2x8x8xf32, #tpu.memory_space<vmem>>, vector<2x8x8xf32>
    %cst = arith.constant 1.000000e+00 : f32
    %10 = vector.broadcast %cst : f32 to vector<2x8x8xf32>
    %11 = arith.subf %9, %10 : vector<2x8x8xf32>
    %cst_16 = arith.constant 1.000000e+09 : f32
    %12 = vector.broadcast %cst_16 : f32 to vector<2x8x8xf32>
    %13 = arith.mulf %11, %12 : vector<2x8x8xf32>
    %14 = tpu.concatenate %13, %13 in 0 : vector<2x8x8xf32>, vector<2x8x8xf32> -> vector<4x8x8xf32>
    %c0_17 = arith.constant 0 : index
    %c0_18 = arith.constant 0 : index
    %c0_19 = arith.constant 0 : index
    %15 = vector.load %arg6[%c0_17, %c0_18, %c0_19] : memref<2x8x8xf32, #tpu.memory_space<vmem>>, vector<2x8x8xf32>
    %cst_20 = arith.constant 1.000000e+00 : f32
    %16 = vector.broadcast %cst_20 : f32 to vector<2x8x8xf32>
    %17 = arith.subf %15, %16 : vector<2x8x8xf32>
    %cst_21 = arith.constant 1.000000e+09 : f32
    %18 = vector.broadcast %cst_21 : f32 to vector<2x8x8xf32>
    %19 = arith.mulf %17, %18 : vector<2x8x8xf32>
    %20 = tpu.concatenate %19, %19 in 0 : vector<2x8x8xf32>, vector<2x8x8xf32> -> vector<4x8x8xf32>
    %21 = arith.truncf %7 : vector<32x32xf32> to vector<32x32xbf16>
    %c0_22 = arith.constant 0 : index
    %c0_23 = arith.constant 0 : index
    %22 = vector.load %arg7[%c0_22, %c0_23] : memref<32x96xbf16, #tpu.memory_space<vmem>>, vector<32x96xbf16>
    %cst_24 = arith.constant dense<0.000000e+00> : vector<32x96xf32>
    %23 = tpu.matmul %21, %22, %cst_24 {dimension_numbers = #tpu.dot_dimension_numbers<[1], [0], [0], [1], [0, 0, 1, 1], [], []>} : vector<32x32xbf16>, vector<32x96xbf16>, vector<32x96xf32> -> vector<32x96xf32>
    %24 = vector.extract_strided_slice %23 {offsets = [0, 0], sizes = [32, 32], strides = [1, 1]} : vector<32x96xf32> to vector<32x32xf32>
    %25 = vector.extract_strided_slice %0 {offsets = [0, 0], sizes = [1, 32], strides = [1, 1]} : vector<15x32xf32> to vector<1x32xf32>
    %26 = vector.shape_cast %25 : vector<1x32xf32> to vector<32xf32>
    %27 = vector.shape_cast %26 : vector<32xf32> to vector<1x32xf32>
    %28 = vector.broadcast %27 : vector<1x32xf32> to vector<32x32xf32>
    %29 = arith.addf %24, %28 : vector<32x32xf32>
    %30 = vector.extract_strided_slice %23 {offsets = [0, 32], sizes = [32, 32], strides = [1, 1]} : vector<32x96xf32> to vector<32x32xf32>
    %31 = vector.extract_strided_slice %0 {offsets = [1, 0], sizes = [1, 32], strides = [1, 1]} : vector<15x32xf32> to vector<1x32xf32>
    %32 = vector.shape_cast %31 : vector<1x32xf32> to vector<32xf32>
    %33 = vector.shape_cast %32 : vector<32xf32> to vector<1x32xf32>
    %34 = vector.broadcast %33 : vector<1x32xf32> to vector<32x32xf32>
    %35 = arith.addf %30, %34 : vector<32x32xf32>
    %36 = vector.extract_strided_slice %23 {offsets = [0, 64], sizes = [32, 32], strides = [1, 1]} : vector<32x96xf32> to vector<32x32xf32>
    %37 = vector.extract_strided_slice %0 {offsets = [2, 0], sizes = [1, 32], strides = [1, 1]} : vector<15x32xf32> to vector<1x32xf32>
    %38 = vector.shape_cast %37 : vector<1x32xf32> to vector<32xf32>
    %39 = vector.shape_cast %38 : vector<32xf32> to vector<1x32xf32>
    %40 = vector.broadcast %39 : vector<1x32xf32> to vector<32x32xf32>
    %41 = arith.addf %36, %40 : vector<32x32xf32>
    %42 = vector.shape_cast %29 : vector<32x32xf32> to vector<4x8x32xf32>
    %43 = arith.truncf %42 : vector<4x8x32xf32> to vector<4x8x32xbf16>
    %44 = vector.shape_cast %35 : vector<32x32xf32> to vector<4x8x32xf32>
    %45 = arith.truncf %44 : vector<4x8x32xf32> to vector<4x8x32xbf16>
    %46 = vector.shape_cast %41 : vector<32x32xf32> to vector<4x8x32xf32>
    %47 = arith.truncf %46 : vector<4x8x32xf32> to vector<4x8x32xbf16>
    %48 = vector.extract_strided_slice %43 {offsets = [0, 0, 0], sizes = [4, 8, 8], strides = [1, 1, 1]} : vector<4x8x32xbf16> to vector<4x8x8xbf16>
    %49 = vector.extract_strided_slice %45 {offsets = [0, 0, 0], sizes = [4, 8, 8], strides = [1, 1, 1]} : vector<4x8x32xbf16> to vector<4x8x8xbf16>
    %50 = vector.extract_strided_slice %47 {offsets = [0, 0, 0], sizes = [4, 8, 8], strides = [1, 1, 1]} : vector<4x8x32xbf16> to vector<4x8x8xbf16>
    %cst_25 = arith.constant dense<0.000000e+00> : vector<4x8x8xf32>
    %51 = tpu.matmul %48, %49, %cst_25 {dimension_numbers = #tpu.dot_dimension_numbers<[2], [2], [1], [1], [0, 0, 0, 1, 1, 1], [0], [0]>} : vector<4x8x8xbf16>, vector<4x8x8xbf16>, vector<4x8x8xf32> -> vector<4x8x8xf32>
    %52 = arith.addf %51, %14 : vector<4x8x8xf32>
    %cst_26 = arith.constant dense<0xFF800000> : vector<4x8xf32>
    %53 = vector.multi_reduction <maximumf>, %52, %cst_26 [2] : vector<4x8x8xf32> to vector<4x8xf32>
    %54 = vector.shape_cast %53 : vector<4x8xf32> to vector<4x8x1xf32>
    %55 = vector.broadcast %54 : vector<4x8x1xf32> to vector<4x8x8xf32>
    %56 = arith.subf %52, %55 : vector<4x8x8xf32>
    %57 = math.exp %56 : vector<4x8x8xf32>
    %cst_27 = arith.constant dense<0.000000e+00> : vector<4x8xf32>
    %58 = vector.multi_reduction <add>, %57, %cst_27 [2] : vector<4x8x8xf32> to vector<4x8xf32>
    %59 = vector.shape_cast %58 : vector<4x8xf32> to vector<4x8x1xf32>
    %60 = vector.broadcast %59 : vector<4x8x1xf32> to vector<4x8x8xf32>
    %61 = arith.divf %57, %60 : vector<4x8x8xf32>
    %62 = arith.truncf %61 : vector<4x8x8xf32> to vector<4x8x8xbf16>
    %cst_28 = arith.constant dense<0.000000e+00> : vector<4x8x8xf32>
    %63 = tpu.matmul %62, %50, %cst_28 {dimension_numbers = #tpu.dot_dimension_numbers<[2], [1], [1], [2], [0, 0, 0, 1, 1, 2], [0], [0]>} : vector<4x8x8xbf16>, vector<4x8x8xbf16>, vector<4x8x8xf32> -> vector<4x8x8xf32>
    %c0_29 = arith.constant 0 : index
    %c0_30 = arith.constant 0 : index
    %c0_31 = arith.constant 0 : index
    %64 = vector.load %arg18[%c0_29, %c0_30, %c0_31] : memref<4x8x32xf32, #tpu.memory_space<vmem>>, vector<4x8x8xf32>
    tpu.vector_store %arg18[%c0_29, %c0_30, %c0_31], %63 {strides = array<i32>} : memref<4x8x32xf32, #tpu.memory_space<vmem>>, vector<4x8x8xf32>,
    %65 = vector.extract_strided_slice %43 {offsets = [0, 0, 8], sizes = [4, 8, 8], strides = [1, 1, 1]} : vector<4x8x32xbf16> to vector<4x8x8xbf16>
    %66 = vector.extract_strided_slice %45 {offsets = [0, 0, 8], sizes = [4, 8, 8], strides = [1, 1, 1]} : vector<4x8x32xbf16> to vector<4x8x8xbf16>
    %67 = vector.extract_strided_slice %47 {offsets = [0, 0, 8], sizes = [4, 8, 8], strides = [1, 1, 1]} : vector<4x8x32xbf16> to vector<4x8x8xbf16>
    %cst_32 = arith.constant dense<0.000000e+00> : vector<4x8x8xf32>
    %68 = tpu.matmul %65, %66, %cst_32 {dimension_numbers = #tpu.dot_dimension_numbers<[2], [2], [1], [1], [0, 0, 0, 1, 1, 1], [0], [0]>} : vector<4x8x8xbf16>, vector<4x8x8xbf16>, vector<4x8x8xf32> -> vector<4x8x8xf32>
    %69 = arith.addf %68, %14 : vector<4x8x8xf32>
    %cst_33 = arith.constant dense<0xFF800000> : vector<4x8xf32>
    %70 = vector.multi_reduction <maximumf>, %69, %cst_33 [2] : vector<4x8x8xf32> to vector<4x8xf32>
    %71 = vector.shape_cast %70 : vector<4x8xf32> to vector<4x8x1xf32>
    %72 = vector.broadcast %71 : vector<4x8x1xf32> to vector<4x8x8xf32>
    %73 = arith.subf %69, %72 : vector<4x8x8xf32>
    %74 = math.exp %73 : vector<4x8x8xf32>
    %cst_34 = arith.constant dense<0.000000e+00> : vector<4x8xf32>
    %75 = vector.multi_reduction <add>, %74, %cst_34 [2] : vector<4x8x8xf32> to vector<4x8xf32>
    %76 = vector.shape_cast %75 : vector<4x8xf32> to vector<4x8x1xf32>
    %77 = vector.broadcast %76 : vector<4x8x1xf32> to vector<4x8x8xf32>
    %78 = arith.divf %74, %77 : vector<4x8x8xf32>
    %79 = arith.truncf %78 : vector<4x8x8xf32> to vector<4x8x8xbf16>
    %cst_35 = arith.constant dense<0.000000e+00> : vector<4x8x8xf32>
    %80 = tpu.matmul %79, %67, %cst_35 {dimension_numbers = #tpu.dot_dimension_numbers<[2], [1], [1], [2], [0, 0, 0, 1, 1, 2], [0], [0]>} : vector<4x8x8xbf16>, vector<4x8x8xbf16>, vector<4x8x8xf32> -> vector<4x8x8xf32>
    %c0_36 = arith.constant 0 : index
    %c0_37 = arith.constant 0 : index
    %c8 = arith.constant 8 : index
    %81 = vector.load %arg18[%c0_36, %c0_37, %c8] : memref<4x8x32xf32, #tpu.memory_space<vmem>>, vector<4x8x8xf32>
    tpu.vector_store %arg18[%c0_36, %c0_37, %c8], %80 {strides = array<i32>} : memref<4x8x32xf32, #tpu.memory_space<vmem>>, vector<4x8x8xf32>,
    %82 = vector.extract_strided_slice %43 {offsets = [0, 0, 16], sizes = [4, 8, 8], strides = [1, 1, 1]} : vector<4x8x32xbf16> to vector<4x8x8xbf16>
    %83 = vector.extract_strided_slice %45 {offsets = [0, 0, 16], sizes = [4, 8, 8], strides = [1, 1, 1]} : vector<4x8x32xbf16> to vector<4x8x8xbf16>
    %84 = vector.extract_strided_slice %47 {offsets = [0, 0, 16], sizes = [4, 8, 8], strides = [1, 1, 1]} : vector<4x8x32xbf16> to vector<4x8x8xbf16>
    %cst_38 = arith.constant dense<0.000000e+00> : vector<4x8x8xf32>
    %85 = tpu.matmul %82, %83, %cst_38 {dimension_numbers = #tpu.dot_dimension_numbers<[2], [2], [1], [1], [0, 0, 0, 1, 1, 1], [0], [0]>} : vector<4x8x8xbf16>, vector<4x8x8xbf16>, vector<4x8x8xf32> -> vector<4x8x8xf32>
    %86 = arith.addf %85, %14 : vector<4x8x8xf32>
    %cst_39 = arith.constant dense<0xFF800000> : vector<4x8xf32>
    %87 = vector.multi_reduction <maximumf>, %86, %cst_39 [2] : vector<4x8x8xf32> to vector<4x8xf32>
    %88 = vector.shape_cast %87 : vector<4x8xf32> to vector<4x8x1xf32>
    %89 = vector.broadcast %88 : vector<4x8x1xf32> to vector<4x8x8xf32>
    %90 = arith.subf %86, %89 : vector<4x8x8xf32>
    %91 = math.exp %90 : vector<4x8x8xf32>
    %cst_40 = arith.constant dense<0.000000e+00> : vector<4x8xf32>
    %92 = vector.multi_reduction <add>, %91, %cst_40 [2] : vector<4x8x8xf32> to vector<4x8xf32>
    %93 = vector.shape_cast %92 : vector<4x8xf32> to vector<4x8x1xf32>
    %94 = vector.broadcast %93 : vector<4x8x1xf32> to vector<4x8x8xf32>
    %95 = arith.divf %91, %94 : vector<4x8x8xf32>
    %96 = arith.truncf %95 : vector<4x8x8xf32> to vector<4x8x8xbf16>
    %cst_41 = arith.constant dense<0.000000e+00> : vector<4x8x8xf32>
    %97 = tpu.matmul %96, %84, %cst_41 {dimension_numbers = #tpu.dot_dimension_numbers<[2], [1], [1], [2], [0, 0, 0, 1, 1, 2], [0], [0]>} : vector<4x8x8xbf16>, vector<4x8x8xbf16>, vector<4x8x8xf32> -> vector<4x8x8xf32>
    %c0_42 = arith.constant 0 : index
    %c0_43 = arith.constant 0 : index
    %c16 = arith.constant 16 : index
    %98 = vector.load %arg18[%c0_42, %c0_43, %c16] : memref<4x8x32xf32, #tpu.memory_space<vmem>>, vector<4x8x8xf32>
    tpu.vector_store %arg18[%c0_42, %c0_43, %c16], %97 {strides = array<i32>} : memref<4x8x32xf32, #tpu.memory_space<vmem>>, vector<4x8x8xf32>,
    %99 = vector.extract_strided_slice %43 {offsets = [0, 0, 24], sizes = [4, 8, 8], strides = [1, 1, 1]} : vector<4x8x32xbf16> to vector<4x8x8xbf16>
    %100 = vector.extract_strided_slice %45 {offsets = [0, 0, 24], sizes = [4, 8, 8], strides = [1, 1, 1]} : vector<4x8x32xbf16> to vector<4x8x8xbf16>
    %101 = vector.extract_strided_slice %47 {offsets = [0, 0, 24], sizes = [4, 8, 8], strides = [1, 1, 1]} : vector<4x8x32xbf16> to vector<4x8x8xbf16>
    %cst_44 = arith.constant dense<0.000000e+00> : vector<4x8x8xf32>
    %102 = tpu.matmul %99, %100, %cst_44 {dimension_numbers = #tpu.dot_dimension_numbers<[2], [2], [1], [1], [0, 0, 0, 1, 1, 1], [0], [0]>} : vector<4x8x8xbf16>, vector<4x8x8xbf16>, vector<4x8x8xf32> -> vector<4x8x8xf32>
    %103 = arith.addf %102, %14 : vector<4x8x8xf32>
    %cst_45 = arith.constant dense<0xFF800000> : vector<4x8xf32>
    %104 = vector.multi_reduction <maximumf>, %103, %cst_45 [2] : vector<4x8x8xf32> to vector<4x8xf32>
    %105 = vector.shape_cast %104 : vector<4x8xf32> to vector<4x8x1xf32>
    %106 = vector.broadcast %105 : vector<4x8x1xf32> to vector<4x8x8xf32>
    %107 = arith.subf %103, %106 : vector<4x8x8xf32>
    %108 = math.exp %107 : vector<4x8x8xf32>
    %cst_46 = arith.constant dense<0.000000e+00> : vector<4x8xf32>
    %109 = vector.multi_reduction <add>, %108, %cst_46 [2] : vector<4x8x8xf32> to vector<4x8xf32>
    %110 = vector.shape_cast %109 : vector<4x8xf32> to vector<4x8x1xf32>
    %111 = vector.broadcast %110 : vector<4x8x1xf32> to vector<4x8x8xf32>
    %112 = arith.divf %108, %111 : vector<4x8x8xf32>
    %113 = arith.truncf %112 : vector<4x8x8xf32> to vector<4x8x8xbf16>
    %cst_47 = arith.constant dense<0.000000e+00> : vector<4x8x8xf32>
    %114 = tpu.matmul %113, %101, %cst_47 {dimension_numbers = #tpu.dot_dimension_numbers<[2], [1], [1], [2], [0, 0, 0, 1, 1, 2], [0], [0]>} : vector<4x8x8xbf16>, vector<4x8x8xbf16>, vector<4x8x8xf32> -> vector<4x8x8xf32>
    %c0_48 = arith.constant 0 : index
    %c0_49 = arith.constant 0 : index
    %c24 = arith.constant 24 : index
    %115 = vector.load %arg18[%c0_48, %c0_49, %c24] : memref<4x8x32xf32, #tpu.memory_space<vmem>>, vector<4x8x8xf32>
    tpu.vector_store %arg18[%c0_48, %c0_49, %c24], %114 {strides = array<i32>} : memref<4x8x32xf32, #tpu.memory_space<vmem>>, vector<4x8x8xf32>,
    %c0_50 = arith.constant 0 : index
    %c0_51 = arith.constant 0 : index
    %c0_52 = arith.constant 0 : index
    %116 = vector.load %arg18[%c0_50, %c0_51, %c0_52] : memref<4x8x32xf32, #tpu.memory_space<vmem>>, vector<4x8x32xf32>
    %117 = vector.shape_cast %116 : vector<4x8x32xf32> to vector<32x32xf32>
    %118 = arith.truncf %117 : vector<32x32xf32> to vector<32x32xbf16>
    %c0_53 = arith.constant 0 : index
    %c0_54 = arith.constant 0 : index
    %119 = vector.load %arg8[%c0_53, %c0_54] : memref<32x32xbf16, #tpu.memory_space<vmem>>, vector<32x32xbf16>
    %cst_55 = arith.constant dense<0.000000e+00> : vector<32x32xf32>
    %120 = tpu.matmul %118, %119, %cst_55 {dimension_numbers = #tpu.dot_dimension_numbers<[1], [0], [0], [1], [0, 0, 1, 1], [], []>} : vector<32x32xbf16>, vector<32x32xbf16>, vector<32x32xf32> -> vector<32x32xf32>
    %121 = vector.extract_strided_slice %0 {offsets = [3, 0], sizes = [1, 32], strides = [1, 1]} : vector<15x32xf32> to vector<1x32xf32>
    %122 = vector.shape_cast %121 : vector<1x32xf32> to vector<32xf32>
    %123 = vector.shape_cast %122 : vector<32xf32> to vector<1x32xf32>
    %124 = vector.broadcast %123 : vector<1x32xf32> to vector<32x32xf32>
    %125 = arith.addf %120, %124 : vector<32x32xf32>
    %126 = arith.addf %7, %125 : vector<32x32xf32>
    %cst_56 = arith.constant dense<0.000000e+00> : vector<32xf32>
    %127 = vector.multi_reduction <add>, %126, %cst_56 [1] : vector<32x32xf32> to vector<32xf32>
    %128 = vector.shape_cast %127 : vector<32xf32> to vector<32x1xf32>
    %cst_57 = arith.constant 3.200000e+01 : f32
    %129 = vector.broadcast %cst_57 : f32 to vector<32x1xf32>
    %130 = arith.divf %128, %129 : vector<32x1xf32>
    %131 = vector.broadcast %130 : vector<32x1xf32> to vector<32x32xf32>
    %132 = arith.subf %126, %131 : vector<32x32xf32>
    %133 = arith.mulf %132, %132 : vector<32x32xf32>
    %cst_58 = arith.constant dense<0.000000e+00> : vector<32xf32>
    %134 = vector.multi_reduction <add>, %133, %cst_58 [1] : vector<32x32xf32> to vector<32xf32>
    %135 = vector.shape_cast %134 : vector<32xf32> to vector<32x1xf32>
    %cst_59 = arith.constant 3.200000e+01 : f32
    %136 = vector.broadcast %cst_59 : f32 to vector<32x1xf32>
    %137 = arith.divf %135, %136 : vector<32x1xf32>
    %cst_60 = arith.constant 9.99999974E-6 : f32
    %138 = vector.broadcast %cst_60 : f32 to vector<32x1xf32>
    %139 = arith.addf %137, %138 : vector<32x1xf32>
    %140 = math.rsqrt %139 : vector<32x1xf32>
    %141 = vector.broadcast %140 : vector<32x1xf32> to vector<32x32xf32>
    %142 = arith.mulf %132, %141 : vector<32x32xf32>
    %143 = vector.extract_strided_slice %0 {offsets = [9, 0], sizes = [1, 32], strides = [1, 1]} : vector<15x32xf32> to vector<1x32xf32>
    %144 = vector.shape_cast %143 : vector<1x32xf32> to vector<32xf32>
    %145 = vector.shape_cast %144 : vector<32xf32> to vector<1x32xf32>
    %146 = vector.broadcast %145 : vector<1x32xf32> to vector<32x32xf32>
    %147 = arith.mulf %142, %146 : vector<32x32xf32>
    %148 = vector.extract_strided_slice %0 {offsets = [10, 0], sizes = [1, 32], strides = [1, 1]} : vector<15x32xf32> to vector<1x32xf32>
    %149 = vector.shape_cast %148 : vector<1x32xf32> to vector<32xf32>
    %150 = vector.shape_cast %149 : vector<32xf32> to vector<1x32xf32>
    %151 = vector.broadcast %150 : vector<1x32xf32> to vector<32x32xf32>
    %152 = arith.addf %147, %151 : vector<32x32xf32>
    %153 = arith.truncf %152 : vector<32x32xf32> to vector<32x32xbf16>
    %c0_61 = arith.constant 0 : index
    %c0_62 = arith.constant 0 : index
    %154 = vector.load %arg9[%c0_61, %c0_62] : memref<32x32xbf16, #tpu.memory_space<vmem>>, vector<32x32xbf16>
    %cst_63 = arith.constant dense<0.000000e+00> : vector<32x32xf32>
    %155 = tpu.matmul %153, %154, %cst_63 {dimension_numbers = #tpu.dot_dimension_numbers<[1], [0], [0], [1], [0, 0, 1, 1], [], []>} : vector<32x32xbf16>, vector<32x32xbf16>, vector<32x32xf32> -> vector<32x32xf32>
    %156 = vector.extract_strided_slice %0 {offsets = [4, 0], sizes = [1, 32], strides = [1, 1]} : vector<15x32xf32> to vector<1x32xf32>
    %157 = vector.shape_cast %156 : vector<1x32xf32> to vector<32xf32>
    %158 = vector.shape_cast %157 : vector<32xf32> to vector<1x32xf32>
    %159 = vector.broadcast %158 : vector<1x32xf32> to vector<32x32xf32>
    %160 = arith.addf %155, %159 : vector<32x32xf32>
    %161 = arith.truncf %8 : vector<32x32xf32> to vector<32x32xbf16>
    %c0_64 = arith.constant 0 : index
    %c0_65 = arith.constant 0 : index
    %162 = vector.load %arg10[%c0_64, %c0_65] : memref<32x64xbf16, #tpu.memory_space<vmem>>, vector<32x64xbf16>
    %cst_66 = arith.constant dense<0.000000e+00> : vector<32x64xf32>
    %163 = tpu.matmul %161, %162, %cst_66 {dimension_numbers = #tpu.dot_dimension_numbers<[1], [0], [0], [1], [0, 0, 1, 1], [], []>} : vector<32x32xbf16>, vector<32x64xbf16>, vector<32x64xf32> -> vector<32x64xf32>
    %164 = vector.extract_strided_slice %163 {offsets = [0, 0], sizes = [32, 32], strides = [1, 1]} : vector<32x64xf32> to vector<32x32xf32>
    %165 = vector.extract_strided_slice %0 {offsets = [5, 0], sizes = [1, 32], strides = [1, 1]} : vector<15x32xf32> to vector<1x32xf32>
    %166 = vector.shape_cast %165 : vector<1x32xf32> to vector<32xf32>
    %167 = vector.shape_cast %166 : vector<32xf32> to vector<1x32xf32>
    %168 = vector.broadcast %167 : vector<1x32xf32> to vector<32x32xf32>
    %169 = arith.addf %164, %168 : vector<32x32xf32>
    %170 = vector.extract_strided_slice %163 {offsets = [0, 32], sizes = [32, 32], strides = [1, 1]} : vector<32x64xf32> to vector<32x32xf32>
    %171 = vector.extract_strided_slice %0 {offsets = [6, 0], sizes = [1, 32], strides = [1, 1]} : vector<15x32xf32> to vector<1x32xf32>
    %172 = vector.shape_cast %171 : vector<1x32xf32> to vector<32xf32>
    %173 = vector.shape_cast %172 : vector<32xf32> to vector<1x32xf32>
    %174 = vector.broadcast %173 : vector<1x32xf32> to vector<32x32xf32>
    %175 = arith.addf %170, %174 : vector<32x32xf32>
    %176 = vector.shape_cast %160 : vector<32x32xf32> to vector<4x8x32xf32>
    %177 = arith.truncf %176 : vector<4x8x32xf32> to vector<4x8x32xbf16>
    %178 = vector.shape_cast %169 : vector<32x32xf32> to vector<4x8x32xf32>
    %179 = arith.truncf %178 : vector<4x8x32xf32> to vector<4x8x32xbf16>
    %180 = vector.shape_cast %175 : vector<32x32xf32> to vector<4x8x32xf32>
    %181 = arith.truncf %180 : vector<4x8x32xf32> to vector<4x8x32xbf16>
    %182 = vector.extract_strided_slice %177 {offsets = [0, 0, 0], sizes = [4, 8, 8], strides = [1, 1, 1]} : vector<4x8x32xbf16> to vector<4x8x8xbf16>
    %183 = vector.extract_strided_slice %179 {offsets = [0, 0, 0], sizes = [4, 8, 8], strides = [1, 1, 1]} : vector<4x8x32xbf16> to vector<4x8x8xbf16>
    %184 = vector.extract_strided_slice %181 {offsets = [0, 0, 0], sizes = [4, 8, 8], strides = [1, 1, 1]} : vector<4x8x32xbf16> to vector<4x8x8xbf16>
    %cst_67 = arith.constant dense<0.000000e+00> : vector<4x8x8xf32>
    %185 = tpu.matmul %182, %183, %cst_67 {dimension_numbers = #tpu.dot_dimension_numbers<[2], [2], [1], [1], [0, 0, 0, 1, 1, 1], [0], [0]>} : vector<4x8x8xbf16>, vector<4x8x8xbf16>, vector<4x8x8xf32> -> vector<4x8x8xf32>
    %186 = arith.addf %185, %20 : vector<4x8x8xf32>
    %cst_68 = arith.constant dense<0xFF800000> : vector<4x8xf32>
    %187 = vector.multi_reduction <maximumf>, %186, %cst_68 [2] : vector<4x8x8xf32> to vector<4x8xf32>
    %188 = vector.shape_cast %187 : vector<4x8xf32> to vector<4x8x1xf32>
    %189 = vector.broadcast %188 : vector<4x8x1xf32> to vector<4x8x8xf32>
    %190 = arith.subf %186, %189 : vector<4x8x8xf32>
    %191 = math.exp %190 : vector<4x8x8xf32>
    %cst_69 = arith.constant dense<0.000000e+00> : vector<4x8xf32>
    %192 = vector.multi_reduction <add>, %191, %cst_69 [2] : vector<4x8x8xf32> to vector<4x8xf32>
    %193 = vector.shape_cast %192 : vector<4x8xf32> to vector<4x8x1xf32>
    %194 = vector.broadcast %193 : vector<4x8x1xf32> to vector<4x8x8xf32>
    %195 = arith.divf %191, %194 : vector<4x8x8xf32>
    %196 = arith.truncf %195 : vector<4x8x8xf32> to vector<4x8x8xbf16>
    %cst_70 = arith.constant dense<0.000000e+00> : vector<4x8x8xf32>
    %197 = tpu.matmul %196, %184, %cst_70 {dimension_numbers = #tpu.dot_dimension_numbers<[2], [1], [1], [2], [0, 0, 0, 1, 1, 2], [0], [0]>} : vector<4x8x8xbf16>, vector<4x8x8xbf16>, vector<4x8x8xf32> -> vector<4x8x8xf32>
    %c0_71 = arith.constant 0 : index
    %c0_72 = arith.constant 0 : index
    %c0_73 = arith.constant 0 : index
    %198 = vector.load %arg18[%c0_71, %c0_72, %c0_73] : memref<4x8x32xf32, #tpu.memory_space<vmem>>, vector<4x8x8xf32>
    tpu.vector_store %arg18[%c0_71, %c0_72, %c0_73], %197 {strides = array<i32>} : memref<4x8x32xf32, #tpu.memory_space<vmem>>, vector<4x8x8xf32>,
    %199 = vector.extract_strided_slice %177 {offsets = [0, 0, 8], sizes = [4, 8, 8], strides = [1, 1, 1]} : vector<4x8x32xbf16> to vector<4x8x8xbf16>
    %200 = vector.extract_strided_slice %179 {offsets = [0, 0, 8], sizes = [4, 8, 8], strides = [1, 1, 1]} : vector<4x8x32xbf16> to vector<4x8x8xbf16>
    %201 = vector.extract_strided_slice %181 {offsets = [0, 0, 8], sizes = [4, 8, 8], strides = [1, 1, 1]} : vector<4x8x32xbf16> to vector<4x8x8xbf16>
    %cst_74 = arith.constant dense<0.000000e+00> : vector<4x8x8xf32>
    %202 = tpu.matmul %199, %200, %cst_74 {dimension_numbers = #tpu.dot_dimension_numbers<[2], [2], [1], [1], [0, 0, 0, 1, 1, 1], [0], [0]>} : vector<4x8x8xbf16>, vector<4x8x8xbf16>, vector<4x8x8xf32> -> vector<4x8x8xf32>
    %203 = arith.addf %202, %20 : vector<4x8x8xf32>
    %cst_75 = arith.constant dense<0xFF800000> : vector<4x8xf32>
    %204 = vector.multi_reduction <maximumf>, %203, %cst_75 [2] : vector<4x8x8xf32> to vector<4x8xf32>
    %205 = vector.shape_cast %204 : vector<4x8xf32> to vector<4x8x1xf32>
    %206 = vector.broadcast %205 : vector<4x8x1xf32> to vector<4x8x8xf32>
    %207 = arith.subf %203, %206 : vector<4x8x8xf32>
    %208 = math.exp %207 : vector<4x8x8xf32>
    %cst_76 = arith.constant dense<0.000000e+00> : vector<4x8xf32>
    %209 = vector.multi_reduction <add>, %208, %cst_76 [2] : vector<4x8x8xf32> to vector<4x8xf32>
    %210 = vector.shape_cast %209 : vector<4x8xf32> to vector<4x8x1xf32>
    %211 = vector.broadcast %210 : vector<4x8x1xf32> to vector<4x8x8xf32>
    %212 = arith.divf %208, %211 : vector<4x8x8xf32>
    %213 = arith.truncf %212 : vector<4x8x8xf32> to vector<4x8x8xbf16>
    %cst_77 = arith.constant dense<0.000000e+00> : vector<4x8x8xf32>
    %214 = tpu.matmul %213, %201, %cst_77 {dimension_numbers = #tpu.dot_dimension_numbers<[2], [1], [1], [2], [0, 0, 0, 1, 1, 2], [0], [0]>} : vector<4x8x8xbf16>, vector<4x8x8xbf16>, vector<4x8x8xf32> -> vector<4x8x8xf32>
    %c0_78 = arith.constant 0 : index
    %c0_79 = arith.constant 0 : index
    %c8_80 = arith.constant 8 : index
    %215 = vector.load %arg18[%c0_78, %c0_79, %c8_80] : memref<4x8x32xf32, #tpu.memory_space<vmem>>, vector<4x8x8xf32>
    tpu.vector_store %arg18[%c0_78, %c0_79, %c8_80], %214 {strides = array<i32>} : memref<4x8x32xf32, #tpu.memory_space<vmem>>, vector<4x8x8xf32>,
    %216 = vector.extract_strided_slice %177 {offsets = [0, 0, 16], sizes = [4, 8, 8], strides = [1, 1, 1]} : vector<4x8x32xbf16> to vector<4x8x8xbf16>
    %217 = vector.extract_strided_slice %179 {offsets = [0, 0, 16], sizes = [4, 8, 8], strides = [1, 1, 1]} : vector<4x8x32xbf16> to vector<4x8x8xbf16>
    %218 = vector.extract_strided_slice %181 {offsets = [0, 0, 16], sizes = [4, 8, 8], strides = [1, 1, 1]} : vector<4x8x32xbf16> to vector<4x8x8xbf16>
    %cst_81 = arith.constant dense<0.000000e+00> : vector<4x8x8xf32>
    %219 = tpu.matmul %216, %217, %cst_81 {dimension_numbers = #tpu.dot_dimension_numbers<[2], [2], [1], [1], [0, 0, 0, 1, 1, 1], [0], [0]>} : vector<4x8x8xbf16>, vector<4x8x8xbf16>, vector<4x8x8xf32> -> vector<4x8x8xf32>
    %220 = arith.addf %219, %20 : vector<4x8x8xf32>
    %cst_82 = arith.constant dense<0xFF800000> : vector<4x8xf32>
    %221 = vector.multi_reduction <maximumf>, %220, %cst_82 [2] : vector<4x8x8xf32> to vector<4x8xf32>
    %222 = vector.shape_cast %221 : vector<4x8xf32> to vector<4x8x1xf32>
    %223 = vector.broadcast %222 : vector<4x8x1xf32> to vector<4x8x8xf32>
    %224 = arith.subf %220, %223 : vector<4x8x8xf32>
    %225 = math.exp %224 : vector<4x8x8xf32>
    %cst_83 = arith.constant dense<0.000000e+00> : vector<4x8xf32>
    %226 = vector.multi_reduction <add>, %225, %cst_83 [2] : vector<4x8x8xf32> to vector<4x8xf32>
    %227 = vector.shape_cast %226 : vector<4x8xf32> to vector<4x8x1xf32>
    %228 = vector.broadcast %227 : vector<4x8x1xf32> to vector<4x8x8xf32>
    %229 = arith.divf %225, %228 : vector<4x8x8xf32>
    %230 = arith.truncf %229 : vector<4x8x8xf32> to vector<4x8x8xbf16>
    %cst_84 = arith.constant dense<0.000000e+00> : vector<4x8x8xf32>
    %231 = tpu.matmul %230, %218, %cst_84 {dimension_numbers = #tpu.dot_dimension_numbers<[2], [1], [1], [2], [0, 0, 0, 1, 1, 2], [0], [0]>} : vector<4x8x8xbf16>, vector<4x8x8xbf16>, vector<4x8x8xf32> -> vector<4x8x8xf32>
    %c0_85 = arith.constant 0 : index
    %c0_86 = arith.constant 0 : index
    %c16_87 = arith.constant 16 : index
    %232 = vector.load %arg18[%c0_85, %c0_86, %c16_87] : memref<4x8x32xf32, #tpu.memory_space<vmem>>, vector<4x8x8xf32>
    tpu.vector_store %arg18[%c0_85, %c0_86, %c16_87], %231 {strides = array<i32>} : memref<4x8x32xf32, #tpu.memory_space<vmem>>, vector<4x8x8xf32>,
    %233 = vector.extract_strided_slice %177 {offsets = [0, 0, 24], sizes = [4, 8, 8], strides = [1, 1, 1]} : vector<4x8x32xbf16> to vector<4x8x8xbf16>
    %234 = vector.extract_strided_slice %179 {offsets = [0, 0, 24], sizes = [4, 8, 8], strides = [1, 1, 1]} : vector<4x8x32xbf16> to vector<4x8x8xbf16>
    %235 = vector.extract_strided_slice %181 {offsets = [0, 0, 24], sizes = [4, 8, 8], strides = [1, 1, 1]} : vector<4x8x32xbf16> to vector<4x8x8xbf16>
    %cst_88 = arith.constant dense<0.000000e+00> : vector<4x8x8xf32>
    %236 = tpu.matmul %233, %234, %cst_88 {dimension_numbers = #tpu.dot_dimension_numbers<[2], [2], [1], [1], [0, 0, 0, 1, 1, 1], [0], [0]>} : vector<4x8x8xbf16>, vector<4x8x8xbf16>, vector<4x8x8xf32> -> vector<4x8x8xf32>
    %237 = arith.addf %236, %20 : vector<4x8x8xf32>
    %cst_89 = arith.constant dense<0xFF800000> : vector<4x8xf32>
    %238 = vector.multi_reduction <maximumf>, %237, %cst_89 [2] : vector<4x8x8xf32> to vector<4x8xf32>
    %239 = vector.shape_cast %238 : vector<4x8xf32> to vector<4x8x1xf32>
    %240 = vector.broadcast %239 : vector<4x8x1xf32> to vector<4x8x8xf32>
    %241 = arith.subf %237, %240 : vector<4x8x8xf32>
    %242 = math.exp %241 : vector<4x8x8xf32>
    %cst_90 = arith.constant dense<0.000000e+00> : vector<4x8xf32>
    %243 = vector.multi_reduction <add>, %242, %cst_90 [2] : vector<4x8x8xf32> to vector<4x8xf32>
    %244 = vector.shape_cast %243 : vector<4x8xf32> to vector<4x8x1xf32>
    %245 = vector.broadcast %244 : vector<4x8x1xf32> to vector<4x8x8xf32>
    %246 = arith.divf %242, %245 : vector<4x8x8xf32>
    %247 = arith.truncf %246 : vector<4x8x8xf32> to vector<4x8x8xbf16>
    %cst_91 = arith.constant dense<0.000000e+00> : vector<4x8x8xf32>
    %248 = tpu.matmul %247, %235, %cst_91 {dimension_numbers = #tpu.dot_dimension_numbers<[2], [1], [1], [2], [0, 0, 0, 1, 1, 2], [0], [0]>} : vector<4x8x8xbf16>, vector<4x8x8xbf16>, vector<4x8x8xf32> -> vector<4x8x8xf32>
    %c0_92 = arith.constant 0 : index
    %c0_93 = arith.constant 0 : index
    %c24_94 = arith.constant 24 : index
    %249 = vector.load %arg18[%c0_92, %c0_93, %c24_94] : memref<4x8x32xf32, #tpu.memory_space<vmem>>, vector<4x8x8xf32>
    tpu.vector_store %arg18[%c0_92, %c0_93, %c24_94], %248 {strides = array<i32>} : memref<4x8x32xf32, #tpu.memory_space<vmem>>, vector<4x8x8xf32>,
    %c0_95 = arith.constant 0 : index
    %c0_96 = arith.constant 0 : index
    %c0_97 = arith.constant 0 : index
    %250 = vector.load %arg18[%c0_95, %c0_96, %c0_97] : memref<4x8x32xf32, #tpu.memory_space<vmem>>, vector<4x8x32xf32>
    %251 = vector.shape_cast %250 : vector<4x8x32xf32> to vector<32x32xf32>
    %252 = arith.truncf %251 : vector<32x32xf32> to vector<32x32xbf16>
    %c0_98 = arith.constant 0 : index
    %c0_99 = arith.constant 0 : index
    %253 = vector.load %arg11[%c0_98, %c0_99] : memref<32x32xbf16, #tpu.memory_space<vmem>>, vector<32x32xbf16>
    %cst_100 = arith.constant dense<0.000000e+00> : vector<32x32xf32>
    %254 = tpu.matmul %252, %253, %cst_100 {dimension_numbers = #tpu.dot_dimension_numbers<[1], [0], [0], [1], [0, 0, 1, 1], [], []>} : vector<32x32xbf16>, vector<32x32xbf16>, vector<32x32xf32> -> vector<32x32xf32>
    %255 = vector.extract_strided_slice %0 {offsets = [7, 0], sizes = [1, 32], strides = [1, 1]} : vector<15x32xf32> to vector<1x32xf32>
    %256 = vector.shape_cast %255 : vector<1x32xf32> to vector<32xf32>
    %257 = vector.shape_cast %256 : vector<32xf32> to vector<1x32xf32>
    %258 = vector.broadcast %257 : vector<1x32xf32> to vector<32x32xf32>
    %259 = arith.addf %254, %258 : vector<32x32xf32>
    %260 = arith.addf %152, %259 : vector<32x32xf32>
    %cst_101 = arith.constant dense<0.000000e+00> : vector<32xf32>
    %261 = vector.multi_reduction <add>, %260, %cst_101 [1] : vector<32x32xf32> to vector<32xf32>
    %262 = vector.shape_cast %261 : vector<32xf32> to vector<32x1xf32>
    %cst_102 = arith.constant 3.200000e+01 : f32
    %263 = vector.broadcast %cst_102 : f32 to vector<32x1xf32>
    %264 = arith.divf %262, %263 : vector<32x1xf32>
    %265 = vector.broadcast %264 : vector<32x1xf32> to vector<32x32xf32>
    %266 = arith.subf %260, %265 : vector<32x32xf32>
    %267 = arith.mulf %266, %266 : vector<32x32xf32>
    %cst_103 = arith.constant dense<0.000000e+00> : vector<32xf32>
    %268 = vector.multi_reduction <add>, %267, %cst_103 [1] : vector<32x32xf32> to vector<32xf32>
    %269 = vector.shape_cast %268 : vector<32xf32> to vector<32x1xf32>
    %cst_104 = arith.constant 3.200000e+01 : f32
    %270 = vector.broadcast %cst_104 : f32 to vector<32x1xf32>
    %271 = arith.divf %269, %270 : vector<32x1xf32>
    %cst_105 = arith.constant 9.99999974E-6 : f32
    %272 = vector.broadcast %cst_105 : f32 to vector<32x1xf32>
    %273 = arith.addf %271, %272 : vector<32x1xf32>
    %274 = math.rsqrt %273 : vector<32x1xf32>
    %275 = vector.broadcast %274 : vector<32x1xf32> to vector<32x32xf32>
    %276 = arith.mulf %266, %275 : vector<32x32xf32>
    %277 = vector.extract_strided_slice %0 {offsets = [11, 0], sizes = [1, 32], strides = [1, 1]} : vector<15x32xf32> to vector<1x32xf32>
    %278 = vector.shape_cast %277 : vector<1x32xf32> to vector<32xf32>
    %279 = vector.shape_cast %278 : vector<32xf32> to vector<1x32xf32>
    %280 = vector.broadcast %279 : vector<1x32xf32> to vector<32x32xf32>
    %281 = arith.mulf %276, %280 : vector<32x32xf32>
    %282 = vector.extract_strided_slice %0 {offsets = [12, 0], sizes = [1, 32], strides = [1, 1]} : vector<15x32xf32> to vector<1x32xf32>
    %283 = vector.shape_cast %282 : vector<1x32xf32> to vector<32xf32>
    %284 = vector.shape_cast %283 : vector<32xf32> to vector<1x32xf32>
    %285 = vector.broadcast %284 : vector<1x32xf32> to vector<32x32xf32>
    %286 = arith.addf %281, %285 : vector<32x32xf32>
    %287 = arith.truncf %286 : vector<32x32xf32> to vector<32x32xbf16>
    %c0_106 = arith.constant 0 : index
    %c0_107 = arith.constant 0 : index
    %288 = vector.load %arg12[%c0_106, %c0_107] : memref<32x64xbf16, #tpu.memory_space<vmem>>, vector<32x64xbf16>
    %cst_108 = arith.constant dense<0.000000e+00> : vector<32x64xf32>
    %289 = tpu.matmul %287, %288, %cst_108 {dimension_numbers = #tpu.dot_dimension_numbers<[1], [0], [0], [1], [0, 0, 1, 1], [], []>} : vector<32x32xbf16>, vector<32x64xbf16>, vector<32x64xf32> -> vector<32x64xf32>
    %c0_109 = arith.constant 0 : index
    %c0_110 = arith.constant 0 : index
    %290 = vector.load %arg14[%c0_109, %c0_110] : memref<1x64xf32, #tpu.memory_space<vmem>>, vector<1x64xf32>
    %291 = vector.broadcast %290 : vector<1x64xf32> to vector<32x64xf32>
    %292 = arith.addf %289, %291 : vector<32x64xf32>
    %cst_111 = arith.constant 0.000000e+00 : f32
    %293 = vector.broadcast %cst_111 : f32 to vector<32x64xf32>
    %294 = arith.maximumf %292, %293 : vector<32x64xf32>
    %295 = arith.truncf %294 : vector<32x64xf32> to vector<32x64xbf16>
    %c0_112 = arith.constant 0 : index
    %c0_113 = arith.constant 0 : index
    %296 = vector.load %arg13[%c0_112, %c0_113] : memref<64x32xbf16, #tpu.memory_space<vmem>>, vector<64x32xbf16>
    %cst_114 = arith.constant dense<0.000000e+00> : vector<32x32xf32>
    %297 = tpu.matmul %295, %296, %cst_114 {dimension_numbers = #tpu.dot_dimension_numbers<[1], [0], [0], [1], [0, 0, 1, 1], [], []>} : vector<32x64xbf16>, vector<64x32xbf16>, vector<32x32xf32> -> vector<32x32xf32>
    %298 = vector.extract_strided_slice %0 {offsets = [8, 0], sizes = [1, 32], strides = [1, 1]} : vector<15x32xf32> to vector<1x32xf32>
    %299 = vector.shape_cast %298 : vector<1x32xf32> to vector<32xf32>
    %300 = vector.shape_cast %299 : vector<32xf32> to vector<1x32xf32>
    %301 = vector.broadcast %300 : vector<1x32xf32> to vector<32x32xf32>
    %302 = arith.addf %297, %301 : vector<32x32xf32>
    %303 = arith.addf %286, %302 : vector<32x32xf32>
    %cst_115 = arith.constant dense<0.000000e+00> : vector<32xf32>
    %304 = vector.multi_reduction <add>, %303, %cst_115 [1] : vector<32x32xf32> to vector<32xf32>
    %305 = vector.shape_cast %304 : vector<32xf32> to vector<32x1xf32>
    %cst_116 = arith.constant 3.200000e+01 : f32
    %306 = vector.broadcast %cst_116 : f32 to vector<32x1xf32>
    %307 = arith.divf %305, %306 : vector<32x1xf32>
    %308 = vector.broadcast %307 : vector<32x1xf32> to vector<32x32xf32>
    %309 = arith.subf %303, %308 : vector<32x32xf32>
    %310 = arith.mulf %309, %309 : vector<32x32xf32>
    %cst_117 = arith.constant dense<0.000000e+00> : vector<32xf32>
    %311 = vector.multi_reduction <add>, %310, %cst_117 [1] : vector<32x32xf32> to vector<32xf32>
    %312 = vector.shape_cast %311 : vector<32xf32> to vector<32x1xf32>
    %cst_118 = arith.constant 3.200000e+01 : f32
    %313 = vector.broadcast %cst_118 : f32 to vector<32x1xf32>
    %314 = arith.divf %312, %313 : vector<32x1xf32>
    %cst_119 = arith.constant 9.99999974E-6 : f32
    %315 = vector.broadcast %cst_119 : f32 to vector<32x1xf32>
    %316 = arith.addf %314, %315 : vector<32x1xf32>
    %317 = math.rsqrt %316 : vector<32x1xf32>
    %318 = vector.broadcast %317 : vector<32x1xf32> to vector<32x32xf32>
    %319 = arith.mulf %309, %318 : vector<32x32xf32>
    %320 = vector.extract_strided_slice %0 {offsets = [13, 0], sizes = [1, 32], strides = [1, 1]} : vector<15x32xf32> to vector<1x32xf32>
    %321 = vector.shape_cast %320 : vector<1x32xf32> to vector<32xf32>
    %322 = vector.shape_cast %321 : vector<32xf32> to vector<1x32xf32>
    %323 = vector.broadcast %322 : vector<1x32xf32> to vector<32x32xf32>
    %324 = arith.mulf %319, %323 : vector<32x32xf32>
    %325 = vector.extract_strided_slice %0 {offsets = [14, 0], sizes = [1, 32], strides = [1, 1]} : vector<15x32xf32> to vector<1x32xf32>
    %326 = vector.shape_cast %325 : vector<1x32xf32> to vector<32xf32>
    %327 = vector.shape_cast %326 : vector<32xf32> to vector<1x32xf32>
    %328 = vector.broadcast %327 : vector<1x32xf32> to vector<32x32xf32>
    %329 = arith.addf %324, %328 : vector<32x32xf32>
    %330 = vector.shape_cast %329 : vector<32x32xf32> to vector<4x8x32xf32>
    %331 = vector.extract_strided_slice %330 {offsets = [0, 0, 0], sizes = [2, 8, 32], strides = [1, 1, 1]} : vector<4x8x32xf32> to vector<2x8x32xf32>
    %c0_120 = arith.constant 0 : index
    %c0_121 = arith.constant 0 : index
    %c0_122 = arith.constant 0 : index
    %332 = vector.load %arg16[%c0_120, %c0_121, %c0_122] : memref<2x8x32xf32, #tpu.memory_space<vmem>>, vector<2x8x32xf32>
    tpu.vector_store %arg16[%c0_120, %c0_121, %c0_122], %331 {strides = array<i32>} : memref<2x8x32xf32, #tpu.memory_space<vmem>>, vector<2x8x32xf32>,
    %333 = vector.extract_strided_slice %330 {offsets = [2, 0, 0], sizes = [2, 8, 32], strides = [1, 1, 1]} : vector<4x8x32xf32> to vector<2x8x32xf32>
    %c0_123 = arith.constant 0 : index
    %c0_124 = arith.constant 0 : index
    %c0_125 = arith.constant 0 : index
    %334 = vector.load %arg17[%c0_123, %c0_124, %c0_125] : memref<2x8x32xf32, #tpu.memory_space<vmem>>, vector<2x8x32xf32>
    tpu.vector_store %arg17[%c0_123, %c0_124, %c0_125], %333 {strides = array<i32>} : memref<2x8x32xf32, #tpu.memory_space<vmem>>, vector<2x8x32xf32>,
    return
  }
  func.func @transform_0(%arg0: i32) -> (i32, i32, i32) {
    %c0_i32 = arith.constant 0 : i32
    %c0_i32_0 = arith.constant 0 : i32
    %c0_i32_1 = arith.constant 0 : i32
    %c0_i32_2 = arith.constant 0 : i32
    return %c0_i32, %c0_i32_0, %c0_i32_1 : i32, i32, i32
  }
  func.func @transform_1(%arg0: i32) -> (i32, i32, i32) {
    %c0_i32 = arith.constant 0 : i32
    %c0_i32_0 = arith.constant 0 : i32
    %c0_i32_1 = arith.constant 0 : i32
    %c0_i32_2 = arith.constant 0 : i32
    return %c0_i32, %c0_i32_0, %c0_i32_1 : i32, i32, i32
  }
  func.func @transform_2(%arg0: i32) -> (i32, i32, i32) {
    %c0_i32 = arith.constant 0 : i32
    %c0_i32_0 = arith.constant 0 : i32
    %c0_i32_1 = arith.constant 0 : i32
    %c0_i32_2 = arith.constant 0 : i32
    return %c0_i32, %c0_i32_0, %c0_i32_1 : i32, i32, i32
  }
  func.func @transform_3(%arg0: i32) -> (i32, i32, i32) {
    %c0_i32 = arith.constant 0 : i32
    %c0_i32_0 = arith.constant 0 : i32
    %c0_i32_1 = arith.constant 0 : i32
    %c0_i32_2 = arith.constant 0 : i32
    return %c0_i32, %c0_i32_0, %c0_i32_1 : i32, i32, i32
  }
  func.func @transform_4(%arg0: i32) -> (i32, i32, i32) {
    %c0_i32 = arith.constant 0 : i32
    %c0_i32_0 = arith.constant 0 : i32
    %c0_i32_1 = arith.constant 0 : i32
    %c0_i32_2 = arith.constant 0 : i32
    return %c0_i32, %c0_i32_0, %c0_i32_1 : i32, i32, i32
  }
  func.func @transform_5(%arg0: i32) -> (i32, i32, i32) {
    %c0_i32 = arith.constant 0 : i32
    %c0_i32_0 = arith.constant 0 : i32
    %c0_i32_1 = arith.constant 0 : i32
    %c0_i32_2 = arith.constant 0 : i32
    return %c0_i32, %c0_i32_0, %c0_i32_1 : i32, i32, i32
  }
  func.func @transform_6(%arg0: i32) -> (i32, i32) {
    %c0_i32 = arith.constant 0 : i32
    %c0_i32_0 = arith.constant 0 : i32
    %c0_i32_1 = arith.constant 0 : i32
    return %c0_i32, %c0_i32_0 : i32, i32
  }
  func.func @transform_7(%arg0: i32) -> (i32, i32) {
    %c0_i32 = arith.constant 0 : i32
    %c0_i32_0 = arith.constant 0 : i32
    %c0_i32_1 = arith.constant 0 : i32
    return %c0_i32, %c0_i32_0 : i32, i32
  }
  func.func @transform_8(%arg0: i32) -> (i32, i32) {
    %c0_i32 = arith.constant 0 : i32
    %c0_i32_0 = arith.constant 0 : i32
    %c0_i32_1 = arith.constant 0 : i32
    return %c0_i32, %c0_i32_0 : i32, i32
  }
  func.func @transform_9(%arg0: i32) -> (i32, i32) {
    %c0_i32 = arith.constant 0 : i32
    %c0_i32_0 = arith.constant 0 : i32
    %c0_i32_1 = arith.constant 0 : i32
    return %c0_i32, %c0_i32_0 : i32, i32
  }
  func.func @transform_10(%arg0: i32) -> (i32, i32) {
    %c0_i32 = arith.constant 0 : i32
    %c0_i32_0 = arith.constant 0 : i32
    %c0_i32_1 = arith.constant 0 : i32
    return %c0_i32, %c0_i32_0 : i32, i32
  }
  func.func @transform_11(%arg0: i32) -> (i32, i32) {
    %c0_i32 = arith.constant 0 : i32
    %c0_i32_0 = arith.constant 0 : i32
    %c0_i32_1 = arith.constant 0 : i32
    return %c0_i32, %c0_i32_0 : i32, i32
  }
  func.func @transform_12(%arg0: i32) -> (i32, i32) {
    %c0_i32 = arith.constant 0 : i32
    %c0_i32_0 = arith.constant 0 : i32
    %c0_i32_1 = arith.constant 0 : i32
    return %c0_i32, %c0_i32_0 : i32, i32
  }
  func.func @transform_13(%arg0: i32) -> (i32, i32) {
    %c0_i32 = arith.constant 0 : i32
    %c0_i32_0 = arith.constant 0 : i32
    %c0_i32_1 = arith.constant 0 : i32
    return %c0_i32, %c0_i32_0 : i32, i32
  }
  func.func @transform_14(%arg0: i32) -> (i32, i32) {
    %c0_i32 = arith.constant 0 : i32
    %c0_i32_0 = arith.constant 0 : i32
    %c0_i32_1 = arith.constant 0 : i32
    return %c0_i32, %c0_i32_0 : i32, i32
  }
  func.func @transform_15(%arg0: i32) -> (i32, i32, i32) {
    %c0_i32 = arith.constant 0 : i32
    %c0_i32_0 = arith.constant 0 : i32
    %c0_i32_1 = arith.constant 0 : i32
    %c0_i32_2 = arith.constant 0 : i32
    return %c0_i32, %c0_i32_0, %c0_i32_1 : i32, i32, i32
  }
  func.func @transform_16(%arg0: i32) -> (i32, i32, i32) {
    %c0_i32 = arith.constant 0 : i32
    %c0_i32_0 = arith.constant 0 : i32
    %c0_i32_1 = arith.constant 0 : i32
    %c0_i32_2 = arith.constant 0 : i32
    return %c0_i32, %c0_i32_0, %c0_i32_1 : i32, i32, i32
  }
}

</mosaic_0001>

<llo_original>
// kernel: decoder_layer.1
$region0: #{decoder_layer.1}
  #allocation0 [shape = 'u32[]', space=smem, size = 0x4, offset = 0x4, fixed_abs, tag = 'smem constant byte address 0x4 - core index']
  #allocation1 [shape = 'u32[144,128]{1,0:T(1,128)}', space=vmem, size = 0x12000, scoped, tag = 'internal scratch']
  #allocation2 [shape = 'f32[4,8,32]{2,1,0:T(8,128)}', space=vmem, size = 0x4000, scoped, tag = 'scratch operand']
  %s0 = inlined_call_operand.vmem [shape: f32[2,8,32], index: 0, kind: input, shape index: {}]
  %s1 = inlined_call_operand.vmem [shape: f32[2,8,32], index: 1, kind: input, shape index: {}]
  %s2 = inlined_call_operand.vmem [shape: f32[2,8,32], index: 2, kind: input, shape index: {}]
  %s3 = inlined_call_operand.vmem [shape: f32[2,8,32], index: 3, kind: input, shape index: {}]
  %s4 = inlined_call_operand.vmem [shape: f32[2,8,8], index: 4, kind: input, shape index: {}]
  %s5 = inlined_call_operand.hbm [shape: f32[2,8,8], index: 5, kind: input, shape index: {}]
  %s6 = inlined_call_operand.hbm [shape: bf16[32,96], index: 6, kind: input, shape index: {}]
  %s7 = inlined_call_operand.hbm [shape: bf16[32,32], index: 7, kind: input, shape index: {}]
  %s8 = inlined_call_operand.hbm [shape: bf16[32,32], index: 8, kind: input, shape index: {}]
  %s9 = inlined_call_operand.hbm [shape: bf16[32,64], index: 9, kind: input, shape index: {}]
  %s10 = inlined_call_operand.hbm [shape: bf16[32,32], index: 10, kind: input, shape index: {}]
  %s11 = inlined_call_operand.hbm [shape: bf16[32,64], index: 11, kind: input, shape index: {}]
  %s12 = inlined_call_operand.vmem [shape: bf16[64,32], index: 12, kind: input, shape index: {}]
  %s13 = inlined_call_operand.hbm [shape: f32[1,64], index: 13, kind: input, shape index: {}]
  %s14 = inlined_call_operand.hbm [shape: f32[15,32], index: 14, kind: input, shape index: {}]
  %s15 = inlined_call_operand.hbm [shape: f32[2,8,32], index: 15, kind: output, shape index: {0}]
  %s16 = inlined_call_operand.hbm [shape: f32[2,8,32], index: 16, kind: output, shape index: {1}]
  %17 = xla_tuple %s15, %s16
  %s18 = sld [smem:[#allocation0]]
  $region114: #{decoder_layer.1} parent=0
    _
  %s20 = ssub.s32 1, %s18
  %s21 = scalar_select 0, %s20, %s18
  $region1: #{decoder_layer.1} parent=0
    #allocation3 [shape = 'u8[8192]{0}', space=vmem, size = 0x2000, scoped, tag = 'input window, operand 5, single buffered']
    #allocation4 [shape = 's32[1]{0}', space=sflag, size = 0x4, scoped, tag = 'scoped memory for decoder_layer.1']
    #allocation5 [shape = 's32[1]{0}', space=sflag, size = 0x4, scoped, tag = 'scoped memory for decoder_layer.1']
    #allocation6 [shape = 'u8[8192]{0}', space=vmem, size = 0x2000, scoped, tag = 'input window, operand 6, single buffered']
    #allocation7 [shape = 's32[1]{0}', space=sflag, size = 0x4, scoped, tag = 'scoped memory for decoder_layer.1']
    #allocation8 [shape = 'u8[8192]{0}', space=vmem, size = 0x2000, scoped, tag = 'input window, operand 7, single buffered']
    #allocation9 [shape = 'u8[8192]{0}', space=vmem, size = 0x2000, scoped, tag = 'input window, operand 8, single buffered']
    #allocation10 [shape = 's32[1]{0}', space=sflag, size = 0x4, scoped, tag = 'scoped memory for decoder_layer.1']
    #allocation11 [shape = 'u8[8192]{0}', space=vmem, size = 0x2000, scoped, tag = 'input window, operand 9, single buffered']
    #allocation12 [shape = 'u8[8192]{0}', space=vmem, size = 0x2000, scoped, tag = 'input window, operand 10, single buffered']
    #allocation13 [shape = 's32[1]{0}', space=sflag, size = 0x4, scoped, tag = 'scoped memory for decoder_layer.1']
    #allocation14 [shape = 'u8[8192]{0}', space=vmem, size = 0x2000, scoped, tag = 'input window, operand 11, single buffered']
    #allocation15 [shape = 'u8[512]{0}', space=vmem, size = 0x400, scoped, tag = 'input window, operand 13, single buffered']
    #allocation16 [shape = 's32[1]{0}', space=sflag, size = 0x4, scoped, tag = 'scoped memory for decoder_layer.1']
    #allocation17 [shape = 'u8[8192]{0}', space=vmem, size = 0x2000, scoped, tag = 'input window, operand 14, single buffered']
    #allocation18 [shape = 'u8[8192]{0}', space=vmem, size = 0x2000, scoped, tag = 'output window, operand 0, single buffered']
    #allocation19 [shape = 'u8[8192]{0}', space=vmem, size = 0x2000, scoped, tag = 'output window, operand 1, single buffered']
    #allocation20 [shape = 's32[1]{0}', space=sflag, size = 0x4, scoped, tag = 'scoped memory for decoder_layer.1']
    %22 = vsyncpa [#allocation4], 0
    %23 = vsyncpa [#allocation7], 0
    %24 = vsyncpa [#allocation10], 0
    %25 = vsyncpa [#allocation13], 0
    %26 = vsyncpa [#allocation16], 0
    %27 = vsyncpa [#allocation5], 0
    %28 = vsyncpa [#allocation20], 0
    // Predicated region
    $region2: #{decoder_layer.1} parent=1 // pred_check
      _
    $region3: #{decoder_layer.1} parent=1 // pred_check_branch
      %30 = sbr.rel (0) target = $region5
    $region4: #{decoder_layer.1} parent=1 // pred_region
      _
    $region5: #{decoder_layer.1} parent=1 // pred_fallthru
      _
    // Predicated region
    $region6: #{decoder_layer.1} parent=1 // pred_check
      _
    $region7: #{decoder_layer.1} parent=1 // pred_check_branch
      %32 = sbr.rel (0) target = $region9
    $region8: #{decoder_layer.1} parent=1 // pred_region
      _
    $region9: #{decoder_layer.1} parent=1 // pred_fallthru
      _
    // Predicated region
    $region10: #{decoder_layer.1} parent=1 // pred_check
      _
    $region11: #{decoder_layer.1} parent=1 // pred_check_branch
      %34 = sbr.rel (0) target = $region13
    $region12: #{decoder_layer.1} parent=1 // pred_region
      _
    $region13: #{decoder_layer.1} parent=1 // pred_fallthru
      _
    // Predicated region
    $region14: #{decoder_layer.1} parent=1 // pred_check
      _
    $region15: #{decoder_layer.1} parent=1 // pred_check_branch
      %36 = sbr.rel (0) target = $region17
    $region16: #{decoder_layer.1} parent=1 // pred_region
      _
    $region17: #{decoder_layer.1} parent=1 // pred_fallthru
      _
    // Predicated region
    $region18: #{decoder_layer.1} parent=1 // pred_check
      _
    $region19: #{decoder_layer.1} parent=1 // pred_check_branch
      %38 = sbr.rel (0) target = $region21
    $region20: #{decoder_layer.1} parent=1 // pred_region
      _
    $region21: #{decoder_layer.1} parent=1 // pred_fallthru
      _
    // Predicated region
    $region22: #{decoder_layer.1} parent=1 // pred_check
      _
    $region23: #{decoder_layer.1} parent=1 // pred_check_branch
      %40 = sbr.rel (0) target = $region25
    $region24: #{decoder_layer.1} parent=1 // pred_region
      %s42 = ssub.s32 256, 256
      %43 = vsyncadd [#allocation4], %s42
      %s44 = sshll.u32 [#allocation3], 4
      %s45 = int_to_ptr.vmem [resolvable:$true] %s44
      %50 = dma.hbm_to_vmem [thread:$0]  %s5, 256, %s45, [#allocation4], 128, 128, 8
    $region25: #{decoder_layer.1} parent=1 // pred_fallthru
      _
    // Predicated region
    $region26: #{decoder_layer.1} parent=1 // pred_check
      _
    $region27: #{decoder_layer.1} parent=1 // pred_check_branch
      %52 = sbr.rel (0) target = $region29
    $region28: #{decoder_layer.1} parent=1 // pred_region
      %s54 = ssub.s32 256, 256
      %55 = vsyncadd [#allocation7], %s54
      %s56 = sshll.u32 [#allocation6], 4
      %s57 = int_to_ptr.vmem [resolvable:$true] %s56
      %62 = dma.hbm_to_vmem [thread:$0]  %s6, 256, %s57, [#allocation7], 64, 64, 4
    $region29: #{decoder_layer.1} parent=1 // pred_fallthru
      _
    // Predicated region
    $region30: #{decoder_layer.1} parent=1 // pred_check
      _
    $region31: #{decoder_layer.1} parent=1 // pred_check_branch
      %64 = sbr.rel (0) target = $region33
    $region32: #{decoder_layer.1} parent=1 // pred_region
      %s66 = ssub.s32 256, 256
      %67 = vsyncadd [#allocation7], %s66
      %s68 = sshll.u32 [#allocation8], 4
      %s69 = int_to_ptr.vmem [resolvable:$true] %s68
      %74 = dma.hbm_to_vmem [thread:$0]  %s7, 256, %s69, [#allocation7], 64, 64, 4
    $region33: #{decoder_layer.1} parent=1 // pred_fallthru
      _
    // Predicated region
    $region34: #{decoder_layer.1} parent=1 // pred_check
      _
    $region35: #{decoder_layer.1} parent=1 // pred_check_branch
      %76 = sbr.rel (0) target = $region37
    $region36: #{decoder_layer.1} parent=1 // pred_region
      %s78 = ssub.s32 256, 256
      %79 = vsyncadd [#allocation10], %s78
      %s80 = sshll.u32 [#allocation9], 4
      %s81 = int_to_ptr.vmem [resolvable:$true] %s80
      %86 = dma.hbm_to_vmem [thread:$0]  %s8, 256, %s81, [#allocation10], 64, 64, 4
    $region37: #{decoder_layer.1} parent=1 // pred_fallthru
      _
    // Predicated region
    $region38: #{decoder_layer.1} parent=1 // pred_check
      _
    $region39: #{decoder_layer.1} parent=1 // pred_check_branch
      %88 = sbr.rel (0) target = $region41
    $region40: #{decoder_layer.1} parent=1 // pred_region
      %s90 = ssub.s32 256, 256
      %91 = vsyncadd [#allocation10], %s90
      %s92 = sshll.u32 [#allocation11], 4
      %s93 = int_to_ptr.vmem [resolvable:$true] %s92
      %98 = dma.hbm_to_vmem [thread:$0]  %s9, 256, %s93, [#allocation10], 64, 64, 4
    $region41: #{decoder_layer.1} parent=1 // pred_fallthru
      _
    // Predicated region
    $region42: #{decoder_layer.1} parent=1 // pred_check
      _
    $region43: #{decoder_layer.1} parent=1 // pred_check_branch
      %100 = sbr.rel (0) target = $region45
    $region44: #{decoder_layer.1} parent=1 // pred_region
      %s102 = ssub.s32 256, 256
      %103 = vsyncadd [#allocation13], %s102
      %s104 = sshll.u32 [#allocation12], 4
      %s105 = int_to_ptr.vmem [resolvable:$true] %s104
      %110 = dma.hbm_to_vmem [thread:$0]  %s10, 256, %s105, [#allocation13], 64, 64, 4
    $region45: #{decoder_layer.1} parent=1 // pred_fallthru
      _
    // Predicated region
    $region46: #{decoder_layer.1} parent=1 // pred_check
      _
    $region47: #{decoder_layer.1} parent=1 // pred_check_branch
      %112 = sbr.rel (0) target = $region49
    $region48: #{decoder_layer.1} parent=1 // pred_region
      %s114 = ssub.s32 256, 256
      %115 = vsyncadd [#allocation13], %s114
      %s116 = sshll.u32 [#allocation14], 4
      %s117 = int_to_ptr.vmem [resolvable:$true] %s116
      %122 = dma.hbm_to_vmem [thread:$0]  %s11, 256, %s117, [#allocation13], 64, 64, 4
    $region49: #{decoder_layer.1} parent=1 // pred_fallthru
      _
    // Predicated region
    $region50: #{decoder_layer.1} parent=1 // pred_check
      _
    $region51: #{decoder_layer.1} parent=1 // pred_check_branch
      %124 = sbr.rel (0) target = $region53
    $region52: #{decoder_layer.1} parent=1 // pred_region
      _
    $region53: #{decoder_layer.1} parent=1 // pred_fallthru
      _
    // Predicated region
    $region54: #{decoder_layer.1} parent=1 // pred_check
      _
    $region55: #{decoder_layer.1} parent=1 // pred_check_branch
      %126 = sbr.rel (0) target = $region57
    $region56: #{decoder_layer.1} parent=1 // pred_region
      %s128 = ssub.s32 16, 16
      %129 = vsyncadd [#allocation16], %s128
      %s131 = sshll.u32 [#allocation15], 4
      %s132 = int_to_ptr.vmem [resolvable:$true] %s131
      %134 = dma.hbm_to_vmem [thread:$0]  %s13, 16, %s132, [#allocation16]
    $region57: #{decoder_layer.1} parent=1 // pred_fallthru
      _
    // Predicated region
    $region58: #{decoder_layer.1} parent=1 // pred_check
      _
    $region59: #{decoder_layer.1} parent=1 // pred_check_branch
      %136 = sbr.rel (0) target = $region61
    $region60: #{decoder_layer.1} parent=1 // pred_region
      %s138 = ssub.s32 256, 256
      %139 = vsyncadd [#allocation16], %s138
      %s140 = sshll.u32 [#allocation17], 4
      %s141 = int_to_ptr.vmem [resolvable:$true] %s140
      %146 = dma.hbm_to_vmem [thread:$0]  %s14, 256, %s141, [#allocation16], 128, 128, 8
    $region61: #{decoder_layer.1} parent=1 // pred_fallthru
      _
    // Predicated region
    $region62: #{decoder_layer.1} parent=1 // pred_check
      _
    $region63: #{decoder_layer.1} parent=1 // pred_check_branch
      %148 = sbr.rel (0) target = $region65
    $region64: #{decoder_layer.1} parent=1 // pred_region
      %149 = dma.done [#allocation4], 256
    $region65: #{decoder_layer.1} parent=1 // pred_fallthru
      _
    // Predicated region
    $region66: #{decoder_layer.1} parent=1 // pred_check
      _
    $region67: #{decoder_layer.1} parent=1 // pred_check_branch
      %151 = sbr.rel (0) target = $region69
    $region68: #{decoder_layer.1} parent=1 // pred_region
      %152 = dma.done [#allocation7], 256
    $region69: #{decoder_layer.1} parent=1 // pred_fallthru
      _
    // Predicated region
    $region70: #{decoder_layer.1} parent=1 // pred_check
      _
    $region71: #{decoder_layer.1} parent=1 // pred_check_branch
      %154 = sbr.rel (0) target = $region73
    $region72: #{decoder_layer.1} parent=1 // pred_region
      %155 = dma.done [#allocation7], 256
    $region73: #{decoder_layer.1} parent=1 // pred_fallthru
      _
    // Predicated region
    $region74: #{decoder_layer.1} parent=1 // pred_check
      _
    $region75: #{decoder_layer.1} parent=1 // pred_check_branch
      %157 = sbr.rel (0) target = $region77
    $region76: #{decoder_layer.1} parent=1 // pred_region
      %158 = dma.done [#allocation10], 256
    $region77: #{decoder_layer.1} parent=1 // pred_fallthru
      _
    // Predicated region
    $region78: #{decoder_layer.1} parent=1 // pred_check
      _
    $region79: #{decoder_layer.1} parent=1 // pred_check_branch
      %160 = sbr.rel (0) target = $region81
    $region80: #{decoder_layer.1} parent=1 // pred_region
      %161 = dma.done [#allocation10], 256
    $region81: #{decoder_layer.1} parent=1 // pred_fallthru
      _
    // Predicated region
    $region82: #{decoder_layer.1} parent=1 // pred_check
      _
    $region83: #{decoder_layer.1} parent=1 // pred_check_branch
      %163 = sbr.rel (0) target = $region85
    $region84: #{decoder_layer.1} parent=1 // pred_region
      %164 = dma.done [#allocation13], 256
    $region85: #{decoder_layer.1} parent=1 // pred_fallthru
      _
    // Predicated region
    $region86: #{decoder_layer.1} parent=1 // pred_check
      _
    $region87: #{decoder_layer.1} parent=1 // pred_check_branch
      %166 = sbr.rel (0) target = $region89
    $region88: #{decoder_layer.1} parent=1 // pred_region
      %167 = dma.done [#allocation13], 256
    $region89: #{decoder_layer.1} parent=1 // pred_fallthru
      _
    // Predicated region
    $region90: #{decoder_layer.1} parent=1 // pred_check
      _
    $region91: #{decoder_layer.1} parent=1 // pred_check_branch
      %169 = sbr.rel (0) target = $region93
    $region92: #{decoder_layer.1} parent=1 // pred_region
      %170 = dma.done [#allocation16], 16
    $region93: #{decoder_layer.1} parent=1 // pred_fallthru
      _
    // Predicated region
    $region94: #{decoder_layer.1} parent=1 // pred_check
      _
    $region95: #{decoder_layer.1} parent=1 // pred_check_branch
      %172 = sbr.rel (0) target = $region97
    $region96: #{decoder_layer.1} parent=1 // pred_region
      %173 = dma.done [#allocation16], 256
    $region97: #{decoder_layer.1} parent=1 // pred_fallthru
      _
    %v175 = vld [vmem:[#allocation17] sm:$0xff]
    %v176 = vld [vmem:[#allocation17 + $0x8] sm:$0x7f]
    %v177 = vld [vmem:[%s0] sm:$0xff]
    %v178 = vld [vmem:[%s0 + $0x8] sm:$0xff]
    %v179 = vld [vmem:[%s1] sm:$0xff]
    %v180 = vld [vmem:[%s1 + $0x8] sm:$0xff]
    %v181 = vld [vmem:[%s2] sm:$0xff]
    %v182 = vld [vmem:[%s2 + $0x8] sm:$0xff]
    %v183 = vld [vmem:[%s3] sm:$0xff]
    %v184 = vld [vmem:[%s3 + $0x8] sm:$0xff]
    %v185 = vld [vmem:[%s4] sm:$0xff]
    %v186 = vld [vmem:[%s4 + $0x8] sm:$0xff]
    %v187 = vsub.f32 %v185, 1.0
    %v188 = vsub.f32 %v186, 1.0
    %v189 = vmul.f32 %v187, 1e+09
    %v190 = vmul.f32 %v188, 1e+09
    %v191 = vld [vmem:[#allocation3] sm:$0xff]
    %v192 = vld [vmem:[#allocation3 + $0x8] sm:$0xff]
    %v193 = vsub.f32 %v191, 1.0
    %v194 = vsub.f32 %v192, 1.0
    %v195 = vmul.f32 %v193, 1e+09
    %v196 = vmul.f32 %v194, 1e+09
    %v197 = vpack.c.bf16 %v178, %v177
    %v198 = vpack.c.bf16 %v180, %v179
    %v199 = vld [vmem:[#allocation6] sm:$0xf]
    %v200 = vld [vmem:[#allocation6 + $0x4] sm:$0xf]
    %v201 = vld [vmem:[#allocation6 + $0x8] sm:$0xf]
    %v202 = vld [vmem:[#allocation6 + $0xc] sm:$0xf]
    %v207 = vunpack.c.l.b16 %v199
    %v208 = vunpack.c.l.b16 %v200
    %v209 = vunpack.c.l.b16 %v201
    %v210 = vunpack.c.l.b16 %v202
    %v211 = vpack.c.b16 %v208, %v207
    %v212 = vpack.c.b16 %v210, %v209
    %vm215 = vcmask 261120
    %v217 = vsel %vm215, %v197, 0
    %v220 = vsel %vm215, %v198, 0
    %222 = vmatprep.subr.bf16.mxu0 0
    %223 = vmatpush1.bf16.msra.mxu0 %v211
    %224 = vmatprep.subr.bf16.mxu0 0
    %225 = vmatpush1.bf16.msra.mxu0 %v212
    %226 = vmatprep.subr.bf16.mxu0 0
    %227 = vmatpush1.bf16.msra.mxu0 0
    %228 = vmatprep.subr.bf16.mxu0 0
    %229 = vmatpush1.bf16.msra.mxu0 0
    %230 = vmatprep.subr.bf16.mxu0 0
    %231 = vmatpush1.bf16.msra.mxu0 0
    %232 = vmatprep.subr.bf16.mxu0 0
    %233 = vmatpush1.bf16.msra.mxu0 0
    %234 = vmatprep.subr.bf16.mxu0 0
    %235 = vmatpush1.bf16.msra.mxu0 0
    %236 = vmatprep.subr.bf16.mxu0 0
    %237 = vmatpush1.bf16.msra.mxu0 0
    %238 = vmatprep.subr.bf16.mxu0 0
    %239 = vmatpush1.bf16.msra.mxu0 0
    %240 = vmatprep.subr.bf16.mxu0 0
    %241 = vmatpush1.bf16.msra.mxu0 0
    %242 = vmatprep.subr.bf16.mxu0 0
    %243 = vmatpush1.bf16.msra.mxu0 0
    %244 = vmatprep.subr.bf16.mxu0 0
    %245 = vmatpush1.bf16.msra.mxu0 0
    %246 = vmatprep.subr.bf16.mxu0 0
    %247 = vmatpush1.bf16.msra.mxu0 0
    %248 = vmatprep.subr.bf16.mxu0 0
    %249 = vmatpush1.bf16.msra.mxu0 0
    %250 = vmatprep.subr.bf16.mxu0 0
    %251 = vmatpush1.bf16.msra.mxu0 0
    %252 = vmatprep.subr.bf16.mxu0 0
    %253 = vmatpush1.bf16.msra.mxu0 0
    %254 = vmatprep.mubr.bf16.mxu0 0
    %255 = vmatmul.mubr.bf16.gmra.mrb[0].mxu0 %v217
    %v256 = vpop.f32.mrb[0].mxu0
    %v257 = vadd.f32 0.0, %v256
    %v258 = vpop.f32.mrb[0].mxu0
    %v259 = vpop.f32.mrb[0].mxu0
    %v260 = vadd.f32 0.0, %v259
    %v261 = vpop.f32.mrb[0].mxu0
    %262 = vmatprep.mubr.bf16.mxu0 0
    %263 = vmatmul.mubr.bf16.gmra.mrb[0].mxu0 %v220
    %v264 = vpop.f32.mrb[0].mxu0
    %v265 = vadd.f32 0.0, %v264
    %v266 = vpop.f32.mrb[0].mxu0
    %v267 = vpop.f32.mrb[0].mxu0
    %v268 = vadd.f32 0.0, %v267
    %v269 = vpop.f32.mrb[0].mxu0
    %270 = vdwg.mxu0
    %v271 = vlaneseq
    %v272 = vshrl.u32 %v271, 7
    %v273 = vsub.s32 0, %v272
    %v274 = vrot.slane %v175, %v273
    %v275 = vadd.f32 %v257, %v274
    %v276 = vadd.f32 %v260, %v274
    %v277 = vadd.f32 %v265, %v274
    %v278 = vadd.f32 %v268, %v274
    %v279 = vlaneseq
    %v280 = vshrl.u32 %v279, 7
    %v281 = vsub.s32 1, %v280
    %v282 = vrot.slane %v175, %v281
    %284 = vrot.lane.b32.xlu0 %v282, 32
    %v285 = vpop.permute.xlu0 %284
    %v287 = vadd.f32 %v257, %v285
    %v288 = vadd.f32 %v260, %v285
    %v289 = vadd.f32 %v265, %v285
    %v290 = vadd.f32 %v268, %v285
    %v291 = vlaneseq
    %v292 = vshrl.u32 %v291, 7
    %v293 = vsub.s32 2, %v292
    %v294 = vrot.slane %v175, %v293
    %296 = vrot.lane.b32.xlu0 %v294, 64
    %v297 = vpop.permute.xlu0 %296
    %v299 = vadd.f32 %v257, %v297
    %v300 = vadd.f32 %v260, %v297
    %v301 = vadd.f32 %v265, %v297
    %v302 = vadd.f32 %v268, %v297
    %v303 = vpack.c.bf16 %v275, %v275
    %v304 = vpack.c.bf16 %v276, %v276
    %v305 = vpack.c.bf16 %v277, %v277
    %v306 = vpack.c.bf16 %v278, %v278
    %v307 = vpack.c.bf16 %v287, %v287
    %v308 = vpack.c.bf16 %v288, %v288
    %v309 = vpack.c.bf16 %v289, %v289
    %v310 = vpack.c.bf16 %v290, %v290
    %v311 = vpack.c.bf16 %v299, %v299
    %v312 = vpack.c.bf16 %v300, %v300
    %v313 = vpack.c.bf16 %v301, %v301
    %v314 = vpack.c.bf16 %v302, %v302
    %316 = vrot.lane.b32.xlu0 %v307, 96
    %v317 = vpop.permute.xlu0 %316
    %vm318 = vcmask 64512
    %v320 = vsel %vm318, %v303, 0
    %v323 = vsel %vm318, %v317, 0
    %325 = vmatprep.subr.bf16.mxu0 0
    %326 = vmatpush1.bf16.xpose.msra.mxu0 %v323
    %327 = vmatprep.subr.bf16.mxu0 0
    %328 = vmatpush1.bf16.xpose.msra.mxu0 0
    %329 = vmatprep.subr.bf16.mxu0 0
    %330 = vmatpush1.bf16.xpose.msra.mxu0 0
    %331 = vmatprep.subr.bf16.mxu0 0
    %332 = vmatpush1.bf16.xpose.msra.mxu0 0
    %333 = vmatprep.subr.bf16.mxu0 0
    %334 = vmatpush1.bf16.xpose.msra.mxu0 0
    %335 = vmatprep.subr.bf16.mxu0 0
    %336 = vmatpush1.bf16.xpose.msra.mxu0 0
    %337 = vmatprep.subr.bf16.mxu0 0
    %338 = vmatpush1.bf16.xpose.msra.mxu0 0
    %339 = vmatprep.subr.bf16.mxu0 0
    %340 = vmatpush1.bf16.xpose.msra.mxu0 0
    %341 = vmatprep.subr.bf16.mxu0 0
    %342 = vmatpush1.bf16.xpose.msra.mxu0 0
    %343 = vmatprep.subr.bf16.mxu0 0
    %344 = vmatpush1.bf16.xpose.msra.mxu0 0
    %345 = vmatprep.subr.bf16.mxu0 0
    %346 = vmatpush1.bf16.xpose.msra.mxu0 0
    %347 = vmatprep.subr.bf16.mxu0 0
    %348 = vmatpush1.bf16.xpose.msra.mxu0 0
    %349 = vmatprep.subr.bf16.mxu0 0
    %350 = vmatpush1.bf16.xpose.msra.mxu0 0
    %351 = vmatprep.subr.bf16.mxu0 0
    %352 = vmatpush1.bf16.xpose.msra.mxu0 0
    %353 = vmatprep.subr.bf16.mxu0 0
    %354 = vmatpush1.bf16.xpose.msra.mxu0 0
    %355 = vmatprep.subr.bf16.mxu0 0
    %356 = vmatpush1.bf16.xpose.msra.mxu0 0
    %357 = vmatprep.mubr.bf16.mxu0 0
    %358 = vmatmul.mubr.bf16.gmra.mrb[0].mxu0 %v320
    %v359 = vpop.f32.mrb[0].mxu0
    %v360 = vadd.f32 %v189, %v359
    %v361 = vpop.f32.mrb[0].mxu0
    %v362 = vpop.f32.mrb[0].mxu0
    %v363 = vpop.f32.mrb[0].mxu0
    %364 = vdwg.mxu0
    %366 = vrot.lane.b32.xlu0 %v308, 96
    %v367 = vpop.permute.xlu0 %366
    %v369 = vsel %vm318, %v304, 0
    %v372 = vsel %vm318, %v367, 0
    %374 = vmatprep.subr.bf16.mxu0 0
    %375 = vmatpush1.bf16.xpose.msra.mxu0 %v372
    %376 = vmatprep.subr.bf16.mxu0 0
    %377 = vmatpush1.bf16.xpose.msra.mxu0 0
    %378 = vmatprep.subr.bf16.mxu0 0
    %379 = vmatpush1.bf16.xpose.msra.mxu0 0
    %380 = vmatprep.subr.bf16.mxu0 0
    %381 = vmatpush1.bf16.xpose.msra.mxu0 0
    %382 = vmatprep.subr.bf16.mxu0 0
    %383 = vmatpush1.bf16.xpose.msra.mxu0 0
    %384 = vmatprep.subr.bf16.mxu0 0
    %385 = vmatpush1.bf16.xpose.msra.mxu0 0
    %386 = vmatprep.subr.bf16.mxu0 0
    %387 = vmatpush1.bf16.xpose.msra.mxu0 0
    %388 = vmatprep.subr.bf16.mxu0 0
    %389 = vmatpush1.bf16.xpose.msra.mxu0 0
    %390 = vmatprep.subr.bf16.mxu0 0
    %391 = vmatpush1.bf16.xpose.msra.mxu0 0
    %392 = vmatprep.subr.bf16.mxu0 0
    %393 = vmatpush1.bf16.xpose.msra.mxu0 0
    %394 = vmatprep.subr.bf16.mxu0 0
    %395 = vmatpush1.bf16.xpose.msra.mxu0 0
    %396 = vmatprep.subr.bf16.mxu0 0
    %397 = vmatpush1.bf16.xpose.msra.mxu0 0
    %398 = vmatprep.subr.bf16.mxu0 0
    %399 = vmatpush1.bf16.xpose.msra.mxu0 0
    %400 = vmatprep.subr.bf16.mxu0 0
    %401 = vmatpush1.bf16.xpose.msra.mxu0 0
    %402 = vmatprep.subr.bf16.mxu0 0
    %403 = vmatpush1.bf16.xpose.msra.mxu0 0
    %404 = vmatprep.subr.bf16.mxu0 0
    %405 = vmatpush1.bf16.xpose.msra.mxu0 0
    %406 = vmatprep.mubr.bf16.mxu0 0
    %407 = vmatmul.mubr.bf16.gmra.mrb[0].mxu0 %v369
    %v408 = vpop.f32.mrb[0].mxu0
    %v409 = vadd.f32 %v190, %v408
    %v410 = vpop.f32.mrb[0].mxu0
    %v411 = vpop.f32.mrb[0].mxu0
    %v412 = vpop.f32.mrb[0].mxu0
    %413 = vdwg.mxu0
    %415 = vrot.lane.b32.xlu0 %v309, 96
    %v416 = vpop.permute.xlu0 %415
    %v418 = vsel %vm318, %v305, 0
    %v421 = vsel %vm318, %v416, 0
    %423 = vmatprep.subr.bf16.mxu0 0
    %424 = vmatpush1.bf16.xpose.msra.mxu0 %v421
    %425 = vmatprep.subr.bf16.mxu0 0
    %426 = vmatpush1.bf16.xpose.msra.mxu0 0
    %427 = vmatprep.subr.bf16.mxu0 0
    %428 = vmatpush1.bf16.xpose.msra.mxu0 0
    %429 = vmatprep.subr.bf16.mxu0 0
    %430 = vmatpush1.bf16.xpose.msra.mxu0 0
    %431 = vmatprep.subr.bf16.mxu0 0
    %432 = vmatpush1.bf16.xpose.msra.mxu0 0
    %433 = vmatprep.subr.bf16.mxu0 0
    %434 = vmatpush1.bf16.xpose.msra.mxu0 0
    %435 = vmatprep.subr.bf16.mxu0 0
    %436 = vmatpush1.bf16.xpose.msra.mxu0 0
    %437 = vmatprep.subr.bf16.mxu0 0
    %438 = vmatpush1.bf16.xpose.msra.mxu0 0
    %439 = vmatprep.subr.bf16.mxu0 0
    %440 = vmatpush1.bf16.xpose.msra.mxu0 0
    %441 = vmatprep.subr.bf16.mxu0 0
    %442 = vmatpush1.bf16.xpose.msra.mxu0 0
    %443 = vmatprep.subr.bf16.mxu0 0
    %444 = vmatpush1.bf16.xpose.msra.mxu0 0
    %445 = vmatprep.subr.bf16.mxu0 0
    %446 = vmatpush1.bf16.xpose.msra.mxu0 0
    %447 = vmatprep.subr.bf16.mxu0 0
    %448 = vmatpush1.bf16.xpose.msra.mxu0 0
    %449 = vmatprep.subr.bf16.mxu0 0
    %450 = vmatpush1.bf16.xpose.msra.mxu0 0
    %451 = vmatprep.subr.bf16.mxu0 0
    %452 = vmatpush1.bf16.xpose.msra.mxu0 0
    %453 = vmatprep.subr.bf16.mxu0 0
    %454 = vmatpush1.bf16.xpose.msra.mxu0 0
    %455 = vmatprep.mubr.bf16.mxu0 0
    %456 = vmatmul.mubr.bf16.gmra.mrb[0].mxu0 %v418
    %v457 = vpop.f32.mrb[0].mxu0
    %v458 = vadd.f32 %v189, %v457
    %v459 = vpop.f32.mrb[0].mxu0
    %v460 = vpop.f32.mrb[0].mxu0
    %v461 = vpop.f32.mrb[0].mxu0
    %462 = vdwg.mxu0
    %464 = vrot.lane.b32.xlu0 %v310, 96
    %v465 = vpop.permute.xlu0 %464
    %v467 = vsel %vm318, %v306, 0
    %v470 = vsel %vm318, %v465, 0
    %472 = vmatprep.subr.bf16.mxu0 0
    %473 = vmatpush1.bf16.xpose.msra.mxu0 %v470
    %474 = vmatprep.subr.bf16.mxu0 0
    %475 = vmatpush1.bf16.xpose.msra.mxu0 0
    %476 = vmatprep.subr.bf16.mxu0 0
    %477 = vmatpush1.bf16.xpose.msra.mxu0 0
    %478 = vmatprep.subr.bf16.mxu0 0
    %479 = vmatpush1.bf16.xpose.msra.mxu0 0
    %480 = vmatprep.subr.bf16.mxu0 0
    %481 = vmatpush1.bf16.xpose.msra.mxu0 0
    %482 = vmatprep.subr.bf16.mxu0 0
    %483 = vmatpush1.bf16.xpose.msra.mxu0 0
    %484 = vmatprep.subr.bf16.mxu0 0
    %485 = vmatpush1.bf16.xpose.msra.mxu0 0
    %486 = vmatprep.subr.bf16.mxu0 0
    %487 = vmatpush1.bf16.xpose.msra.mxu0 0
    %488 = vmatprep.subr.bf16.mxu0 0
    %489 = vmatpush1.bf16.xpose.msra.mxu0 0
    %490 = vmatprep.subr.bf16.mxu0 0
    %491 = vmatpush1.bf16.xpose.msra.mxu0 0
    %492 = vmatprep.subr.bf16.mxu0 0
    %493 = vmatpush1.bf16.xpose.msra.mxu0 0
    %494 = vmatprep.subr.bf16.mxu0 0
    %495 = vmatpush1.bf16.xpose.msra.mxu0 0
    %496 = vmatprep.subr.bf16.mxu0 0
    %497 = vmatpush1.bf16.xpose.msra.mxu0 0
    %498 = vmatprep.subr.bf16.mxu0 0
    %499 = vmatpush1.bf16.xpose.msra.mxu0 0
    %500 = vmatprep.subr.bf16.mxu0 0
    %501 = vmatpush1.bf16.xpose.msra.mxu0 0
    %502 = vmatprep.subr.bf16.mxu0 0
    %503 = vmatpush1.bf16.xpose.msra.mxu0 0
    %504 = vmatprep.mubr.bf16.mxu0 0
    %505 = vmatmul.mubr.bf16.gmra.mrb[0].mxu0 %v467
    %v506 = vpop.f32.mrb[0].mxu0
    %v507 = vadd.f32 %v190, %v506
    %v508 = vpop.f32.mrb[0].mxu0
    %v509 = vpop.f32.mrb[0].mxu0
    %v510 = vpop.f32.mrb[0].mxu0
    %511 = vdwg.mxu0
    %v512 = vsel %vm318, %v360, -inf
    %513 = vmax.xlane.f32.xlu0 %v512
    %v514 = vpop.xlane.xlu0 %513
    %v515 = vsel %vm318, %v409, -inf
    %516 = vmax.xlane.f32.xlu0 %v515
    %v517 = vpop.xlane.xlu0 %516
    %v518 = vsel %vm318, %v458, -inf
    %519 = vmax.xlane.f32.xlu0 %v518
    %v520 = vpop.xlane.xlu0 %519
    %v521 = vsel %vm318, %v507, -inf
    %522 = vmax.xlane.f32.xlu0 %v521
    %v523 = vpop.xlane.xlu0 %522
    %v524 = vsub.f32 %v360, %v514
    %v525 = vsub.f32 %v409, %v517
    %v526 = vsub.f32 %v458, %v520
    %v527 = vsub.f32 %v507, %v523
    %v528 = vmul.f32 %v524, 1.442695
    %v529 = vpow.pop %v528
    %v530 = vmul.f32 %v525, 1.442695
    %v531 = vpow.pop %v530
    %v532 = vmul.f32 %v526, 1.442695
    %v533 = vpow.pop %v532
    %v534 = vmul.f32 %v527, 1.442695
    %v535 = vpow.pop %v534
    %v536 = vsel %vm318, %v529, 0.0
    %537 = vadd.xlane.f32.xlu0 %v536
    %v538 = vpop.xlane.xlu0 %537
    %v539 = vsel %vm318, %v531, 0.0
    %540 = vadd.xlane.f32.xlu0 %v539
    %v541 = vpop.xlane.xlu0 %540
    %v542 = vsel %vm318, %v533, 0.0
    %543 = vadd.xlane.f32.xlu0 %v542
    %v544 = vpop.xlane.xlu0 %543
    %v545 = vsel %vm318, %v535, 0.0
    %546 = vadd.xlane.f32.xlu0 %v545
    %v547 = vpop.xlane.xlu0 %546
    %v548 = vrcp.pop %v538
    %v549 = vmul.f32 %v529, %v548
    %v550 = vrcp.pop %v541
    %v551 = vmul.f32 %v531, %v550
    %v552 = vrcp.pop %v544
    %v553 = vmul.f32 %v533, %v552
    %v554 = vrcp.pop %v547
    %v555 = vmul.f32 %v535, %v554
    %v556 = vpack.c.bf16 %v549, %v549
    %v557 = vpack.c.bf16 %v551, %v551
    %v558 = vpack.c.bf16 %v553, %v553
    %v559 = vpack.c.bf16 %v555, %v555
    %561 = vrot.lane.b32.xlu0 %v311, 64
    %v562 = vpop.permute.xlu0 %561
    %v564 = vsel %vm318, %v556, 0
    %vm566 = vcmask 1043456
    %v568 = vsel %vm566, %v562, 0
    %570 = vmatprep.subr.bf16.mxu0 0
    %571 = vmatpush1.bf16.msra.mxu0 %v568
    %572 = vmatprep.subr.bf16.mxu0 0
    %573 = vmatpush1.bf16.msra.mxu0 0
    %574 = vmatprep.subr.bf16.mxu0 0
    %575 = vmatpush1.bf16.msra.mxu0 0
    %576 = vmatprep.subr.bf16.mxu0 0
    %577 = vmatpush1.bf16.msra.mxu0 0
    %578 = vmatprep.subr.bf16.mxu0 0
    %579 = vmatpush1.bf16.msra.mxu0 0
    %580 = vmatprep.subr.bf16.mxu0 0
    %581 = vmatpush1.bf16.msra.mxu0 0
    %582 = vmatprep.subr.bf16.mxu0 0
    %583 = vmatpush1.bf16.msra.mxu0 0
    %584 = vmatprep.subr.bf16.mxu0 0
    %585 = vmatpush1.bf16.msra.mxu0 0
    %586 = vmatprep.subr.bf16.mxu0 0
    %587 = vmatpush1.bf16.msra.mxu0 0
    %588 = vmatprep.subr.bf16.mxu0 0
    %589 = vmatpush1.bf16.msra.mxu0 0
    %590 = vmatprep.subr.bf16.mxu0 0
    %591 = vmatpush1.bf16.msra.mxu0 0
    %592 = vmatprep.subr.bf16.mxu0 0
    %593 = vmatpush1.bf16.msra.mxu0 0
    %594 = vmatprep.subr.bf16.mxu0 0
    %595 = vmatpush1.bf16.msra.mxu0 0
    %596 = vmatprep.subr.bf16.mxu0 0
    %597 = vmatpush1.bf16.msra.mxu0 0
    %598 = vmatprep.subr.bf16.mxu0 0
    %599 = vmatpush1.bf16.msra.mxu0 0
    %600 = vmatprep.subr.bf16.mxu0 0
    %601 = vmatpush1.bf16.msra.mxu0 0
    %602 = vmatprep.mubr.bf16.mxu0 0
    %603 = vmatmul.mubr.bf16.gmra.mrb[0].mxu0 %v564
    %v604 = vpop.f32.mrb[0].mxu0
    %v605 = vadd.f32 0.0, %v604
    %v606 = vpop.f32.mrb[0].mxu0
    %v607 = vpop.f32.mrb[0].mxu0
    %v608 = vpop.f32.mrb[0].mxu0
    %609 = vdwg.mxu0
    %611 = vrot.lane.b32.xlu0 %v312, 64
    %v612 = vpop.permute.xlu0 %611
    %v614 = vsel %vm318, %v557, 0
    %v617 = vsel %vm566, %v612, 0
    %619 = vmatprep.subr.bf16.mxu0 0
    %620 = vmatpush1.bf16.msra.mxu0 %v617
    %621 = vmatprep.subr.bf16.mxu0 0
    %622 = vmatpush1.bf16.msra.mxu0 0
    %623 = vmatprep.subr.bf16.mxu0 0
    %624 = vmatpush1.bf16.msra.mxu0 0
    %625 = vmatprep.subr.bf16.mxu0 0
    %626 = vmatpush1.bf16.msra.mxu0 0
    %627 = vmatprep.subr.bf16.mxu0 0
    %628 = vmatpush1.bf16.msra.mxu0 0
    %629 = vmatprep.subr.bf16.mxu0 0
    %630 = vmatpush1.bf16.msra.mxu0 0
    %631 = vmatprep.subr.bf16.mxu0 0
    %632 = vmatpush1.bf16.msra.mxu0 0
    %633 = vmatprep.subr.bf16.mxu0 0
    %634 = vmatpush1.bf16.msra.mxu0 0
    %635 = vmatprep.subr.bf16.mxu0 0
    %636 = vmatpush1.bf16.msra.mxu0 0
    %637 = vmatprep.subr.bf16.mxu0 0
    %638 = vmatpush1.bf16.msra.mxu0 0
    %639 = vmatprep.subr.bf16.mxu0 0
    %640 = vmatpush1.bf16.msra.mxu0 0
    %641 = vmatprep.subr.bf16.mxu0 0
    %642 = vmatpush1.bf16.msra.mxu0 0
    %643 = vmatprep.subr.bf16.mxu0 0
    %644 = vmatpush1.bf16.msra.mxu0 0
    %645 = vmatprep.subr.bf16.mxu0 0
    %646 = vmatpush1.bf16.msra.mxu0 0
    %647 = vmatprep.subr.bf16.mxu0 0
    %648 = vmatpush1.bf16.msra.mxu0 0
    %649 = vmatprep.subr.bf16.mxu0 0
    %650 = vmatpush1.bf16.msra.mxu0 0
    %651 = vmatprep.mubr.bf16.mxu0 0
    %652 = vmatmul.mubr.bf16.gmra.mrb[0].mxu0 %v614
    %v653 = vpop.f32.mrb[0].mxu0
    %v654 = vadd.f32 0.0, %v653
    %v655 = vpop.f32.mrb[0].mxu0
    %v656 = vpop.f32.mrb[0].mxu0
    %v657 = vpop.f32.mrb[0].mxu0
    %658 = vdwg.mxu0
    %660 = vrot.lane.b32.xlu0 %v313, 64
    %v661 = vpop.permute.xlu0 %660
    %v663 = vsel %vm318, %v558, 0
    %v666 = vsel %vm566, %v661, 0
    %668 = vmatprep.subr.bf16.mxu0 0
    %669 = vmatpush1.bf16.msra.mxu0 %v666
    %670 = vmatprep.subr.bf16.mxu0 0
    %671 = vmatpush1.bf16.msra.mxu0 0
    %672 = vmatprep.subr.bf16.mxu0 0
    %673 = vmatpush1.bf16.msra.mxu0 0
    %674 = vmatprep.subr.bf16.mxu0 0
    %675 = vmatpush1.bf16.msra.mxu0 0
    %676 = vmatprep.subr.bf16.mxu0 0
    %677 = vmatpush1.bf16.msra.mxu0 0
    %678 = vmatprep.subr.bf16.mxu0 0
    %679 = vmatpush1.bf16.msra.mxu0 0
    %680 = vmatprep.subr.bf16.mxu0 0
    %681 = vmatpush1.bf16.msra.mxu0 0
    %682 = vmatprep.subr.bf16.mxu0 0
    %683 = vmatpush1.bf16.msra.mxu0 0
    %684 = vmatprep.subr.bf16.mxu0 0
    %685 = vmatpush1.bf16.msra.mxu0 0
    %686 = vmatprep.subr.bf16.mxu0 0
    %687 = vmatpush1.bf16.msra.mxu0 0
    %688 = vmatprep.subr.bf16.mxu0 0
    %689 = vmatpush1.bf16.msra.mxu0 0
    %690 = vmatprep.subr.bf16.mxu0 0
    %691 = vmatpush1.bf16.msra.mxu0 0
    %692 = vmatprep.subr.bf16.mxu0 0
    %693 = vmatpush1.bf16.msra.mxu0 0
    %694 = vmatprep.subr.bf16.mxu0 0
    %695 = vmatpush1.bf16.msra.mxu0 0
    %696 = vmatprep.subr.bf16.mxu0 0
    %697 = vmatpush1.bf16.msra.mxu0 0
    %698 = vmatprep.subr.bf16.mxu0 0
    %699 = vmatpush1.bf16.msra.mxu0 0
    %700 = vmatprep.mubr.bf16.mxu0 0
    %701 = vmatmul.mubr.bf16.gmra.mrb[0].mxu0 %v663
    %v702 = vpop.f32.mrb[0].mxu0
    %v703 = vadd.f32 0.0, %v702
    %v704 = vpop.f32.mrb[0].mxu0
    %v705 = vpop.f32.mrb[0].mxu0
    %v706 = vpop.f32.mrb[0].mxu0
    %707 = vdwg.mxu0
    %709 = vrot.lane.b32.xlu0 %v314, 64
    %v710 = vpop.permute.xlu0 %709
    %v712 = vsel %vm318, %v559, 0
    %v715 = vsel %vm566, %v710, 0
    %717 = vmatprep.subr.bf16.mxu0 0
    %718 = vmatpush1.bf16.msra.mxu0 %v715
    %719 = vmatprep.subr.bf16.mxu0 0
    %720 = vmatpush1.bf16.msra.mxu0 0
    %721 = vmatprep.subr.bf16.mxu0 0
    %722 = vmatpush1.bf16.msra.mxu0 0
    %723 = vmatprep.subr.bf16.mxu0 0
    %724 = vmatpush1.bf16.msra.mxu0 0
    %725 = vmatprep.subr.bf16.mxu0 0
    %726 = vmatpush1.bf16.msra.mxu0 0
    %727 = vmatprep.subr.bf16.mxu0 0
    %728 = vmatpush1.bf16.msra.mxu0 0
    %729 = vmatprep.subr.bf16.mxu0 0
    %730 = vmatpush1.bf16.msra.mxu0 0
    %731 = vmatprep.subr.bf16.mxu0 0
    %732 = vmatpush1.bf16.msra.mxu0 0
    %733 = vmatprep.subr.bf16.mxu0 0
    %734 = vmatpush1.bf16.msra.mxu0 0
    %735 = vmatprep.subr.bf16.mxu0 0
    %736 = vmatpush1.bf16.msra.mxu0 0
    %737 = vmatprep.subr.bf16.mxu0 0
    %738 = vmatpush1.bf16.msra.mxu0 0
    %739 = vmatprep.subr.bf16.mxu0 0
    %740 = vmatpush1.bf16.msra.mxu0 0
    %741 = vmatprep.subr.bf16.mxu0 0
    %742 = vmatpush1.bf16.msra.mxu0 0
    %743 = vmatprep.subr.bf16.mxu0 0
    %744 = vmatpush1.bf16.msra.mxu0 0
    %745 = vmatprep.subr.bf16.mxu0 0
    %746 = vmatpush1.bf16.msra.mxu0 0
    %747 = vmatprep.subr.bf16.mxu0 0
    %748 = vmatpush1.bf16.msra.mxu0 0
    %749 = vmatprep.mubr.bf16.mxu0 0
    %750 = vmatmul.mubr.bf16.gmra.mrb[0].mxu0 %v712
    %v751 = vpop.f32.mrb[0].mxu0
    %v752 = vadd.f32 0.0, %v751
    %v753 = vpop.f32.mrb[0].mxu0
    %v754 = vpop.f32.mrb[0].mxu0
    %v755 = vpop.f32.mrb[0].mxu0
    %756 = vdwg.mxu0
    %757 = vst.msk [vmem:[#allocation2] sm:$0xff] %vm318, %v605
    %758 = vst.msk [vmem:[#allocation2 + $0x8] sm:$0xff] %vm318, %v654
    %759 = vst.msk [vmem:[#allocation2 + $0x10] sm:$0xff] %vm318, %v703
    %760 = vst.msk [vmem:[#allocation2 + $0x18] sm:$0xff] %vm318, %v752
    %762 = vrot.lane.b32.xlu0 %v303, 120
    %v763 = vpop.permute.xlu0 %762
    %764 = vrot.lane.b32.xlu0 %v307, 88
    %v765 = vpop.permute.xlu0 %764
    %v767 = vsel %vm318, %v763, 0
    %v770 = vsel %vm318, %v765, 0
    %772 = vmatprep.subr.bf16.mxu0 0
    %773 = vmatpush1.bf16.xpose.msra.mxu0 %v770
    %774 = vmatprep.subr.bf16.mxu0 0
    %775 = vmatpush1.bf16.xpose.msra.mxu0 0
    %776 = vmatprep.subr.bf16.mxu0 0
    %777 = vmatpush1.bf16.xpose.msra.mxu0 0
    %778 = vmatprep.subr.bf16.mxu0 0
    %779 = vmatpush1.bf16.xpose.msra.mxu0 0
    %780 = vmatprep.subr.bf16.mxu0 0
    %781 = vmatpush1.bf16.xpose.msra.mxu0 0
    %782 = vmatprep.subr.bf16.mxu0 0
    %783 = vmatpush1.bf16.xpose.msra.mxu0 0
    %784 = vmatprep.subr.bf16.mxu0 0
    %785 = vmatpush1.bf16.xpose.msra.mxu0 0
    %786 = vmatprep.subr.bf16.mxu0 0
    %787 = vmatpush1.bf16.xpose.msra.mxu0 0
    %788 = vmatprep.subr.bf16.mxu0 0
    %789 = vmatpush1.bf16.xpose.msra.mxu0 0
    %790 = vmatprep.subr.bf16.mxu0 0
    %791 = vmatpush1.bf16.xpose.msra.mxu0 0
    %792 = vmatprep.subr.bf16.mxu0 0
    %793 = vmatpush1.bf16.xpose.msra.mxu0 0
    %794 = vmatprep.subr.bf16.mxu0 0
    %795 = vmatpush1.bf16.xpose.msra.mxu0 0
    %796 = vmatprep.subr.bf16.mxu0 0
    %797 = vmatpush1.bf16.xpose.msra.mxu0 0
    %798 = vmatprep.subr.bf16.mxu0 0
    %799 = vmatpush1.bf16.xpose.msra.mxu0 0
    %800 = vmatprep.subr.bf16.mxu0 0
    %801 = vmatpush1.bf16.xpose.msra.mxu0 0
    %802 = vmatprep.subr.bf16.mxu0 0
    %803 = vmatpush1.bf16.xpose.msra.mxu0 0
    %804 = vmatprep.mubr.bf16.mxu0 0
    %805 = vmatmul.mubr.bf16.gmra.mrb[0].mxu0 %v767
    %v806 = vpop.f32.mrb[0].mxu0
    %v807 = vadd.f32 %v189, %v806
    %v808 = vpop.f32.mrb[0].mxu0
    %v809 = vpop.f32.mrb[0].mxu0
    %v810 = vpop.f32.mrb[0].mxu0
    %811 = vdwg.mxu0
    %813 = vrot.lane.b32.xlu0 %v304, 120
    %v814 = vpop.permute.xlu0 %813
    %815 = vrot.lane.b32.xlu0 %v308, 88
    %v816 = vpop.permute.xlu0 %815
    %v818 = vsel %vm318, %v814, 0
    %v821 = vsel %vm318, %v816, 0
    %823 = vmatprep.subr.bf16.mxu0 0
    %824 = vmatpush1.bf16.xpose.msra.mxu0 %v821
    %825 = vmatprep.subr.bf16.mxu0 0
    %826 = vmatpush1.bf16.xpose.msra.mxu0 0
    %827 = vmatprep.subr.bf16.mxu0 0
    %828 = vmatpush1.bf16.xpose.msra.mxu0 0
    %829 = vmatprep.subr.bf16.mxu0 0
    %830 = vmatpush1.bf16.xpose.msra.mxu0 0
    %831 = vmatprep.subr.bf16.mxu0 0
    %832 = vmatpush1.bf16.xpose.msra.mxu0 0
    %833 = vmatprep.subr.bf16.mxu0 0
    %834 = vmatpush1.bf16.xpose.msra.mxu0 0
    %835 = vmatprep.subr.bf16.mxu0 0
    %836 = vmatpush1.bf16.xpose.msra.mxu0 0
    %837 = vmatprep.subr.bf16.mxu0 0
    %838 = vmatpush1.bf16.xpose.msra.mxu0 0
    %839 = vmatprep.subr.bf16.mxu0 0
    %840 = vmatpush1.bf16.xpose.msra.mxu0 0
    %841 = vmatprep.subr.bf16.mxu0 0
    %842 = vmatpush1.bf16.xpose.msra.mxu0 0
    %843 = vmatprep.subr.bf16.mxu0 0
    %844 = vmatpush1.bf16.xpose.msra.mxu0 0
    %845 = vmatprep.subr.bf16.mxu0 0
    %846 = vmatpush1.bf16.xpose.msra.mxu0 0
    %847 = vmatprep.subr.bf16.mxu0 0
    %848 = vmatpush1.bf16.xpose.msra.mxu0 0
    %849 = vmatprep.subr.bf16.mxu0 0
    %850 = vmatpush1.bf16.xpose.msra.mxu0 0
    %851 = vmatprep.subr.bf16.mxu0 0
    %852 = vmatpush1.bf16.xpose.msra.mxu0 0
    %853 = vmatprep.subr.bf16.mxu0 0
    %854 = vmatpush1.bf16.xpose.msra.mxu0 0
    %855 = vmatprep.mubr.bf16.mxu0 0
    %856 = vmatmul.mubr.bf16.gmra.mrb[0].mxu0 %v818
    %v857 = vpop.f32.mrb[0].mxu0
    %v858 = vadd.f32 %v190, %v857
    %v859 = vpop.f32.mrb[0].mxu0
    %v860 = vpop.f32.mrb[0].mxu0
    %v861 = vpop.f32.mrb[0].mxu0
    %862 = vdwg.mxu0
    %864 = vrot.lane.b32.xlu0 %v305, 120
    %v865 = vpop.permute.xlu0 %864
    %866 = vrot.lane.b32.xlu0 %v309, 88
    %v867 = vpop.permute.xlu0 %866
    %v869 = vsel %vm318, %v865, 0
    %v872 = vsel %vm318, %v867, 0
    %874 = vmatprep.subr.bf16.mxu0 0
    %875 = vmatpush1.bf16.xpose.msra.mxu0 %v872
    %876 = vmatprep.subr.bf16.mxu0 0
    %877 = vmatpush1.bf16.xpose.msra.mxu0 0
    %878 = vmatprep.subr.bf16.mxu0 0
    %879 = vmatpush1.bf16.xpose.msra.mxu0 0
    %880 = vmatprep.subr.bf16.mxu0 0
    %881 = vmatpush1.bf16.xpose.msra.mxu0 0
    %882 = vmatprep.subr.bf16.mxu0 0
    %883 = vmatpush1.bf16.xpose.msra.mxu0 0
    %884 = vmatprep.subr.bf16.mxu0 0
    %885 = vmatpush1.bf16.xpose.msra.mxu0 0
    %886 = vmatprep.subr.bf16.mxu0 0
    %887 = vmatpush1.bf16.xpose.msra.mxu0 0
    %888 = vmatprep.subr.bf16.mxu0 0
    %889 = vmatpush1.bf16.xpose.msra.mxu0 0
    %890 = vmatprep.subr.bf16.mxu0 0
    %891 = vmatpush1.bf16.xpose.msra.mxu0 0
    %892 = vmatprep.subr.bf16.mxu0 0
    %893 = vmatpush1.bf16.xpose.msra.mxu0 0
    %894 = vmatprep.subr.bf16.mxu0 0
    %895 = vmatpush1.bf16.xpose.msra.mxu0 0
    %896 = vmatprep.subr.bf16.mxu0 0
    %897 = vmatpush1.bf16.xpose.msra.mxu0 0
    %898 = vmatprep.subr.bf16.mxu0 0
    %899 = vmatpush1.bf16.xpose.msra.mxu0 0
    %900 = vmatprep.subr.bf16.mxu0 0
    %901 = vmatpush1.bf16.xpose.msra.mxu0 0
    %902 = vmatprep.subr.bf16.mxu0 0
    %903 = vmatpush1.bf16.xpose.msra.mxu0 0
    %904 = vmatprep.subr.bf16.mxu0 0
    %905 = vmatpush1.bf16.xpose.msra.mxu0 0
    %906 = vmatprep.mubr.bf16.mxu0 0
    %907 = vmatmul.mubr.bf16.gmra.mrb[0].mxu0 %v869
    %v908 = vpop.f32.mrb[0].mxu0
    %v909 = vadd.f32 %v189, %v908
    %v910 = vpop.f32.mrb[0].mxu0
    %v911 = vpop.f32.mrb[0].mxu0
    %v912 = vpop.f32.mrb[0].mxu0
    %913 = vdwg.mxu0
    %915 = vrot.lane.b32.xlu0 %v306, 120
    %v916 = vpop.permute.xlu0 %915
    %917 = vrot.lane.b32.xlu0 %v310, 88
    %v918 = vpop.permute.xlu0 %917
    %v920 = vsel %vm318, %v916, 0
    %v923 = vsel %vm318, %v918, 0
    %925 = vmatprep.subr.bf16.mxu0 0
    %926 = vmatpush1.bf16.xpose.msra.mxu0 %v923
    %927 = vmatprep.subr.bf16.mxu0 0
    %928 = vmatpush1.bf16.xpose.msra.mxu0 0
    %929 = vmatprep.subr.bf16.mxu0 0
    %930 = vmatpush1.bf16.xpose.msra.mxu0 0
    %931 = vmatprep.subr.bf16.mxu0 0
    %932 = vmatpush1.bf16.xpose.msra.mxu0 0
    %933 = vmatprep.subr.bf16.mxu0 0
    %934 = vmatpush1.bf16.xpose.msra.mxu0 0
    %935 = vmatprep.subr.bf16.mxu0 0
    %936 = vmatpush1.bf16.xpose.msra.mxu0 0
    %937 = vmatprep.subr.bf16.mxu0 0
    %938 = vmatpush1.bf16.xpose.msra.mxu0 0
    %939 = vmatprep.subr.bf16.mxu0 0
    %940 = vmatpush1.bf16.xpose.msra.mxu0 0
    %941 = vmatprep.subr.bf16.mxu0 0
    %942 = vmatpush1.bf16.xpose.msra.mxu0 0
    %943 = vmatprep.subr.bf16.mxu0 0
    %944 = vmatpush1.bf16.xpose.msra.mxu0 0
    %945 = vmatprep.subr.bf16.mxu0 0
    %946 = vmatpush1.bf16.xpose.msra.mxu0 0
    %947 = vmatprep.subr.bf16.mxu0 0
    %948 = vmatpush1.bf16.xpose.msra.mxu0 0
    %949 = vmatprep.subr.bf16.mxu0 0
    %950 = vmatpush1.bf16.xpose.msra.mxu0 0
    %951 = vmatprep.subr.bf16.mxu0 0
    %952 = vmatpush1.bf16.xpose.msra.mxu0 0
    %953 = vmatprep.subr.bf16.mxu0 0
    %954 = vmatpush1.bf16.xpose.msra.mxu0 0
    %955 = vmatprep.subr.bf16.mxu0 0
    %956 = vmatpush1.bf16.xpose.msra.mxu0 0
    %957 = vmatprep.mubr.bf16.mxu0 0
    %958 = vmatmul.mubr.bf16.gmra.mrb[0].mxu0 %v920
    %v959 = vpop.f32.mrb[0].mxu0
    %v960 = vadd.f32 %v190, %v959
    %v961 = vpop.f32.mrb[0].mxu0
    %v962 = vpop.f32.mrb[0].mxu0
    %v963 = vpop.f32.mrb[0].mxu0
    %964 = vdwg.mxu0
    %v965 = vsel %vm318, %v807, -inf
    %966 = vmax.xlane.f32.xlu0 %v965
    %v967 = vpop.xlane.xlu0 %966
    %v968 = vsel %vm318, %v858, -inf
    %969 = vmax.xlane.f32.xlu0 %v968
    %v970 = vpop.xlane.xlu0 %969
    %v971 = vsel %vm318, %v909, -inf
    %972 = vmax.xlane.f32.xlu0 %v971
    %v973 = vpop.xlane.xlu0 %972
    %v974 = vsel %vm318, %v960, -inf
    %975 = vmax.xlane.f32.xlu0 %v974
    %v976 = vpop.xlane.xlu0 %975
    %v977 = vsub.f32 %v807, %v967
    %v978 = vsub.f32 %v858, %v970
    %v979 = vsub.f32 %v909, %v973
    %v980 = vsub.f32 %v960, %v976
    %v981 = vmul.f32 %v977, 1.442695
    %v982 = vpow.pop %v981
    %v983 = vmul.f32 %v978, 1.442695
    %v984 = vpow.pop %v983
    %v985 = vmul.f32 %v979, 1.442695
    %v986 = vpow.pop %v985
    %v987 = vmul.f32 %v980, 1.442695
    %v988 = vpow.pop %v987
    %v989 = vsel %vm318, %v982, 0.0
    %990 = vadd.xlane.f32.xlu0 %v989
    %v991 = vpop.xlane.xlu0 %990
    %v992 = vsel %vm318, %v984, 0.0
    %993 = vadd.xlane.f32.xlu0 %v992
    %v994 = vpop.xlane.xlu0 %993
    %v995 = vsel %vm318, %v986, 0.0
    %996 = vadd.xlane.f32.xlu0 %v995
    %v997 = vpop.xlane.xlu0 %996
    %v998 = vsel %vm318, %v988, 0.0
    %999 = vadd.xlane.f32.xlu0 %v998
    %v1000 = vpop.xlane.xlu0 %999
    %v1001 = vrcp.pop %v991
    %v1002 = vmul.f32 %v982, %v1001
    %v1003 = vrcp.pop %v994
    %v1004 = vmul.f32 %v984, %v1003
    %v1005 = vrcp.pop %v997
    %v1006 = vmul.f32 %v986, %v1005
    %v1007 = vrcp.pop %v1000
    %v1008 = vmul.f32 %v988, %v1007
    %v1009 = vpack.c.bf16 %v1002, %v1002
    %v1010 = vpack.c.bf16 %v1004, %v1004
    %v1011 = vpack.c.bf16 %v1006, %v1006
    %v1012 = vpack.c.bf16 %v1008, %v1008
    %1013 = vrot.lane.b32.xlu0 %v311, 56
    %v1014 = vpop.permute.xlu0 %1013
    %v1016 = vsel %vm318, %v1009, 0
    %v1019 = vsel %vm566, %v1014, 0
    %1021 = vmatprep.subr.bf16.mxu0 0
    %1022 = vmatpush1.bf16.msra.mxu0 %v1019
    %1023 = vmatprep.subr.bf16.mxu0 0
    %1024 = vmatpush1.bf16.msra.mxu0 0
    %1025 = vmatprep.subr.bf16.mxu0 0
    %1026 = vmatpush1.bf16.msra.mxu0 0
    %1027 = vmatprep.subr.bf16.mxu0 0
    %1028 = vmatpush1.bf16.msra.mxu0 0
    %1029 = vmatprep.subr.bf16.mxu0 0
    %1030 = vmatpush1.bf16.msra.mxu0 0
    %1031 = vmatprep.subr.bf16.mxu0 0
    %1032 = vmatpush1.bf16.msra.mxu0 0
    %1033 = vmatprep.subr.bf16.mxu0 0
    %1034 = vmatpush1.bf16.msra.mxu0 0
    %1035 = vmatprep.subr.bf16.mxu0 0
    %1036 = vmatpush1.bf16.msra.mxu0 0
    %1037 = vmatprep.subr.bf16.mxu0 0
    %1038 = vmatpush1.bf16.msra.mxu0 0
    %1039 = vmatprep.subr.bf16.mxu0 0
    %1040 = vmatpush1.bf16.msra.mxu0 0
    %1041 = vmatprep.subr.bf16.mxu0 0
    %1042 = vmatpush1.bf16.msra.mxu0 0
    %1043 = vmatprep.subr.bf16.mxu0 0
    %1044 = vmatpush1.bf16.msra.mxu0 0
    %1045 = vmatprep.subr.bf16.mxu0 0
    %1046 = vmatpush1.bf16.msra.mxu0 0
    %1047 = vmatprep.subr.bf16.mxu0 0
    %1048 = vmatpush1.bf16.msra.mxu0 0
    %1049 = vmatprep.subr.bf16.mxu0 0
    %1050 = vmatpush1.bf16.msra.mxu0 0
    %1051 = vmatprep.subr.bf16.mxu0 0
    %1052 = vmatpush1.bf16.msra.mxu0 0
    %1053 = vmatprep.mubr.bf16.mxu0 0
    %1054 = vmatmul.mubr.bf16.gmra.mrb[0].mxu0 %v1016
    %v1055 = vpop.f32.mrb[0].mxu0
    %v1056 = vadd.f32 0.0, %v1055
    %v1057 = vpop.f32.mrb[0].mxu0
    %v1058 = vpop.f32.mrb[0].mxu0
    %v1059 = vpop.f32.mrb[0].mxu0
    %1060 = vdwg.mxu0
    %1061 = vrot.lane.b32.xlu0 %v312, 56
    %v1062 = vpop.permute.xlu0 %1061
    %v1064 = vsel %vm318, %v1010, 0
    %v1067 = vsel %vm566, %v1062, 0
    %1069 = vmatprep.subr.bf16.mxu0 0
    %1070 = vmatpush1.bf16.msra.mxu0 %v1067
    %1071 = vmatprep.subr.bf16.mxu0 0
    %1072 = vmatpush1.bf16.msra.mxu0 0
    %1073 = vmatprep.subr.bf16.mxu0 0
    %1074 = vmatpush1.bf16.msra.mxu0 0
    %1075 = vmatprep.subr.bf16.mxu0 0
    %1076 = vmatpush1.bf16.msra.mxu0 0
    %1077 = vmatprep.subr.bf16.mxu0 0
    %1078 = vmatpush1.bf16.msra.mxu0 0
    %1079 = vmatprep.subr.bf16.mxu0 0
    %1080 = vmatpush1.bf16.msra.mxu0 0
    %1081 = vmatprep.subr.bf16.mxu0 0
    %1082 = vmatpush1.bf16.msra.mxu0 0
    %1083 = vmatprep.subr.bf16.mxu0 0
    %1084 = vmatpush1.bf16.msra.mxu0 0
    %1085 = vmatprep.subr.bf16.mxu0 0
    %1086 = vmatpush1.bf16.msra.mxu0 0
    %1087 = vmatprep.subr.bf16.mxu0 0
    %1088 = vmatpush1.bf16.msra.mxu0 0
    %1089 = vmatprep.subr.bf16.mxu0 0
    %1090 = vmatpush1.bf16.msra.mxu0 0
    %1091 = vmatprep.subr.bf16.mxu0 0
    %1092 = vmatpush1.bf16.msra.mxu0 0
    %1093 = vmatprep.subr.bf16.mxu0 0
    %1094 = vmatpush1.bf16.msra.mxu0 0
    %1095 = vmatprep.subr.bf16.mxu0 0
    %1096 = vmatpush1.bf16.msra.mxu0 0
    %1097 = vmatprep.subr.bf16.mxu0 0
    %1098 = vmatpush1.bf16.msra.mxu0 0
    %1099 = vmatprep.subr.bf16.mxu0 0
    %1100 = vmatpush1.bf16.msra.mxu0 0
    %1101 = vmatprep.mubr.bf16.mxu0 0
    %1102 = vmatmul.mubr.bf16.gmra.mrb[0].mxu0 %v1064
    %v1103 = vpop.f32.mrb[0].mxu0
    %v1104 = vadd.f32 0.0, %v1103
    %v1105 = vpop.f32.mrb[0].mxu0
    %v1106 = vpop.f32.mrb[0].mxu0
    %v1107 = vpop.f32.mrb[0].mxu0
    %1108 = vdwg.mxu0
    %1109 = vrot.lane.b32.xlu0 %v313, 56
    %v1110 = vpop.permute.xlu0 %1109
    %v1112 = vsel %vm318, %v1011, 0
    %v1115 = vsel %vm566, %v1110, 0
    %1117 = vmatprep.subr.bf16.mxu0 0
    %1118 = vmatpush1.bf16.msra.mxu0 %v1115
    %1119 = vmatprep.subr.bf16.mxu0 0
    %1120 = vmatpush1.bf16.msra.mxu0 0
    %1121 = vmatprep.subr.bf16.mxu0 0
    %1122 = vmatpush1.bf16.msra.mxu0 0
    %1123 = vmatprep.subr.bf16.mxu0 0
    %1124 = vmatpush1.bf16.msra.mxu0 0
    %1125 = vmatprep.subr.bf16.mxu0 0
    %1126 = vmatpush1.bf16.msra.mxu0 0
    %1127 = vmatprep.subr.bf16.mxu0 0
    %1128 = vmatpush1.bf16.msra.mxu0 0
    %1129 = vmatprep.subr.bf16.mxu0 0
    %1130 = vmatpush1.bf16.msra.mxu0 0
    %1131 = vmatprep.subr.bf16.mxu0 0
    %1132 = vmatpush1.bf16.msra.mxu0 0
    %1133 = vmatprep.subr.bf16.mxu0 0
    %1134 = vmatpush1.bf16.msra.mxu0 0
    %1135 = vmatprep.subr.bf16.mxu0 0
    %1136 = vmatpush1.bf16.msra.mxu0 0
    %1137 = vmatprep.subr.bf16.mxu0 0
    %1138 = vmatpush1.bf16.msra.mxu0 0
    %1139 = vmatprep.subr.bf16.mxu0 0
    %1140 = vmatpush1.bf16.msra.mxu0 0
    %1141 = vmatprep.subr.bf16.mxu0 0
    %1142 = vmatpush1.bf16.msra.mxu0 0
    %1143 = vmatprep.subr.bf16.mxu0 0
    %1144 = vmatpush1.bf16.msra.mxu0 0
    %1145 = vmatprep.subr.bf16.mxu0 0
    %1146 = vmatpush1.bf16.msra.mxu0 0
    %1147 = vmatprep.subr.bf16.mxu0 0
    %1148 = vmatpush1.bf16.msra.mxu0 0
    %1149 = vmatprep.mubr.bf16.mxu0 0
    %1150 = vmatmul.mubr.bf16.gmra.mrb[0].mxu0 %v1112
    %v1151 = vpop.f32.mrb[0].mxu0
    %v1152 = vadd.f32 0.0, %v1151
    %v1153 = vpop.f32.mrb[0].mxu0
    %v1154 = vpop.f32.mrb[0].mxu0
    %v1155 = vpop.f32.mrb[0].mxu0
    %1156 = vdwg.mxu0
    %1157 = vrot.lane.b32.xlu0 %v314, 56
    %v1158 = vpop.permute.xlu0 %1157
    %v1160 = vsel %vm318, %v1012, 0
    %v1163 = vsel %vm566, %v1158, 0
    %1165 = vmatprep.subr.bf16.mxu0 0
    %1166 = vmatpush1.bf16.msra.mxu0 %v1163
    %1167 = vmatprep.subr.bf16.mxu0 0
    %1168 = vmatpush1.bf16.msra.mxu0 0
    %1169 = vmatprep.subr.bf16.mxu0 0
    %1170 = vmatpush1.bf16.msra.mxu0 0
    %1171 = vmatprep.subr.bf16.mxu0 0
    %1172 = vmatpush1.bf16.msra.mxu0 0
    %1173 = vmatprep.subr.bf16.mxu0 0
    %1174 = vmatpush1.bf16.msra.mxu0 0
    %1175 = vmatprep.subr.bf16.mxu0 0
    %1176 = vmatpush1.bf16.msra.mxu0 0
    %1177 = vmatprep.subr.bf16.mxu0 0
    %1178 = vmatpush1.bf16.msra.mxu0 0
    %1179 = vmatprep.subr.bf16.mxu0 0
    %1180 = vmatpush1.bf16.msra.mxu0 0
    %1181 = vmatprep.subr.bf16.mxu0 0
    %1182 = vmatpush1.bf16.msra.mxu0 0
    %1183 = vmatprep.subr.bf16.mxu0 0
    %1184 = vmatpush1.bf16.msra.mxu0 0
    %1185 = vmatprep.subr.bf16.mxu0 0
    %1186 = vmatpush1.bf16.msra.mxu0 0
    %1187 = vmatprep.subr.bf16.mxu0 0
    %1188 = vmatpush1.bf16.msra.mxu0 0
    %1189 = vmatprep.subr.bf16.mxu0 0
    %1190 = vmatpush1.bf16.msra.mxu0 0
    %1191 = vmatprep.subr.bf16.mxu0 0
    %1192 = vmatpush1.bf16.msra.mxu0 0
    %1193 = vmatprep.subr.bf16.mxu0 0
    %1194 = vmatpush1.bf16.msra.mxu0 0
    %1195 = vmatprep.subr.bf16.mxu0 0
    %1196 = vmatpush1.bf16.msra.mxu0 0
    %1197 = vmatprep.mubr.bf16.mxu0 0
    %1198 = vmatmul.mubr.bf16.gmra.mrb[0].mxu0 %v1160
    %v1199 = vpop.f32.mrb[0].mxu0
    %v1200 = vadd.f32 0.0, %v1199
    %v1201 = vpop.f32.mrb[0].mxu0
    %v1202 = vpop.f32.mrb[0].mxu0
    %v1203 = vpop.f32.mrb[0].mxu0
    %1204 = vdwg.mxu0
    %1209 = vrot.lane.b32.xlu0 %v1056, 8
    %v1210 = vpop.permute.xlu0 %1209
    %1211 = vrot.lane.b32.xlu0 %v1104, 8
    %v1212 = vpop.permute.xlu0 %1211
    %1213 = vrot.lane.b32.xlu0 %v1152, 8
    %v1214 = vpop.permute.xlu0 %1213
    %1215 = vrot.lane.b32.xlu0 %v1200, 8
    %v1216 = vpop.permute.xlu0 %1215
    %vm1221 = vcmask 130112
    %1222 = vst.msk [vmem:[#allocation2] sm:$0xff] %vm1221, %v1210
    %1223 = vst.msk [vmem:[#allocation2 + $0x8] sm:$0xff] %vm1221, %v1212
    %1224 = vst.msk [vmem:[#allocation2 + $0x10] sm:$0xff] %vm1221, %v1214
    %1225 = vst.msk [vmem:[#allocation2 + $0x18] sm:$0xff] %vm1221, %v1216
    %1226 = vrot.lane.b32.xlu0 %v303, 112
    %v1227 = vpop.permute.xlu0 %1226
    %1228 = vrot.lane.b32.xlu0 %v307, 80
    %v1229 = vpop.permute.xlu0 %1228
    %v1231 = vsel %vm318, %v1227, 0
    %v1234 = vsel %vm318, %v1229, 0
    %1236 = vmatprep.subr.bf16.mxu0 0
    %1237 = vmatpush1.bf16.xpose.msra.mxu0 %v1234
    %1238 = vmatprep.subr.bf16.mxu0 0
    %1239 = vmatpush1.bf16.xpose.msra.mxu0 0
    %1240 = vmatprep.subr.bf16.mxu0 0
    %1241 = vmatpush1.bf16.xpose.msra.mxu0 0
    %1242 = vmatprep.subr.bf16.mxu0 0
    %1243 = vmatpush1.bf16.xpose.msra.mxu0 0
    %1244 = vmatprep.subr.bf16.mxu0 0
    %1245 = vmatpush1.bf16.xpose.msra.mxu0 0
    %1246 = vmatprep.subr.bf16.mxu0 0
    %1247 = vmatpush1.bf16.xpose.msra.mxu0 0
    %1248 = vmatprep.subr.bf16.mxu0 0
    %1249 = vmatpush1.bf16.xpose.msra.mxu0 0
    %1250 = vmatprep.subr.bf16.mxu0 0
    %1251 = vmatpush1.bf16.xpose.msra.mxu0 0
    %1252 = vmatprep.subr.bf16.mxu0 0
    %1253 = vmatpush1.bf16.xpose.msra.mxu0 0
    %1254 = vmatprep.subr.bf16.mxu0 0
    %1255 = vmatpush1.bf16.xpose.msra.mxu0 0
    %1256 = vmatprep.subr.bf16.mxu0 0
    %1257 = vmatpush1.bf16.xpose.msra.mxu0 0
    %1258 = vmatprep.subr.bf16.mxu0 0
    %1259 = vmatpush1.bf16.xpose.msra.mxu0 0
    %1260 = vmatprep.subr.bf16.mxu0 0
    %1261 = vmatpush1.bf16.xpose.msra.mxu0 0
    %1262 = vmatprep.subr.bf16.mxu0 0
    %1263 = vmatpush1.bf16.xpose.msra.mxu0 0
    %1264 = vmatprep.subr.bf16.mxu0 0
    %1265 = vmatpush1.bf16.xpose.msra.mxu0 0
    %1266 = vmatprep.subr.bf16.mxu0 0
    %1267 = vmatpush1.bf16.xpose.msra.mxu0 0
    %1268 = vmatprep.mubr.bf16.mxu0 0
    %1269 = vmatmul.mubr.bf16.gmra.mrb[0].mxu0 %v1231
    %v1270 = vpop.f32.mrb[0].mxu0
    %v1271 = vadd.f32 %v189, %v1270
    %v1272 = vpop.f32.mrb[0].mxu0
    %v1273 = vpop.f32.mrb[0].mxu0
    %v1274 = vpop.f32.mrb[0].mxu0
    %1275 = vdwg.mxu0
    %1276 = vrot.lane.b32.xlu0 %v304, 112
    %v1277 = vpop.permute.xlu0 %1276
    %1278 = vrot.lane.b32.xlu0 %v308, 80
    %v1279 = vpop.permute.xlu0 %1278
    %v1281 = vsel %vm318, %v1277, 0
    %v1284 = vsel %vm318, %v1279, 0
    %1286 = vmatprep.subr.bf16.mxu0 0
    %1287 = vmatpush1.bf16.xpose.msra.mxu0 %v1284
    %1288 = vmatprep.subr.bf16.mxu0 0
    %1289 = vmatpush1.bf16.xpose.msra.mxu0 0
    %1290 = vmatprep.subr.bf16.mxu0 0
    %1291 = vmatpush1.bf16.xpose.msra.mxu0 0
    %1292 = vmatprep.subr.bf16.mxu0 0
    %1293 = vmatpush1.bf16.xpose.msra.mxu0 0
    %1294 = vmatprep.subr.bf16.mxu0 0
    %1295 = vmatpush1.bf16.xpose.msra.mxu0 0
    %1296 = vmatprep.subr.bf16.mxu0 0
    %1297 = vmatpush1.bf16.xpose.msra.mxu0 0
    %1298 = vmatprep.subr.bf16.mxu0 0
    %1299 = vmatpush1.bf16.xpose.msra.mxu0 0
    %1300 = vmatprep.subr.bf16.mxu0 0
    %1301 = vmatpush1.bf16.xpose.msra.mxu0 0
    %1302 = vmatprep.subr.bf16.mxu0 0
    %1303 = vmatpush1.bf16.xpose.msra.mxu0 0
    %1304 = vmatprep.subr.bf16.mxu0 0
    %1305 = vmatpush1.bf16.xpose.msra.mxu0 0
    %1306 = vmatprep.subr.bf16.mxu0 0
    %1307 = vmatpush1.bf16.xpose.msra.mxu0 0
    %1308 = vmatprep.subr.bf16.mxu0 0
    %1309 = vmatpush1.bf16.xpose.msra.mxu0 0
    %1310 = vmatprep.subr.bf16.mxu0 0
    %1311 = vmatpush1.bf16.xpose.msra.mxu0 0
    %1312 = vmatprep.subr.bf16.mxu0 0
    %1313 = vmatpush1.bf16.xpose.msra.mxu0 0
    %1314 = vmatprep.subr.bf16.mxu0 0
    %1315 = vmatpush1.bf16.xpose.msra.mxu0 0
    %1316 = vmatprep.subr.bf16.mxu0 0
    %1317 = vmatpush1.bf16.xpose.msra.mxu0 0
    %1318 = vmatprep.mubr.bf16.mxu0 0
    %1319 = vmatmul.mubr.bf16.gmra.mrb[0].mxu0 %v1281
    %v1320 = vpop.f32.mrb[0].mxu0
    %v1321 = vadd.f32 %v190, %v1320
    %v1322 = vpop.f32.mrb[0].mxu0
    %v1323 = vpop.f32.mrb[0].mxu0
    %v1324 = vpop.f32.mrb[0].mxu0
    %1325 = vdwg.mxu0
    %1326 = vrot.lane.b32.xlu0 %v305, 112
    %v1327 = vpop.permute.xlu0 %1326
    %1328 = vrot.lane.b32.xlu0 %v309, 80
    %v1329 = vpop.permute.xlu0 %1328
    %v1331 = vsel %vm318, %v1327, 0
    %v1334 = vsel %vm318, %v1329, 0
    %1336 = vmatprep.subr.bf16.mxu0 0
    %1337 = vmatpush1.bf16.xpose.msra.mxu0 %v1334
    %1338 = vmatprep.subr.bf16.mxu0 0
    %1339 = vmatpush1.bf16.xpose.msra.mxu0 0
    %1340 = vmatprep.subr.bf16.mxu0 0
    %1341 = vmatpush1.bf16.xpose.msra.mxu0 0
    %1342 = vmatprep.subr.bf16.mxu0 0
    %1343 = vmatpush1.bf16.xpose.msra.mxu0 0
    %1344 = vmatprep.subr.bf16.mxu0 0
    %1345 = vmatpush1.bf16.xpose.msra.mxu0 0
    %1346 = vmatprep.subr.bf16.mxu0 0
    %1347 = vmatpush1.bf16.xpose.msra.mxu0 0
    %1348 = vmatprep.subr.bf16.mxu0 0
    %1349 = vmatpush1.bf16.xpose.msra.mxu0 0
    %1350 = vmatprep.subr.bf16.mxu0 0
    %1351 = vmatpush1.bf16.xpose.msra.mxu0 0
    %1352 = vmatprep.subr.bf16.mxu0 0
    %1353 = vmatpush1.bf16.xpose.msra.mxu0 0
    %1354 = vmatprep.subr.bf16.mxu0 0
    %1355 = vmatpush1.bf16.xpose.msra.mxu0 0
    %1356 = vmatprep.subr.bf16.mxu0 0
    %1357 = vmatpush1.bf16.xpose.msra.mxu0 0
    %1358 = vmatprep.subr.bf16.mxu0 0
    %1359 = vmatpush1.bf16.xpose.msra.mxu0 0
    %1360 = vmatprep.subr.bf16.mxu0 0
    %1361 = vmatpush1.bf16.xpose.msra.mxu0 0
    %1362 = vmatprep.subr.bf16.mxu0 0
    %1363 = vmatpush1.bf16.xpose.msra.mxu0 0
    %1364 = vmatprep.subr.bf16.mxu0 0
    %1365 = vmatpush1.bf16.xpose.msra.mxu0 0
    %1366 = vmatprep.subr.bf16.mxu0 0
    %1367 = vmatpush1.bf16.xpose.msra.mxu0 0
    %1368 = vmatprep.mubr.bf16.mxu0 0
    %1369 = vmatmul.mubr.bf16.gmra.mrb[0].mxu0 %v1331
    %v1370 = vpop.f32.mrb[0].mxu0
    %v1371 = vadd.f32 %v189, %v1370
    %v1372 = vpop.f32.mrb[0].mxu0
    %v1373 = vpop.f32.mrb[0].mxu0
    %v1374 = vpop.f32.mrb[0].mxu0
    %1375 = vdwg.mxu0
    %1376 = vrot.lane.b32.xlu0 %v306, 112
    %v1377 = vpop.permute.xlu0 %1376
    %1378 = vrot.lane.b32.xlu0 %v310, 80
    %v1379 = vpop.permute.xlu0 %1378
    %v1381 = vsel %vm318, %v1377, 0
    %v1384 = vsel %vm318, %v1379, 0
    %1386 = vmatprep.subr.bf16.mxu0 0
    %1387 = vmatpush1.bf16.xpose.msra.mxu0 %v1384
    %1388 = vmatprep.subr.bf16.mxu0 0
    %1389 = vmatpush1.bf16.xpose.msra.mxu0 0
    %1390 = vmatprep.subr.bf16.mxu0 0
    %1391 = vmatpush1.bf16.xpose.msra.mxu0 0
    %1392 = vmatprep.subr.bf16.mxu0 0
    %1393 = vmatpush1.bf16.xpose.msra.mxu0 0
    %1394 = vmatprep.subr.bf16.mxu0 0
    %1395 = vmatpush1.bf16.xpose.msra.mxu0 0
    %1396 = vmatprep.subr.bf16.mxu0 0
    %1397 = vmatpush1.bf16.xpose.msra.mxu0 0
    %1398 = vmatprep.subr.bf16.mxu0 0
    %1399 = vmatpush1.bf16.xpose.msra.mxu0 0
    %1400 = vmatprep.subr.bf16.mxu0 0
    %1401 = vmatpush1.bf16.xpose.msra.mxu0 0
    %1402 = vmatprep.subr.bf16.mxu0 0
    %1403 = vmatpush1.bf16.xpose.msra.mxu0 0
    %1404 = vmatprep.subr.bf16.mxu0 0
    %1405 = vmatpush1.bf16.xpose.msra.mxu0 0
    %1406 = vmatprep.subr.bf16.mxu0 0
    %1407 = vmatpush1.bf16.xpose.msra.mxu0 0
    %1408 = vmatprep.subr.bf16.mxu0 0
    %1409 = vmatpush1.bf16.xpose.msra.mxu0 0
    %1410 = vmatprep.subr.bf16.mxu0 0
    %1411 = vmatpush1.bf16.xpose.msra.mxu0 0
    %1412 = vmatprep.subr.bf16.mxu0 0
    %1413 = vmatpush1.bf16.xpose.msra.mxu0 0
    %1414 = vmatprep.subr.bf16.mxu0 0
    %1415 = vmatpush1.bf16.xpose.msra.mxu0 0
    %1416 = vmatprep.subr.bf16.mxu0 0
    %1417 = vmatpush1.bf16.xpose.msra.mxu0 0
    %1418 = vmatprep.mubr.bf16.mxu0 0
    %1419 = vmatmul.mubr.bf16.gmra.mrb[0].mxu0 %v1381
    %v1420 = vpop.f32.mrb[0].mxu0
    %v1421 = vadd.f32 %v190, %v1420
    %v1422 = vpop.f32.mrb[0].mxu0
    %v1423 = vpop.f32.mrb[0].mxu0
    %v1424 = vpop.f32.mrb[0].mxu0
    %1425 = vdwg.mxu0
    %v1426 = vsel %vm318, %v1271, -inf
    %1427 = vmax.xlane.f32.xlu0 %v1426
    %v1428 = vpop.xlane.xlu0 %1427
    %v1429 = vsel %vm318, %v1321, -inf
    %1430 = vmax.xlane.f32.xlu0 %v1429
    %v1431 = vpop.xlane.xlu0 %1430
    %v1432 = vsel %vm318, %v1371, -inf
    %1433 = vmax.xlane.f32.xlu0 %v1432
    %v1434 = vpop.xlane.xlu0 %1433
    %v1435 = vsel %vm318, %v1421, -inf
    %1436 = vmax.xlane.f32.xlu0 %v1435
    %v1437 = vpop.xlane.xlu0 %1436
    %v1438 = vsub.f32 %v1271, %v1428
    %v1439 = vsub.f32 %v1321, %v1431
    %v1440 = vsub.f32 %v1371, %v1434
    %v1441 = vsub.f32 %v1421, %v1437
    %v1442 = vmul.f32 %v1438, 1.442695
    %v1443 = vpow.pop %v1442
    %v1444 = vmul.f32 %v1439, 1.442695
    %v1445 = vpow.pop %v1444
    %v1446 = vmul.f32 %v1440, 1.442695
    %v1447 = vpow.pop %v1446
    %v1448 = vmul.f32 %v1441, 1.442695
    %v1449 = vpow.pop %v1448
    %v1450 = vsel %vm318, %v1443, 0.0
    %1451 = vadd.xlane.f32.xlu0 %v1450
    %v1452 = vpop.xlane.xlu0 %1451
    %v1453 = vsel %vm318, %v1445, 0.0
    %1454 = vadd.xlane.f32.xlu0 %v1453
    %v1455 = vpop.xlane.xlu0 %1454
    %v1456 = vsel %vm318, %v1447, 0.0
    %1457 = vadd.xlane.f32.xlu0 %v1456
    %v1458 = vpop.xlane.xlu0 %1457
    %v1459 = vsel %vm318, %v1449, 0.0
    %1460 = vadd.xlane.f32.xlu0 %v1459
    %v1461 = vpop.xlane.xlu0 %1460
    %v1462 = vrcp.pop %v1452
    %v1463 = vmul.f32 %v1443, %v1462
    %v1464 = vrcp.pop %v1455
    %v1465 = vmul.f32 %v1445, %v1464
    %v1466 = vrcp.pop %v1458
    %v1467 = vmul.f32 %v1447, %v1466
    %v1468 = vrcp.pop %v1461
    %v1469 = vmul.f32 %v1449, %v1468
    %v1470 = vpack.c.bf16 %v1463, %v1463
    %v1471 = vpack.c.bf16 %v1465, %v1465
    %v1472 = vpack.c.bf16 %v1467, %v1467
    %v1473 = vpack.c.bf16 %v1469, %v1469
    %1474 = vrot.lane.b32.xlu0 %v311, 48
    %v1475 = vpop.permute.xlu0 %1474
    %v1477 = vsel %vm318, %v1470, 0
    %v1480 = vsel %vm566, %v1475, 0
    %1482 = vmatprep.subr.bf16.mxu0 0
    %1483 = vmatpush1.bf16.msra.mxu0 %v1480
    %1484 = vmatprep.subr.bf16.mxu0 0
    %1485 = vmatpush1.bf16.msra.mxu0 0
    %1486 = vmatprep.subr.bf16.mxu0 0
    %1487 = vmatpush1.bf16.msra.mxu0 0
    %1488 = vmatprep.subr.bf16.mxu0 0
    %1489 = vmatpush1.bf16.msra.mxu0 0
    %1490 = vmatprep.subr.bf16.mxu0 0
    %1491 = vmatpush1.bf16.msra.mxu0 0
    %1492 = vmatprep.subr.bf16.mxu0 0
    %1493 = vmatpush1.bf16.msra.mxu0 0
    %1494 = vmatprep.subr.bf16.mxu0 0
    %1495 = vmatpush1.bf16.msra.mxu0 0
    %1496 = vmatprep.subr.bf16.mxu0 0
    %1497 = vmatpush1.bf16.msra.mxu0 0
    %1498 = vmatprep.subr.bf16.mxu0 0
    %1499 = vmatpush1.bf16.msra.mxu0 0
    %1500 = vmatprep.subr.bf16.mxu0 0
    %1501 = vmatpush1.bf16.msra.mxu0 0
    %1502 = vmatprep.subr.bf16.mxu0 0
    %1503 = vmatpush1.bf16.msra.mxu0 0
    %1504 = vmatprep.subr.bf16.mxu0 0
    %1505 = vmatpush1.bf16.msra.mxu0 0
    %1506 = vmatprep.subr.bf16.mxu0 0
    %1507 = vmatpush1.bf16.msra.mxu0 0
    %1508 = vmatprep.subr.bf16.mxu0 0
    %1509 = vmatpush1.bf16.msra.mxu0 0
    %1510 = vmatprep.subr.bf16.mxu0 0
    %1511 = vmatpush1.bf16.msra.mxu0 0
    %1512 = vmatprep.subr.bf16.mxu0 0
    %1513 = vmatpush1.bf16.msra.mxu0 0
    %1514 = vmatprep.mubr.bf16.mxu0 0
    %1515 = vmatmul.mubr.bf16.gmra.mrb[0].mxu0 %v1477
    %v1516 = vpop.f32.mrb[0].mxu0
    %v1517 = vadd.f32 0.0, %v1516
    %v1518 = vpop.f32.mrb[0].mxu0
    %v1519 = vpop.f32.mrb[0].mxu0
    %v1520 = vpop.f32.mrb[0].mxu0
    %1521 = vdwg.mxu0
    %1522 = vrot.lane.b32.xlu0 %v312, 48
    %v1523 = vpop.permute.xlu0 %1522
    %v1525 = vsel %vm318, %v1471, 0
    %v1528 = vsel %vm566, %v1523, 0
    %1530 = vmatprep.subr.bf16.mxu0 0
    %1531 = vmatpush1.bf16.msra.mxu0 %v1528
    %1532 = vmatprep.subr.bf16.mxu0 0
    %1533 = vmatpush1.bf16.msra.mxu0 0
    %1534 = vmatprep.subr.bf16.mxu0 0
    %1535 = vmatpush1.bf16.msra.mxu0 0
    %1536 = vmatprep.subr.bf16.mxu0 0
    %1537 = vmatpush1.bf16.msra.mxu0 0
    %1538 = vmatprep.subr.bf16.mxu0 0
    %1539 = vmatpush1.bf16.msra.mxu0 0
    %1540 = vmatprep.subr.bf16.mxu0 0
    %1541 = vmatpush1.bf16.msra.mxu0 0
    %1542 = vmatprep.subr.bf16.mxu0 0
    %1543 = vmatpush1.bf16.msra.mxu0 0
    %1544 = vmatprep.subr.bf16.mxu0 0
    %1545 = vmatpush1.bf16.msra.mxu0 0
    %1546 = vmatprep.subr.bf16.mxu0 0
    %1547 = vmatpush1.bf16.msra.mxu0 0
    %1548 = vmatprep.subr.bf16.mxu0 0
    %1549 = vmatpush1.bf16.msra.mxu0 0
    %1550 = vmatprep.subr.bf16.mxu0 0
    %1551 = vmatpush1.bf16.msra.mxu0 0
    %1552 = vmatprep.subr.bf16.mxu0 0
    %1553 = vmatpush1.bf16.msra.mxu0 0
    %1554 = vmatprep.subr.bf16.mxu0 0
    %1555 = vmatpush1.bf16.msra.mxu0 0
    %1556 = vmatprep.subr.bf16.mxu0 0
    %1557 = vmatpush1.bf16.msra.mxu0 0
    %1558 = vmatprep.subr.bf16.mxu0 0
    %1559 = vmatpush1.bf16.msra.mxu0 0
    %1560 = vmatprep.subr.bf16.mxu0 0
    %1561 = vmatpush1.bf16.msra.mxu0 0
    %1562 = vmatprep.mubr.bf16.mxu0 0
    %1563 = vmatmul.mubr.bf16.gmra.mrb[0].mxu0 %v1525
    %v1564 = vpop.f32.mrb[0].mxu0
    %v1565 = vadd.f32 0.0, %v1564
    %v1566 = vpop.f32.mrb[0].mxu0
    %v1567 = vpop.f32.mrb[0].mxu0
    %v1568 = vpop.f32.mrb[0].mxu0
    %1569 = vdwg.mxu0
    %1570 = vrot.lane.b32.xlu0 %v313, 48
    %v1571 = vpop.permute.xlu0 %1570
    %v1573 = vsel %vm318, %v1472, 0
    %v1576 = vsel %vm566, %v1571, 0
    %1578 = vmatprep.subr.bf16.mxu0 0
    %1579 = vmatpush1.bf16.msra.mxu0 %v1576
    %1580 = vmatprep.subr.bf16.mxu0 0
    %1581 = vmatpush1.bf16.msra.mxu0 0
    %1582 = vmatprep.subr.bf16.mxu0 0
    %1583 = vmatpush1.bf16.msra.mxu0 0
    %1584 = vmatprep.subr.bf16.mxu0 0
    %1585 = vmatpush1.bf16.msra.mxu0 0
    %1586 = vmatprep.subr.bf16.mxu0 0
    %1587 = vmatpush1.bf16.msra.mxu0 0
    %1588 = vmatprep.subr.bf16.mxu0 0
    %1589 = vmatpush1.bf16.msra.mxu0 0
    %1590 = vmatprep.subr.bf16.mxu0 0
    %1591 = vmatpush1.bf16.msra.mxu0 0
    %1592 = vmatprep.subr.bf16.mxu0 0
    %1593 = vmatpush1.bf16.msra.mxu0 0
    %1594 = vmatprep.subr.bf16.mxu0 0
    %1595 = vmatpush1.bf16.msra.mxu0 0
    %1596 = vmatprep.subr.bf16.mxu0 0
    %1597 = vmatpush1.bf16.msra.mxu0 0
    %1598 = vmatprep.subr.bf16.mxu0 0
    %1599 = vmatpush1.bf16.msra.mxu0 0
    %1600 = vmatprep.subr.bf16.mxu0 0
    %1601 = vmatpush1.bf16.msra.mxu0 0
    %1602 = vmatprep.subr.bf16.mxu0 0
    %1603 = vmatpush1.bf16.msra.mxu0 0
    %1604 = vmatprep.subr.bf16.mxu0 0
    %1605 = vmatpush1.bf16.msra.mxu0 0
    %1606 = vmatprep.subr.bf16.mxu0 0
    %1607 = vmatpush1.bf16.msra.mxu0 0
    %1608 = vmatprep.subr.bf16.mxu0 0
    %1609 = vmatpush1.bf16.msra.mxu0 0
    %1610 = vmatprep.mubr.bf16.mxu0 0
    %1611 = vmatmul.mubr.bf16.gmra.mrb[0].mxu0 %v1573
    %v1612 = vpop.f32.mrb[0].mxu0
    %v1613 = vadd.f32 0.0, %v1612
    %v1614 = vpop.f32.mrb[0].mxu0
    %v1615 = vpop.f32.mrb[0].mxu0
    %v1616 = vpop.f32.mrb[0].mxu0
    %1617 = vdwg.mxu0
    %1618 = vrot.lane.b32.xlu0 %v314, 48
    %v1619 = vpop.permute.xlu0 %1618
    %v1621 = vsel %vm318, %v1473, 0
    %v1624 = vsel %vm566, %v1619, 0
    %1626 = vmatprep.subr.bf16.mxu0 0
    %1627 = vmatpush1.bf16.msra.mxu0 %v1624
    %1628 = vmatprep.subr.bf16.mxu0 0
    %1629 = vmatpush1.bf16.msra.mxu0 0
    %1630 = vmatprep.subr.bf16.mxu0 0
    %1631 = vmatpush1.bf16.msra.mxu0 0
    %1632 = vmatprep.subr.bf16.mxu0 0
    %1633 = vmatpush1.bf16.msra.mxu0 0
    %1634 = vmatprep.subr.bf16.mxu0 0
    %1635 = vmatpush1.bf16.msra.mxu0 0
    %1636 = vmatprep.subr.bf16.mxu0 0
    %1637 = vmatpush1.bf16.msra.mxu0 0
    %1638 = vmatprep.subr.bf16.mxu0 0
    %1639 = vmatpush1.bf16.msra.mxu0 0
    %1640 = vmatprep.subr.bf16.mxu0 0
    %1641 = vmatpush1.bf16.msra.mxu0 0
    %1642 = vmatprep.subr.bf16.mxu0 0
    %1643 = vmatpush1.bf16.msra.mxu0 0
    %1644 = vmatprep.subr.bf16.mxu0 0
    %1645 = vmatpush1.bf16.msra.mxu0 0
    %1646 = vmatprep.subr.bf16.mxu0 0
    %1647 = vmatpush1.bf16.msra.mxu0 0
    %1648 = vmatprep.subr.bf16.mxu0 0
    %1649 = vmatpush1.bf16.msra.mxu0 0
    %1650 = vmatprep.subr.bf16.mxu0 0
    %1651 = vmatpush1.bf16.msra.mxu0 0
    %1652 = vmatprep.subr.bf16.mxu0 0
    %1653 = vmatpush1.bf16.msra.mxu0 0
    %1654 = vmatprep.subr.bf16.mxu0 0
    %1655 = vmatpush1.bf16.msra.mxu0 0
    %1656 = vmatprep.subr.bf16.mxu0 0
    %1657 = vmatpush1.bf16.msra.mxu0 0
    %1658 = vmatprep.mubr.bf16.mxu0 0
    %1659 = vmatmul.mubr.bf16.gmra.mrb[0].mxu0 %v1621
    %v1660 = vpop.f32.mrb[0].mxu0
    %v1661 = vadd.f32 0.0, %v1660
    %v1662 = vpop.f32.mrb[0].mxu0
    %v1663 = vpop.f32.mrb[0].mxu0
    %v1664 = vpop.f32.mrb[0].mxu0
    %1665 = vdwg.mxu0
    %1670 = vrot.lane.b32.xlu0 %v1517, 16
    %v1671 = vpop.permute.xlu0 %1670
    %1672 = vrot.lane.b32.xlu0 %v1565, 16
    %v1673 = vpop.permute.xlu0 %1672
    %1674 = vrot.lane.b32.xlu0 %v1613, 16
    %v1675 = vpop.permute.xlu0 %1674
    %1676 = vrot.lane.b32.xlu0 %v1661, 16
    %v1677 = vpop.permute.xlu0 %1676
    %vm1682 = vcmask 195712
    %1683 = vst.msk [vmem:[#allocation2] sm:$0xff] %vm1682, %v1671
    %1684 = vst.msk [vmem:[#allocation2 + $0x8] sm:$0xff] %vm1682, %v1673
    %1685 = vst.msk [vmem:[#allocation2 + $0x10] sm:$0xff] %vm1682, %v1675
    %1686 = vst.msk [vmem:[#allocation2 + $0x18] sm:$0xff] %vm1682, %v1677
    %1687 = vrot.lane.b32.xlu0 %v303, 104
    %v1688 = vpop.permute.xlu0 %1687
    %1689 = vrot.lane.b32.xlu0 %v307, 72
    %v1690 = vpop.permute.xlu0 %1689
    %v1692 = vsel %vm318, %v1688, 0
    %v1695 = vsel %vm318, %v1690, 0
    %1697 = vmatprep.subr.bf16.mxu0 0
    %1698 = vmatpush1.bf16.xpose.msra.mxu0 %v1695
    %1699 = vmatprep.subr.bf16.mxu0 0
    %1700 = vmatpush1.bf16.xpose.msra.mxu0 0
    %1701 = vmatprep.subr.bf16.mxu0 0
    %1702 = vmatpush1.bf16.xpose.msra.mxu0 0
    %1703 = vmatprep.subr.bf16.mxu0 0
    %1704 = vmatpush1.bf16.xpose.msra.mxu0 0
    %1705 = vmatprep.subr.bf16.mxu0 0
    %1706 = vmatpush1.bf16.xpose.msra.mxu0 0
    %1707 = vmatprep.subr.bf16.mxu0 0
    %1708 = vmatpush1.bf16.xpose.msra.mxu0 0
    %1709 = vmatprep.subr.bf16.mxu0 0
    %1710 = vmatpush1.bf16.xpose.msra.mxu0 0
    %1711 = vmatprep.subr.bf16.mxu0 0
    %1712 = vmatpush1.bf16.xpose.msra.mxu0 0
    %1713 = vmatprep.subr.bf16.mxu0 0
    %1714 = vmatpush1.bf16.xpose.msra.mxu0 0
    %1715 = vmatprep.subr.bf16.mxu0 0
    %1716 = vmatpush1.bf16.xpose.msra.mxu0 0
    %1717 = vmatprep.subr.bf16.mxu0 0
    %1718 = vmatpush1.bf16.xpose.msra.mxu0 0
    %1719 = vmatprep.subr.bf16.mxu0 0
    %1720 = vmatpush1.bf16.xpose.msra.mxu0 0
    %1721 = vmatprep.subr.bf16.mxu0 0
    %1722 = vmatpush1.bf16.xpose.msra.mxu0 0
    %1723 = vmatprep.subr.bf16.mxu0 0
    %1724 = vmatpush1.bf16.xpose.msra.mxu0 0
    %1725 = vmatprep.subr.bf16.mxu0 0
    %1726 = vmatpush1.bf16.xpose.msra.mxu0 0
    %1727 = vmatprep.subr.bf16.mxu0 0
    %1728 = vmatpush1.bf16.xpose.msra.mxu0 0
    %1729 = vmatprep.mubr.bf16.mxu0 0
    %1730 = vmatmul.mubr.bf16.gmra.mrb[0].mxu0 %v1692
    %v1731 = vpop.f32.mrb[0].mxu0
    %v1732 = vadd.f32 %v189, %v1731
    %v1733 = vpop.f32.mrb[0].mxu0
    %v1734 = vpop.f32.mrb[0].mxu0
    %v1735 = vpop.f32.mrb[0].mxu0
    %1736 = vdwg.mxu0
    %1737 = vrot.lane.b32.xlu0 %v304, 104
    %v1738 = vpop.permute.xlu0 %1737
    %1739 = vrot.lane.b32.xlu0 %v308, 72
    %v1740 = vpop.permute.xlu0 %1739
    %v1742 = vsel %vm318, %v1738, 0
    %v1745 = vsel %vm318, %v1740, 0
    %1747 = vmatprep.subr.bf16.mxu0 0
    %1748 = vmatpush1.bf16.xpose.msra.mxu0 %v1745
    %1749 = vmatprep.subr.bf16.mxu0 0
    %1750 = vmatpush1.bf16.xpose.msra.mxu0 0
    %1751 = vmatprep.subr.bf16.mxu0 0
    %1752 = vmatpush1.bf16.xpose.msra.mxu0 0
    %1753 = vmatprep.subr.bf16.mxu0 0
    %1754 = vmatpush1.bf16.xpose.msra.mxu0 0
    %1755 = vmatprep.subr.bf16.mxu0 0
    %1756 = vmatpush1.bf16.xpose.msra.mxu0 0
    %1757 = vmatprep.subr.bf16.mxu0 0
    %1758 = vmatpush1.bf16.xpose.msra.mxu0 0
    %1759 = vmatprep.subr.bf16.mxu0 0
    %1760 = vmatpush1.bf16.xpose.msra.mxu0 0
    %1761 = vmatprep.subr.bf16.mxu0 0
    %1762 = vmatpush1.bf16.xpose.msra.mxu0 0
    %1763 = vmatprep.subr.bf16.mxu0 0
    %1764 = vmatpush1.bf16.xpose.msra.mxu0 0
    %1765 = vmatprep.subr.bf16.mxu0 0
    %1766 = vmatpush1.bf16.xpose.msra.mxu0 0
    %1767 = vmatprep.subr.bf16.mxu0 0
    %1768 = vmatpush1.bf16.xpose.msra.mxu0 0
    %1769 = vmatprep.subr.bf16.mxu0 0
    %1770 = vmatpush1.bf16.xpose.msra.mxu0 0
    %1771 = vmatprep.subr.bf16.mxu0 0
    %1772 = vmatpush1.bf16.xpose.msra.mxu0 0
    %1773 = vmatprep.subr.bf16.mxu0 0
    %1774 = vmatpush1.bf16.xpose.msra.mxu0 0
    %1775 = vmatprep.subr.bf16.mxu0 0
    %1776 = vmatpush1.bf16.xpose.msra.mxu0 0
    %1777 = vmatprep.subr.bf16.mxu0 0
    %1778 = vmatpush1.bf16.xpose.msra.mxu0 0
    %1779 = vmatprep.mubr.bf16.mxu0 0
    %1780 = vmatmul.mubr.bf16.gmra.mrb[0].mxu0 %v1742
    %v1781 = vpop.f32.mrb[0].mxu0
    %v1782 = vadd.f32 %v190, %v1781
    %v1783 = vpop.f32.mrb[0].mxu0
    %v1784 = vpop.f32.mrb[0].mxu0
    %v1785 = vpop.f32.mrb[0].mxu0
    %1786 = vdwg.mxu0
    %1787 = vrot.lane.b32.xlu0 %v305, 104
    %v1788 = vpop.permute.xlu0 %1787
    %1789 = vrot.lane.b32.xlu0 %v309, 72
    %v1790 = vpop.permute.xlu0 %1789
    %v1792 = vsel %vm318, %v1788, 0
    %v1795 = vsel %vm318, %v1790, 0
    %1797 = vmatprep.subr.bf16.mxu0 0
    %1798 = vmatpush1.bf16.xpose.msra.mxu0 %v1795
    %1799 = vmatprep.subr.bf16.mxu0 0
    %1800 = vmatpush1.bf16.xpose.msra.mxu0 0
    %1801 = vmatprep.subr.bf16.mxu0 0
    %1802 = vmatpush1.bf16.xpose.msra.mxu0 0
    %1803 = vmatprep.subr.bf16.mxu0 0
    %1804 = vmatpush1.bf16.xpose.msra.mxu0 0
    %1805 = vmatprep.subr.bf16.mxu0 0
    %1806 = vmatpush1.bf16.xpose.msra.mxu0 0
    %1807 = vmatprep.subr.bf16.mxu0 0
    %1808 = vmatpush1.bf16.xpose.msra.mxu0 0
    %1809 = vmatprep.subr.bf16.mxu0 0
    %1810 = vmatpush1.bf16.xpose.msra.mxu0 0
    %1811 = vmatprep.subr.bf16.mxu0 0
    %1812 = vmatpush1.bf16.xpose.msra.mxu0 0
    %1813 = vmatprep.subr.bf16.mxu0 0
    %1814 = vmatpush1.bf16.xpose.msra.mxu0 0
    %1815 = vmatprep.subr.bf16.mxu0 0
    %1816 = vmatpush1.bf16.xpose.msra.mxu0 0
    %1817 = vmatprep.subr.bf16.mxu0 0
    %1818 = vmatpush1.bf16.xpose.msra.mxu0 0
    %1819 = vmatprep.subr.bf16.mxu0 0
    %1820 = vmatpush1.bf16.xpose.msra.mxu0 0
    %1821 = vmatprep.subr.bf16.mxu0 0
    %1822 = vmatpush1.bf16.xpose.msra.mxu0 0
    %1823 = vmatprep.subr.bf16.mxu0 0
    %1824 = vmatpush1.bf16.xpose.msra.mxu0 0
    %1825 = vmatprep.subr.bf16.mxu0 0
    %1826 = vmatpush1.bf16.xpose.msra.mxu0 0
    %1827 = vmatprep.subr.bf16.mxu0 0
    %1828 = vmatpush1.bf16.xpose.msra.mxu0 0
    %1829 = vmatprep.mubr.bf16.mxu0 0
    %1830 = vmatmul.mubr.bf16.gmra.mrb[0].mxu0 %v1792
    %v1831 = vpop.f32.mrb[0].mxu0
    %v1832 = vadd.f32 %v189, %v1831
    %v1833 = vpop.f32.mrb[0].mxu0
    %v1834 = vpop.f32.mrb[0].mxu0
    %v1835 = vpop.f32.mrb[0].mxu0
    %1836 = vdwg.mxu0
    %1837 = vrot.lane.b32.xlu0 %v306, 104
    %v1838 = vpop.permute.xlu0 %1837
    %1839 = vrot.lane.b32.xlu0 %v310, 72
    %v1840 = vpop.permute.xlu0 %1839
    %v1842 = vsel %vm318, %v1838, 0
    %v1845 = vsel %vm318, %v1840, 0
    %1847 = vmatprep.subr.bf16.mxu0 0
    %1848 = vmatpush1.bf16.xpose.msra.mxu0 %v1845
    %1849 = vmatprep.subr.bf16.mxu0 0
    %1850 = vmatpush1.bf16.xpose.msra.mxu0 0
    %1851 = vmatprep.subr.bf16.mxu0 0
    %1852 = vmatpush1.bf16.xpose.msra.mxu0 0
    %1853 = vmatprep.subr.bf16.mxu0 0
    %1854 = vmatpush1.bf16.xpose.msra.mxu0 0
    %1855 = vmatprep.subr.bf16.mxu0 0
    %1856 = vmatpush1.bf16.xpose.msra.mxu0 0
    %1857 = vmatprep.subr.bf16.mxu0 0
    %1858 = vmatpush1.bf16.xpose.msra.mxu0 0
    %1859 = vmatprep.subr.bf16.mxu0 0
    %1860 = vmatpush1.bf16.xpose.msra.mxu0 0
    %1861 = vmatprep.subr.bf16.mxu0 0
    %1862 = vmatpush1.bf16.xpose.msra.mxu0 0
    %1863 = vmatprep.subr.bf16.mxu0 0
    %1864 = vmatpush1.bf16.xpose.msra.mxu0 0
    %1865 = vmatprep.subr.bf16.mxu0 0
    %1866 = vmatpush1.bf16.xpose.msra.mxu0 0
    %1867 = vmatprep.subr.bf16.mxu0 0
    %1868 = vmatpush1.bf16.xpose.msra.mxu0 0
    %1869 = vmatprep.subr.bf16.mxu0 0
    %1870 = vmatpush1.bf16.xpose.msra.mxu0 0
    %1871 = vmatprep.subr.bf16.mxu0 0
    %1872 = vmatpush1.bf16.xpose.msra.mxu0 0
    %1873 = vmatprep.subr.bf16.mxu0 0
    %1874 = vmatpush1.bf16.xpose.msra.mxu0 0
    %1875 = vmatprep.subr.bf16.mxu0 0
    %1876 = vmatpush1.bf16.xpose.msra.mxu0 0
    %1877 = vmatprep.subr.bf16.mxu0 0
    %1878 = vmatpush1.bf16.xpose.msra.mxu0 0
    %1879 = vmatprep.mubr.bf16.mxu0 0
    %1880 = vmatmul.mubr.bf16.gmra.mrb[0].mxu0 %v1842
    %v1881 = vpop.f32.mrb[0].mxu0
    %v1882 = vadd.f32 %v190, %v1881
    %v1883 = vpop.f32.mrb[0].mxu0
    %v1884 = vpop.f32.mrb[0].mxu0
    %v1885 = vpop.f32.mrb[0].mxu0
    %1886 = vdwg.mxu0
    %v1887 = vsel %vm318, %v1732, -inf
    %1888 = vmax.xlane.f32.xlu0 %v1887
    %v1889 = vpop.xlane.xlu0 %1888
    %v1890 = vsel %vm318, %v1782, -inf
    %1891 = vmax.xlane.f32.xlu0 %v1890
    %v1892 = vpop.xlane.xlu0 %1891
    %v1893 = vsel %vm318, %v1832, -inf
    %1894 = vmax.xlane.f32.xlu0 %v1893
    %v1895 = vpop.xlane.xlu0 %1894
    %v1896 = vsel %vm318, %v1882, -inf
    %1897 = vmax.xlane.f32.xlu0 %v1896
    %v1898 = vpop.xlane.xlu0 %1897
    %v1899 = vsub.f32 %v1732, %v1889
    %v1900 = vsub.f32 %v1782, %v1892
    %v1901 = vsub.f32 %v1832, %v1895
    %v1902 = vsub.f32 %v1882, %v1898
    %v1903 = vmul.f32 %v1899, 1.442695
    %v1904 = vpow.pop %v1903
    %v1905 = vmul.f32 %v1900, 1.442695
    %v1906 = vpow.pop %v1905
    %v1907 = vmul.f32 %v1901, 1.442695
    %v1908 = vpow.pop %v1907
    %v1909 = vmul.f32 %v1902, 1.442695
    %v1910 = vpow.pop %v1909
    %v1911 = vsel %vm318, %v1904, 0.0
    %1912 = vadd.xlane.f32.xlu0 %v1911
    %v1913 = vpop.xlane.xlu0 %1912
    %v1914 = vsel %vm318, %v1906, 0.0
    %1915 = vadd.xlane.f32.xlu0 %v1914
    %v1916 = vpop.xlane.xlu0 %1915
    %v1917 = vsel %vm318, %v1908, 0.0
    %1918 = vadd.xlane.f32.xlu0 %v1917
    %v1919 = vpop.xlane.xlu0 %1918
    %v1920 = vsel %vm318, %v1910, 0.0
    %1921 = vadd.xlane.f32.xlu0 %v1920
    %v1922 = vpop.xlane.xlu0 %1921
    %v1923 = vrcp.pop %v1913
    %v1924 = vmul.f32 %v1904, %v1923
    %v1925 = vrcp.pop %v1916
    %v1926 = vmul.f32 %v1906, %v1925
    %v1927 = vrcp.pop %v1919
    %v1928 = vmul.f32 %v1908, %v1927
    %v1929 = vrcp.pop %v1922
    %v1930 = vmul.f32 %v1910, %v1929
    %v1931 = vpack.c.bf16 %v1924, %v1924
    %v1932 = vpack.c.bf16 %v1926, %v1926
    %v1933 = vpack.c.bf16 %v1928, %v1928
    %v1934 = vpack.c.bf16 %v1930, %v1930
    %1935 = vrot.lane.b32.xlu0 %v311, 40
    %v1936 = vpop.permute.xlu0 %1935
    %v1938 = vsel %vm318, %v1931, 0
    %v1941 = vsel %vm566, %v1936, 0
    %1943 = vmatprep.subr.bf16.mxu0 0
    %1944 = vmatpush1.bf16.msra.mxu0 %v1941
    %1945 = vmatprep.subr.bf16.mxu0 0
    %1946 = vmatpush1.bf16.msra.mxu0 0
    %1947 = vmatprep.subr.bf16.mxu0 0
    %1948 = vmatpush1.bf16.msra.mxu0 0
    %1949 = vmatprep.subr.bf16.mxu0 0
    %1950 = vmatpush1.bf16.msra.mxu0 0
    %1951 = vmatprep.subr.bf16.mxu0 0
    %1952 = vmatpush1.bf16.msra.mxu0 0
    %1953 = vmatprep.subr.bf16.mxu0 0
    %1954 = vmatpush1.bf16.msra.mxu0 0
    %1955 = vmatprep.subr.bf16.mxu0 0
    %1956 = vmatpush1.bf16.msra.mxu0 0
    %1957 = vmatprep.subr.bf16.mxu0 0
    %1958 = vmatpush1.bf16.msra.mxu0 0
    %1959 = vmatprep.subr.bf16.mxu0 0
    %1960 = vmatpush1.bf16.msra.mxu0 0
    %1961 = vmatprep.subr.bf16.mxu0 0
    %1962 = vmatpush1.bf16.msra.mxu0 0
    %1963 = vmatprep.subr.bf16.mxu0 0
    %1964 = vmatpush1.bf16.msra.mxu0 0
    %1965 = vmatprep.subr.bf16.mxu0 0
    %1966 = vmatpush1.bf16.msra.mxu0 0
    %1967 = vmatprep.subr.bf16.mxu0 0
    %1968 = vmatpush1.bf16.msra.mxu0 0
    %1969 = vmatprep.subr.bf16.mxu0 0
    %1970 = vmatpush1.bf16.msra.mxu0 0
    %1971 = vmatprep.subr.bf16.mxu0 0
    %1972 = vmatpush1.bf16.msra.mxu0 0
    %1973 = vmatprep.subr.bf16.mxu0 0
    %1974 = vmatpush1.bf16.msra.mxu0 0
    %1975 = vmatprep.mubr.bf16.mxu0 0
    %1976 = vmatmul.mubr.bf16.gmra.mrb[0].mxu0 %v1938
    %v1977 = vpop.f32.mrb[0].mxu0
    %v1978 = vadd.f32 0.0, %v1977
    %v1979 = vpop.f32.mrb[0].mxu0
    %v1980 = vpop.f32.mrb[0].mxu0
    %v1981 = vpop.f32.mrb[0].mxu0
    %1982 = vdwg.mxu0
    %1983 = vrot.lane.b32.xlu0 %v312, 40
    %v1984 = vpop.permute.xlu0 %1983
    %v1986 = vsel %vm318, %v1932, 0
    %v1989 = vsel %vm566, %v1984, 0
    %1991 = vmatprep.subr.bf16.mxu0 0
    %1992 = vmatpush1.bf16.msra.mxu0 %v1989
    %1993 = vmatprep.subr.bf16.mxu0 0
    %1994 = vmatpush1.bf16.msra.mxu0 0
    %1995 = vmatprep.subr.bf16.mxu0 0
    %1996 = vmatpush1.bf16.msra.mxu0 0
    %1997 = vmatprep.subr.bf16.mxu0 0
    %1998 = vmatpush1.bf16.msra.mxu0 0
    %1999 = vmatprep.subr.bf16.mxu0 0
    %2000 = vmatpush1.bf16.msra.mxu0 0
    %2001 = vmatprep.subr.bf16.mxu0 0
    %2002 = vmatpush1.bf16.msra.mxu0 0
    %2003 = vmatprep.subr.bf16.mxu0 0
    %2004 = vmatpush1.bf16.msra.mxu0 0
    %2005 = vmatprep.subr.bf16.mxu0 0
    %2006 = vmatpush1.bf16.msra.mxu0 0
    %2007 = vmatprep.subr.bf16.mxu0 0
    %2008 = vmatpush1.bf16.msra.mxu0 0
    %2009 = vmatprep.subr.bf16.mxu0 0
    %2010 = vmatpush1.bf16.msra.mxu0 0
    %2011 = vmatprep.subr.bf16.mxu0 0
    %2012 = vmatpush1.bf16.msra.mxu0 0
    %2013 = vmatprep.subr.bf16.mxu0 0
    %2014 = vmatpush1.bf16.msra.mxu0 0
    %2015 = vmatprep.subr.bf16.mxu0 0
    %2016 = vmatpush1.bf16.msra.mxu0 0
    %2017 = vmatprep.subr.bf16.mxu0 0
    %2018 = vmatpush1.bf16.msra.mxu0 0
    %2019 = vmatprep.subr.bf16.mxu0 0
    %2020 = vmatpush1.bf16.msra.mxu0 0
    %2021 = vmatprep.subr.bf16.mxu0 0
    %2022 = vmatpush1.bf16.msra.mxu0 0
    %2023 = vmatprep.mubr.bf16.mxu0 0
    %2024 = vmatmul.mubr.bf16.gmra.mrb[0].mxu0 %v1986
    %v2025 = vpop.f32.mrb[0].mxu0
    %v2026 = vadd.f32 0.0, %v2025
    %v2027 = vpop.f32.mrb[0].mxu0
    %v2028 = vpop.f32.mrb[0].mxu0
    %v2029 = vpop.f32.mrb[0].mxu0
    %2030 = vdwg.mxu0
    %2031 = vrot.lane.b32.xlu0 %v313, 40
    %v2032 = vpop.permute.xlu0 %2031
    %v2034 = vsel %vm318, %v1933, 0
    %v2037 = vsel %vm566, %v2032, 0
    %2039 = vmatprep.subr.bf16.mxu0 0
    %2040 = vmatpush1.bf16.msra.mxu0 %v2037
    %2041 = vmatprep.subr.bf16.mxu0 0
    %2042 = vmatpush1.bf16.msra.mxu0 0
    %2043 = vmatprep.subr.bf16.mxu0 0
    %2044 = vmatpush1.bf16.msra.mxu0 0
    %2045 = vmatprep.subr.bf16.mxu0 0
    %2046 = vmatpush1.bf16.msra.mxu0 0
    %2047 = vmatprep.subr.bf16.mxu0 0
    %2048 = vmatpush1.bf16.msra.mxu0 0
    %2049 = vmatprep.subr.bf16.mxu0 0
    %2050 = vmatpush1.bf16.msra.mxu0 0
    %2051 = vmatprep.subr.bf16.mxu0 0
    %2052 = vmatpush1.bf16.msra.mxu0 0
    %2053 = vmatprep.subr.bf16.mxu0 0
    %2054 = vmatpush1.bf16.msra.mxu0 0
    %2055 = vmatprep.subr.bf16.mxu0 0
    %2056 = vmatpush1.bf16.msra.mxu0 0
    %2057 = vmatprep.subr.bf16.mxu0 0
    %2058 = vmatpush1.bf16.msra.mxu0 0
    %2059 = vmatprep.subr.bf16.mxu0 0
    %2060 = vmatpush1.bf16.msra.mxu0 0
    %2061 = vmatprep.subr.bf16.mxu0 0
    %2062 = vmatpush1.bf16.msra.mxu0 0
    %2063 = vmatprep.subr.bf16.mxu0 0
    %2064 = vmatpush1.bf16.msra.mxu0 0
    %2065 = vmatprep.subr.bf16.mxu0 0
    %2066 = vmatpush1.bf16.msra.mxu0 0
    %2067 = vmatprep.subr.bf16.mxu0 0
    %2068 = vmatpush1.bf16.msra.mxu0 0
    %2069 = vmatprep.subr.bf16.mxu0 0
    %2070 = vmatpush1.bf16.msra.mxu0 0
    %2071 = vmatprep.mubr.bf16.mxu0 0
    %2072 = vmatmul.mubr.bf16.gmra.mrb[0].mxu0 %v2034
    %v2073 = vpop.f32.mrb[0].mxu0
    %v2074 = vadd.f32 0.0, %v2073
    %v2075 = vpop.f32.mrb[0].mxu0
    %v2076 = vpop.f32.mrb[0].mxu0
    %v2077 = vpop.f32.mrb[0].mxu0
    %2078 = vdwg.mxu0
    %2079 = vrot.lane.b32.xlu0 %v314, 40
    %v2080 = vpop.permute.xlu0 %2079
    %v2082 = vsel %vm318, %v1934, 0
    %v2085 = vsel %vm566, %v2080, 0
    %2087 = vmatprep.subr.bf16.mxu0 0
    %2088 = vmatpush1.bf16.msra.mxu0 %v2085
    %2089 = vmatprep.subr.bf16.mxu0 0
    %2090 = vmatpush1.bf16.msra.mxu0 0
    %2091 = vmatprep.subr.bf16.mxu0 0
    %2092 = vmatpush1.bf16.msra.mxu0 0
    %2093 = vmatprep.subr.bf16.mxu0 0
    %2094 = vmatpush1.bf16.msra.mxu0 0
    %2095 = vmatprep.subr.bf16.mxu0 0
    %2096 = vmatpush1.bf16.msra.mxu0 0
    %2097 = vmatprep.subr.bf16.mxu0 0
    %2098 = vmatpush1.bf16.msra.mxu0 0
    %2099 = vmatprep.subr.bf16.mxu0 0
    %2100 = vmatpush1.bf16.msra.mxu0 0
    %2101 = vmatprep.subr.bf16.mxu0 0
    %2102 = vmatpush1.bf16.msra.mxu0 0
    %2103 = vmatprep.subr.bf16.mxu0 0
    %2104 = vmatpush1.bf16.msra.mxu0 0
    %2105 = vmatprep.subr.bf16.mxu0 0
    %2106 = vmatpush1.bf16.msra.mxu0 0
    %2107 = vmatprep.subr.bf16.mxu0 0
    %2108 = vmatpush1.bf16.msra.mxu0 0
    %2109 = vmatprep.subr.bf16.mxu0 0
    %2110 = vmatpush1.bf16.msra.mxu0 0
    %2111 = vmatprep.subr.bf16.mxu0 0
    %2112 = vmatpush1.bf16.msra.mxu0 0
    %2113 = vmatprep.subr.bf16.mxu0 0
    %2114 = vmatpush1.bf16.msra.mxu0 0
    %2115 = vmatprep.subr.bf16.mxu0 0
    %2116 = vmatpush1.bf16.msra.mxu0 0
    %2117 = vmatprep.subr.bf16.mxu0 0
    %2118 = vmatpush1.bf16.msra.mxu0 0
    %2119 = vmatprep.mubr.bf16.mxu0 0
    %2120 = vmatmul.mubr.bf16.gmra.mrb[0].mxu0 %v2082
    %v2121 = vpop.f32.mrb[0].mxu0
    %v2122 = vadd.f32 0.0, %v2121
    %v2123 = vpop.f32.mrb[0].mxu0
    %v2124 = vpop.f32.mrb[0].mxu0
    %v2125 = vpop.f32.mrb[0].mxu0
    %2126 = vdwg.mxu0
    %2131 = vrot.lane.b32.xlu0 %v1978, 24
    %v2132 = vpop.permute.xlu0 %2131
    %2133 = vrot.lane.b32.xlu0 %v2026, 24
    %v2134 = vpop.permute.xlu0 %2133
    %2135 = vrot.lane.b32.xlu0 %v2074, 24
    %v2136 = vpop.permute.xlu0 %2135
    %2137 = vrot.lane.b32.xlu0 %v2122, 24
    %v2138 = vpop.permute.xlu0 %2137
    %vm2143 = vcmask 261312
    %2144 = vst.msk [vmem:[#allocation2] sm:$0xff] %vm2143, %v2132
    %2145 = vst.msk [vmem:[#allocation2 + $0x8] sm:$0xff] %vm2143, %v2134
    %2146 = vst.msk [vmem:[#allocation2 + $0x10] sm:$0xff] %vm2143, %v2136
    %2147 = vst.msk [vmem:[#allocation2 + $0x18] sm:$0xff] %vm2143, %v2138
    %v2148 = vld [vmem:[#allocation2] sm:$0xff]
    %v2149 = vld [vmem:[#allocation2 + $0x8] sm:$0xff]
    %v2150 = vld [vmem:[#allocation2 + $0x10] sm:$0xff]
    %v2151 = vld [vmem:[#allocation2 + $0x18] sm:$0xff]
    %v2152 = vpack.c.bf16 %v2149, %v2148
    %v2153 = vpack.c.bf16 %v2151, %v2150
    %v2154 = vld [vmem:[#allocation8] sm:$0xf]
    %v2155 = vld [vmem:[#allocation8 + $0x4] sm:$0xf]
    %v2156 = vld [vmem:[#allocation8 + $0x8] sm:$0xf]
    %v2157 = vld [vmem:[#allocation8 + $0xc] sm:$0xf]
    %v2158 = vlaneseq
    %v2159 = vshrl.u32 %v2158, 7
    %v2160 = vsub.s32 3, %v2159
    %v2161 = vrot.slane %v175, %v2160
    %v2166 = vunpack.c.l.b16 %v2154
    %v2167 = vunpack.c.l.b16 %v2155
    %v2168 = vunpack.c.l.b16 %v2156
    %v2169 = vunpack.c.l.b16 %v2157
    %v2170 = vpack.c.b16 %v2167, %v2166
    %v2171 = vpack.c.b16 %v2169, %v2168
    %v2175 = vsel %vm215, %v2152, 0
    %v2178 = vsel %vm215, %v2153, 0
    %2180 = vmatprep.subr.bf16.mxu0 0
    %2181 = vmatpush1.bf16.msra.mxu0 %v2170
    %2182 = vmatprep.subr.bf16.mxu0 0
    %2183 = vmatpush1.bf16.msra.mxu0 %v2171
    %2184 = vmatprep.subr.bf16.mxu0 0
    %2185 = vmatpush1.bf16.msra.mxu0 0
    %2186 = vmatprep.subr.bf16.mxu0 0
    %2187 = vmatpush1.bf16.msra.mxu0 0
    %2188 = vmatprep.subr.bf16.mxu0 0
    %2189 = vmatpush1.bf16.msra.mxu0 0
    %2190 = vmatprep.subr.bf16.mxu0 0
    %2191 = vmatpush1.bf16.msra.mxu0 0
    %2192 = vmatprep.subr.bf16.mxu0 0
    %2193 = vmatpush1.bf16.msra.mxu0 0
    %2194 = vmatprep.subr.bf16.mxu0 0
    %2195 = vmatpush1.bf16.msra.mxu0 0
    %2196 = vmatprep.subr.bf16.mxu0 0
    %2197 = vmatpush1.bf16.msra.mxu0 0
    %2198 = vmatprep.subr.bf16.mxu0 0
    %2199 = vmatpush1.bf16.msra.mxu0 0
    %2200 = vmatprep.subr.bf16.mxu0 0
    %2201 = vmatpush1.bf16.msra.mxu0 0
    %2202 = vmatprep.subr.bf16.mxu0 0
    %2203 = vmatpush1.bf16.msra.mxu0 0
    %2204 = vmatprep.subr.bf16.mxu0 0
    %2205 = vmatpush1.bf16.msra.mxu0 0
    %2206 = vmatprep.subr.bf16.mxu0 0
    %2207 = vmatpush1.bf16.msra.mxu0 0
    %2208 = vmatprep.subr.bf16.mxu0 0
    %2209 = vmatpush1.bf16.msra.mxu0 0
    %2210 = vmatprep.subr.bf16.mxu0 0
    %2211 = vmatpush1.bf16.msra.mxu0 0
    %2212 = vmatprep.mubr.bf16.mxu0 0
    %2213 = vmatmul.mubr.bf16.gmra.mrb[0].mxu0 %v2175
    %v2214 = vpop.f32.mrb[0].mxu0
    %v2215 = vadd.f32 %v2161, %v2214
    %v2216 = vpop.f32.mrb[0].mxu0
    %v2217 = vpop.f32.mrb[0].mxu0
    %v2218 = vadd.f32 %v2161, %v2217
    %v2219 = vpop.f32.mrb[0].mxu0
    %2220 = vmatprep.mubr.bf16.mxu0 0
    %2221 = vmatmul.mubr.bf16.gmra.mrb[0].mxu0 %v2178
    %v2222 = vpop.f32.mrb[0].mxu0
    %v2223 = vadd.f32 %v2161, %v2222
    %v2224 = vpop.f32.mrb[0].mxu0
    %v2225 = vpop.f32.mrb[0].mxu0
    %v2226 = vadd.f32 %v2161, %v2225
    %v2227 = vpop.f32.mrb[0].mxu0
    %2228 = vdwg.mxu0
    %v2229 = vadd.f32 %v177, %v2215
    %v2230 = vadd.f32 %v178, %v2218
    %v2231 = vadd.f32 %v179, %v2223
    %v2232 = vadd.f32 %v180, %v2226
    %v2233 = vsel %vm215, %v2229, 0.0
    %2234 = vadd.xlane.f32.xlu0 %v2233
    %v2235 = vpop.xlane.xlu0 %2234
    %v2236 = vsel %vm215, %v2230, 0.0
    %2237 = vadd.xlane.f32.xlu0 %v2236
    %v2238 = vpop.xlane.xlu0 %2237
    %v2239 = vsel %vm215, %v2231, 0.0
    %2240 = vadd.xlane.f32.xlu0 %v2239
    %v2241 = vpop.xlane.xlu0 %2240
    %v2242 = vsel %vm215, %v2232, 0.0
    %2243 = vadd.xlane.f32.xlu0 %v2242
    %v2244 = vpop.xlane.xlu0 %2243
    %v2245 = vrcp.pop 32.0
    %v2246 = vmul.f32 %v2235, %v2245
    %v2247 = vmul.f32 %v2238, %v2245
    %v2248 = vmul.f32 %v2241, %v2245
    %v2249 = vmul.f32 %v2244, %v2245
    %v2250 = vsub.f32 %v2229, %v2246
    %v2251 = vsub.f32 %v2230, %v2247
    %v2252 = vsub.f32 %v2231, %v2248
    %v2253 = vsub.f32 %v2232, %v2249
    %v2254 = vmul.f32 %v2250, %v2250
    %v2255 = vmul.f32 %v2251, %v2251
    %v2256 = vmul.f32 %v2252, %v2252
    %v2257 = vmul.f32 %v2253, %v2253
    %v2258 = vsel %vm215, %v2254, 0.0
    %2259 = vadd.xlane.f32.xlu0 %v2258
    %v2260 = vpop.xlane.xlu0 %2259
    %v2261 = vsel %vm215, %v2255, 0.0
    %2262 = vadd.xlane.f32.xlu0 %v2261
    %v2263 = vpop.xlane.xlu0 %2262
    %v2264 = vsel %vm215, %v2256, 0.0
    %2265 = vadd.xlane.f32.xlu0 %v2264
    %v2266 = vpop.xlane.xlu0 %2265
    %v2267 = vsel %vm215, %v2257, 0.0
    %2268 = vadd.xlane.f32.xlu0 %v2267
    %v2269 = vpop.xlane.xlu0 %2268
    %v2270 = vmul.f32 %v2260, %v2245
    %v2271 = vmul.f32 %v2263, %v2245
    %v2272 = vmul.f32 %v2266, %v2245
    %v2273 = vmul.f32 %v2269, %v2245
    %v2274 = vadd.f32 %v2270, 1e-05
    %v2275 = vadd.f32 %v2271, 1e-05
    %v2276 = vadd.f32 %v2272, 1e-05
    %v2277 = vadd.f32 %v2273, 1e-05
    %v2278 = vrsqrt.pop %v2274
    %v2279 = vrsqrt.pop %v2275
    %v2280 = vrsqrt.pop %v2276
    %v2281 = vrsqrt.pop %v2277
    %v2282 = vmul.f32 %v2250, %v2278
    %v2283 = vmul.f32 %v2251, %v2279
    %v2284 = vmul.f32 %v2252, %v2280
    %v2285 = vmul.f32 %v2253, %v2281
    %v2286 = vlaneseq
    %v2287 = vshrl.u32 %v2286, 7
    %v2288 = vsub.s32 1, %v2287
    %v2289 = vrot.slane %v176, %v2288
    %v2290 = vmul.f32 %v2282, %v2289
    %v2291 = vmul.f32 %v2283, %v2289
    %v2292 = vmul.f32 %v2284, %v2289
    %v2293 = vmul.f32 %v2285, %v2289
    %v2294 = vlaneseq
    %v2295 = vshrl.u32 %v2294, 7
    %v2296 = vsub.s32 2, %v2295
    %v2297 = vrot.slane %v176, %v2296
    %v2298 = vadd.f32 %v2290, %v2297
    %v2299 = vadd.f32 %v2291, %v2297
    %v2300 = vadd.f32 %v2292, %v2297
    %v2301 = vadd.f32 %v2293, %v2297
    %v2302 = vpack.c.bf16 %v2299, %v2298
    %v2303 = vpack.c.bf16 %v2301, %v2300
    %v2304 = vld [vmem:[#allocation9] sm:$0xf]
    %v2305 = vld [vmem:[#allocation9 + $0x4] sm:$0xf]
    %v2306 = vld [vmem:[#allocation9 + $0x8] sm:$0xf]
    %v2307 = vld [vmem:[#allocation9 + $0xc] sm:$0xf]
    %v2308 = vlaneseq
    %v2309 = vshrl.u32 %v2308, 7
    %v2310 = vsub.s32 4, %v2309
    %v2311 = vrot.slane %v175, %v2310
    %v2316 = vunpack.c.l.b16 %v2304
    %v2317 = vunpack.c.l.b16 %v2305
    %v2318 = vunpack.c.l.b16 %v2306
    %v2319 = vunpack.c.l.b16 %v2307
    %v2320 = vpack.c.b16 %v2317, %v2316
    %v2321 = vpack.c.b16 %v2319, %v2318
    %v2325 = vsel %vm215, %v2302, 0
    %v2328 = vsel %vm215, %v2303, 0
    %2330 = vmatprep.subr.bf16.mxu0 0
    %2331 = vmatpush1.bf16.msra.mxu0 %v2320
    %2332 = vmatprep.subr.bf16.mxu0 0
    %2333 = vmatpush1.bf16.msra.mxu0 %v2321
    %2334 = vmatprep.subr.bf16.mxu0 0
    %2335 = vmatpush1.bf16.msra.mxu0 0
    %2336 = vmatprep.subr.bf16.mxu0 0
    %2337 = vmatpush1.bf16.msra.mxu0 0
    %2338 = vmatprep.subr.bf16.mxu0 0
    %2339 = vmatpush1.bf16.msra.mxu0 0
    %2340 = vmatprep.subr.bf16.mxu0 0
    %2341 = vmatpush1.bf16.msra.mxu0 0
    %2342 = vmatprep.subr.bf16.mxu0 0
    %2343 = vmatpush1.bf16.msra.mxu0 0
    %2344 = vmatprep.subr.bf16.mxu0 0
    %2345 = vmatpush1.bf16.msra.mxu0 0
    %2346 = vmatprep.subr.bf16.mxu0 0
    %2347 = vmatpush1.bf16.msra.mxu0 0
    %2348 = vmatprep.subr.bf16.mxu0 0
    %2349 = vmatpush1.bf16.msra.mxu0 0
    %2350 = vmatprep.subr.bf16.mxu0 0
    %2351 = vmatpush1.bf16.msra.mxu0 0
    %2352 = vmatprep.subr.bf16.mxu0 0
    %2353 = vmatpush1.bf16.msra.mxu0 0
    %2354 = vmatprep.subr.bf16.mxu0 0
    %2355 = vmatpush1.bf16.msra.mxu0 0
    %2356 = vmatprep.subr.bf16.mxu0 0
    %2357 = vmatpush1.bf16.msra.mxu0 0
    %2358 = vmatprep.subr.bf16.mxu0 0
    %2359 = vmatpush1.bf16.msra.mxu0 0
    %2360 = vmatprep.subr.bf16.mxu0 0
    %2361 = vmatpush1.bf16.msra.mxu0 0
    %2362 = vmatprep.mubr.bf16.mxu0 0
    %2363 = vmatmul.mubr.bf16.gmra.mrb[0].mxu0 %v2325
    %v2364 = vpop.f32.mrb[0].mxu0
    %v2365 = vadd.f32 %v2311, %v2364
    %v2366 = vpop.f32.mrb[0].mxu0
    %v2367 = vpop.f32.mrb[0].mxu0
    %v2368 = vadd.f32 %v2311, %v2367
    %v2369 = vpop.f32.mrb[0].mxu0
    %2370 = vmatprep.mubr.bf16.mxu0 0
    %2371 = vmatmul.mubr.bf16.gmra.mrb[0].mxu0 %v2328
    %v2372 = vpop.f32.mrb[0].mxu0
    %v2373 = vadd.f32 %v2311, %v2372
    %v2374 = vpop.f32.mrb[0].mxu0
    %v2375 = vpop.f32.mrb[0].mxu0
    %v2376 = vadd.f32 %v2311, %v2375
    %v2377 = vpop.f32.mrb[0].mxu0
    %2378 = vdwg.mxu0
    %v2379 = vpack.c.bf16 %v182, %v181
    %v2380 = vpack.c.bf16 %v184, %v183
    %v2381 = vld [vmem:[#allocation11] sm:$0xf]
    %v2382 = vld [vmem:[#allocation11 + $0x4] sm:$0xf]
    %v2383 = vld [vmem:[#allocation11 + $0x8] sm:$0xf]
    %v2384 = vld [vmem:[#allocation11 + $0xc] sm:$0xf]
    %v2389 = vunpack.c.l.b16 %v2381
    %v2390 = vunpack.c.l.b16 %v2382
    %v2391 = vunpack.c.l.b16 %v2383
    %v2392 = vunpack.c.l.b16 %v2384
    %v2393 = vpack.c.b16 %v2390, %v2389
    %v2394 = vpack.c.b16 %v2392, %v2391
    %v2398 = vsel %vm215, %v2379, 0
    %v2401 = vsel %vm215, %v2380, 0
    %2403 = vmatprep.subr.bf16.mxu0 0
    %2404 = vmatpush1.bf16.msra.mxu0 %v2393
    %2405 = vmatprep.subr.bf16.mxu0 0
    %2406 = vmatpush1.bf16.msra.mxu0 %v2394
    %2407 = vmatprep.subr.bf16.mxu0 0
    %2408 = vmatpush1.bf16.msra.mxu0 0
    %2409 = vmatprep.subr.bf16.mxu0 0
    %2410 = vmatpush1.bf16.msra.mxu0 0
    %2411 = vmatprep.subr.bf16.mxu0 0
    %2412 = vmatpush1.bf16.msra.mxu0 0
    %2413 = vmatprep.subr.bf16.mxu0 0
    %2414 = vmatpush1.bf16.msra.mxu0 0
    %2415 = vmatprep.subr.bf16.mxu0 0
    %2416 = vmatpush1.bf16.msra.mxu0 0
    %2417 = vmatprep.subr.bf16.mxu0 0
    %2418 = vmatpush1.bf16.msra.mxu0 0
    %2419 = vmatprep.subr.bf16.mxu0 0
    %2420 = vmatpush1.bf16.msra.mxu0 0
    %2421 = vmatprep.subr.bf16.mxu0 0
    %2422 = vmatpush1.bf16.msra.mxu0 0
    %2423 = vmatprep.subr.bf16.mxu0 0
    %2424 = vmatpush1.bf16.msra.mxu0 0
    %2425 = vmatprep.subr.bf16.mxu0 0
    %2426 = vmatpush1.bf16.msra.mxu0 0
    %2427 = vmatprep.subr.bf16.mxu0 0
    %2428 = vmatpush1.bf16.msra.mxu0 0
    %2429 = vmatprep.subr.bf16.mxu0 0
    %2430 = vmatpush1.bf16.msra.mxu0 0
    %2431 = vmatprep.subr.bf16.mxu0 0
    %2432 = vmatpush1.bf16.msra.mxu0 0
    %2433 = vmatprep.subr.bf16.mxu0 0
    %2434 = vmatpush1.bf16.msra.mxu0 0
    %2435 = vmatprep.mubr.bf16.mxu0 0
    %2436 = vmatmul.mubr.bf16.gmra.mrb[0].mxu0 %v2398
    %v2437 = vpop.f32.mrb[0].mxu0
    %v2438 = vadd.f32 0.0, %v2437
    %v2439 = vpop.f32.mrb[0].mxu0
    %v2440 = vpop.f32.mrb[0].mxu0
    %v2441 = vadd.f32 0.0, %v2440
    %v2442 = vpop.f32.mrb[0].mxu0
    %2443 = vmatprep.mubr.bf16.mxu0 0
    %2444 = vmatmul.mubr.bf16.gmra.mrb[0].mxu0 %v2401
    %v2445 = vpop.f32.mrb[0].mxu0
    %v2446 = vadd.f32 0.0, %v2445
    %v2447 = vpop.f32.mrb[0].mxu0
    %v2448 = vpop.f32.mrb[0].mxu0
    %v2449 = vadd.f32 0.0, %v2448
    %v2450 = vpop.f32.mrb[0].mxu0
    %2451 = vdwg.mxu0
    %v2452 = vlaneseq
    %v2453 = vshrl.u32 %v2452, 7
    %v2454 = vsub.s32 5, %v2453
    %v2455 = vrot.slane %v175, %v2454
    %v2456 = vadd.f32 %v2438, %v2455
    %v2457 = vadd.f32 %v2441, %v2455
    %v2458 = vadd.f32 %v2446, %v2455
    %v2459 = vadd.f32 %v2449, %v2455
    %v2460 = vlaneseq
    %v2461 = vshrl.u32 %v2460, 7
    %v2462 = vsub.s32 6, %v2461
    %v2463 = vrot.slane %v175, %v2462
    %2465 = vrot.lane.b32.xlu0 %v2463, 32
    %v2466 = vpop.permute.xlu0 %2465
    %v2468 = vadd.f32 %v2438, %v2466
    %v2469 = vadd.f32 %v2441, %v2466
    %v2470 = vadd.f32 %v2446, %v2466
    %v2471 = vadd.f32 %v2449, %v2466
    %v2472 = vpack.c.bf16 %v2365, %v2365
    %v2473 = vpack.c.bf16 %v2368, %v2368
    %v2474 = vpack.c.bf16 %v2373, %v2373
    %v2475 = vpack.c.bf16 %v2376, %v2376
    %v2476 = vpack.c.bf16 %v2456, %v2456
    %v2477 = vpack.c.bf16 %v2457, %v2457
    %v2478 = vpack.c.bf16 %v2458, %v2458
    %v2479 = vpack.c.bf16 %v2459, %v2459
    %v2480 = vpack.c.bf16 %v2468, %v2468
    %v2481 = vpack.c.bf16 %v2469, %v2469
    %v2482 = vpack.c.bf16 %v2470, %v2470
    %v2483 = vpack.c.bf16 %v2471, %v2471
    %v2485 = vsel %vm318, %v2472, 0
    %v2488 = vsel %vm318, %v2476, 0
    %2490 = vmatprep.subr.bf16.mxu0 0
    %2491 = vmatpush1.bf16.xpose.msra.mxu0 %v2488
    %2492 = vmatprep.subr.bf16.mxu0 0
    %2493 = vmatpush1.bf16.xpose.msra.mxu0 0
    %2494 = vmatprep.subr.bf16.mxu0 0
    %2495 = vmatpush1.bf16.xpose.msra.mxu0 0
    %2496 = vmatprep.subr.bf16.mxu0 0
    %2497 = vmatpush1.bf16.xpose.msra.mxu0 0
    %2498 = vmatprep.subr.bf16.mxu0 0
    %2499 = vmatpush1.bf16.xpose.msra.mxu0 0
    %2500 = vmatprep.subr.bf16.mxu0 0
    %2501 = vmatpush1.bf16.xpose.msra.mxu0 0
    %2502 = vmatprep.subr.bf16.mxu0 0
    %2503 = vmatpush1.bf16.xpose.msra.mxu0 0
    %2504 = vmatprep.subr.bf16.mxu0 0
    %2505 = vmatpush1.bf16.xpose.msra.mxu0 0
    %2506 = vmatprep.subr.bf16.mxu0 0
    %2507 = vmatpush1.bf16.xpose.msra.mxu0 0
    %2508 = vmatprep.subr.bf16.mxu0 0
    %2509 = vmatpush1.bf16.xpose.msra.mxu0 0
    %2510 = vmatprep.subr.bf16.mxu0 0
    %2511 = vmatpush1.bf16.xpose.msra.mxu0 0
    %2512 = vmatprep.subr.bf16.mxu0 0
    %2513 = vmatpush1.bf16.xpose.msra.mxu0 0
    %2514 = vmatprep.subr.bf16.mxu0 0
    %2515 = vmatpush1.bf16.xpose.msra.mxu0 0
    %2516 = vmatprep.subr.bf16.mxu0 0
    %2517 = vmatpush1.bf16.xpose.msra.mxu0 0
    %2518 = vmatprep.subr.bf16.mxu0 0
    %2519 = vmatpush1.bf16.xpose.msra.mxu0 0
    %2520 = vmatprep.subr.bf16.mxu0 0
    %2521 = vmatpush1.bf16.xpose.msra.mxu0 0
    %2522 = vmatprep.mubr.bf16.mxu0 0
    %2523 = vmatmul.mubr.bf16.gmra.mrb[0].mxu0 %v2485
    %v2524 = vpop.f32.mrb[0].mxu0
    %v2525 = vadd.f32 %v195, %v2524
    %v2526 = vpop.f32.mrb[0].mxu0
    %v2527 = vpop.f32.mrb[0].mxu0
    %v2528 = vpop.f32.mrb[0].mxu0
    %2529 = vdwg.mxu0
    %v2531 = vsel %vm318, %v2473, 0
    %v2534 = vsel %vm318, %v2477, 0
    %2536 = vmatprep.subr.bf16.mxu0 0
    %2537 = vmatpush1.bf16.xpose.msra.mxu0 %v2534
    %2538 = vmatprep.subr.bf16.mxu0 0
    %2539 = vmatpush1.bf16.xpose.msra.mxu0 0
    %2540 = vmatprep.subr.bf16.mxu0 0
    %2541 = vmatpush1.bf16.xpose.msra.mxu0 0
    %2542 = vmatprep.subr.bf16.mxu0 0
    %2543 = vmatpush1.bf16.xpose.msra.mxu0 0
    %2544 = vmatprep.subr.bf16.mxu0 0
    %2545 = vmatpush1.bf16.xpose.msra.mxu0 0
    %2546 = vmatprep.subr.bf16.mxu0 0
    %2547 = vmatpush1.bf16.xpose.msra.mxu0 0
    %2548 = vmatprep.subr.bf16.mxu0 0
    %2549 = vmatpush1.bf16.xpose.msra.mxu0 0
    %2550 = vmatprep.subr.bf16.mxu0 0
    %2551 = vmatpush1.bf16.xpose.msra.mxu0 0
    %2552 = vmatprep.subr.bf16.mxu0 0
    %2553 = vmatpush1.bf16.xpose.msra.mxu0 0
    %2554 = vmatprep.subr.bf16.mxu0 0
    %2555 = vmatpush1.bf16.xpose.msra.mxu0 0
    %2556 = vmatprep.subr.bf16.mxu0 0
    %2557 = vmatpush1.bf16.xpose.msra.mxu0 0
    %2558 = vmatprep.subr.bf16.mxu0 0
    %2559 = vmatpush1.bf16.xpose.msra.mxu0 0
    %2560 = vmatprep.subr.bf16.mxu0 0
    %2561 = vmatpush1.bf16.xpose.msra.mxu0 0
    %2562 = vmatprep.subr.bf16.mxu0 0
    %2563 = vmatpush1.bf16.xpose.msra.mxu0 0
    %2564 = vmatprep.subr.bf16.mxu0 0
    %2565 = vmatpush1.bf16.xpose.msra.mxu0 0
    %2566 = vmatprep.subr.bf16.mxu0 0
    %2567 = vmatpush1.bf16.xpose.msra.mxu0 0
    %2568 = vmatprep.mubr.bf16.mxu0 0
    %2569 = vmatmul.mubr.bf16.gmra.mrb[0].mxu0 %v2531
    %v2570 = vpop.f32.mrb[0].mxu0
    %v2571 = vadd.f32 %v196, %v2570
    %v2572 = vpop.f32.mrb[0].mxu0
    %v2573 = vpop.f32.mrb[0].mxu0
    %v2574 = vpop.f32.mrb[0].mxu0
    %2575 = vdwg.mxu0
    %v2577 = vsel %vm318, %v2474, 0
    %v2580 = vsel %vm318, %v2478, 0
    %2582 = vmatprep.subr.bf16.mxu0 0
    %2583 = vmatpush1.bf16.xpose.msra.mxu0 %v2580
    %2584 = vmatprep.subr.bf16.mxu0 0
    %2585 = vmatpush1.bf16.xpose.msra.mxu0 0
    %2586 = vmatprep.subr.bf16.mxu0 0
    %2587 = vmatpush1.bf16.xpose.msra.mxu0 0
    %2588 = vmatprep.subr.bf16.mxu0 0
    %2589 = vmatpush1.bf16.xpose.msra.mxu0 0
    %2590 = vmatprep.subr.bf16.mxu0 0
    %2591 = vmatpush1.bf16.xpose.msra.mxu0 0
    %2592 = vmatprep.subr.bf16.mxu0 0
    %2593 = vmatpush1.bf16.xpose.msra.mxu0 0
    %2594 = vmatprep.subr.bf16.mxu0 0
    %2595 = vmatpush1.bf16.xpose.msra.mxu0 0
    %2596 = vmatprep.subr.bf16.mxu0 0
    %2597 = vmatpush1.bf16.xpose.msra.mxu0 0
    %2598 = vmatprep.subr.bf16.mxu0 0
    %2599 = vmatpush1.bf16.xpose.msra.mxu0 0
    %2600 = vmatprep.subr.bf16.mxu0 0
    %2601 = vmatpush1.bf16.xpose.msra.mxu0 0
    %2602 = vmatprep.subr.bf16.mxu0 0
    %2603 = vmatpush1.bf16.xpose.msra.mxu0 0
    %2604 = vmatprep.subr.bf16.mxu0 0
    %2605 = vmatpush1.bf16.xpose.msra.mxu0 0
    %2606 = vmatprep.subr.bf16.mxu0 0
    %2607 = vmatpush1.bf16.xpose.msra.mxu0 0
    %2608 = vmatprep.subr.bf16.mxu0 0
    %2609 = vmatpush1.bf16.xpose.msra.mxu0 0
    %2610 = vmatprep.subr.bf16.mxu0 0
    %2611 = vmatpush1.bf16.xpose.msra.mxu0 0
    %2612 = vmatprep.subr.bf16.mxu0 0
    %2613 = vmatpush1.bf16.xpose.msra.mxu0 0
    %2614 = vmatprep.mubr.bf16.mxu0 0
    %2615 = vmatmul.mubr.bf16.gmra.mrb[0].mxu0 %v2577
    %v2616 = vpop.f32.mrb[0].mxu0
    %v2617 = vadd.f32 %v195, %v2616
    %v2618 = vpop.f32.mrb[0].mxu0
    %v2619 = vpop.f32.mrb[0].mxu0
    %v2620 = vpop.f32.mrb[0].mxu0
    %2621 = vdwg.mxu0
    %v2623 = vsel %vm318, %v2475, 0
    %v2626 = vsel %vm318, %v2479, 0
    %2628 = vmatprep.subr.bf16.mxu0 0
    %2629 = vmatpush1.bf16.xpose.msra.mxu0 %v2626
    %2630 = vmatprep.subr.bf16.mxu0 0
    %2631 = vmatpush1.bf16.xpose.msra.mxu0 0
    %2632 = vmatprep.subr.bf16.mxu0 0
    %2633 = vmatpush1.bf16.xpose.msra.mxu0 0
    %2634 = vmatprep.subr.bf16.mxu0 0
    %2635 = vmatpush1.bf16.xpose.msra.mxu0 0
    %2636 = vmatprep.subr.bf16.mxu0 0
    %2637 = vmatpush1.bf16.xpose.msra.mxu0 0
    %2638 = vmatprep.subr.bf16.mxu0 0
    %2639 = vmatpush1.bf16.xpose.msra.mxu0 0
    %2640 = vmatprep.subr.bf16.mxu0 0
    %2641 = vmatpush1.bf16.xpose.msra.mxu0 0
    %2642 = vmatprep.subr.bf16.mxu0 0
    %2643 = vmatpush1.bf16.xpose.msra.mxu0 0
    %2644 = vmatprep.subr.bf16.mxu0 0
    %2645 = vmatpush1.bf16.xpose.msra.mxu0 0
    %2646 = vmatprep.subr.bf16.mxu0 0
    %2647 = vmatpush1.bf16.xpose.msra.mxu0 0
    %2648 = vmatprep.subr.bf16.mxu0 0
    %2649 = vmatpush1.bf16.xpose.msra.mxu0 0
    %2650 = vmatprep.subr.bf16.mxu0 0
    %2651 = vmatpush1.bf16.xpose.msra.mxu0 0
    %2652 = vmatprep.subr.bf16.mxu0 0
    %2653 = vmatpush1.bf16.xpose.msra.mxu0 0
    %2654 = vmatprep.subr.bf16.mxu0 0
    %2655 = vmatpush1.bf16.xpose.msra.mxu0 0
    %2656 = vmatprep.subr.bf16.mxu0 0
    %2657 = vmatpush1.bf16.xpose.msra.mxu0 0
    %2658 = vmatprep.subr.bf16.mxu0 0
    %2659 = vmatpush1.bf16.xpose.msra.mxu0 0
    %2660 = vmatprep.mubr.bf16.mxu0 0
    %2661 = vmatmul.mubr.bf16.gmra.mrb[0].mxu0 %v2623
    %v2662 = vpop.f32.mrb[0].mxu0
    %v2663 = vadd.f32 %v196, %v2662
    %v2664 = vpop.f32.mrb[0].mxu0
    %v2665 = vpop.f32.mrb[0].mxu0
    %v2666 = vpop.f32.mrb[0].mxu0
    %2667 = vdwg.mxu0
    %v2668 = vsel %vm318, %v2525, -inf
    %2669 = vmax.xlane.f32.xlu0 %v2668
    %v2670 = vpop.xlane.xlu0 %2669
    %v2671 = vsel %vm318, %v2571, -inf
    %2672 = vmax.xlane.f32.xlu0 %v2671
    %v2673 = vpop.xlane.xlu0 %2672
    %v2674 = vsel %vm318, %v2617, -inf
    %2675 = vmax.xlane.f32.xlu0 %v2674
    %v2676 = vpop.xlane.xlu0 %2675
    %v2677 = vsel %vm318, %v2663, -inf
    %2678 = vmax.xlane.f32.xlu0 %v2677
    %v2679 = vpop.xlane.xlu0 %2678
    %v2680 = vsub.f32 %v2525, %v2670
    %v2681 = vsub.f32 %v2571, %v2673
    %v2682 = vsub.f32 %v2617, %v2676
    %v2683 = vsub.f32 %v2663, %v2679
    %v2684 = vmul.f32 %v2680, 1.442695
    %v2685 = vpow.pop %v2684
    %v2686 = vmul.f32 %v2681, 1.442695
    %v2687 = vpow.pop %v2686
    %v2688 = vmul.f32 %v2682, 1.442695
    %v2689 = vpow.pop %v2688
    %v2690 = vmul.f32 %v2683, 1.442695
    %v2691 = vpow.pop %v2690
    %v2692 = vsel %vm318, %v2685, 0.0
    %2693 = vadd.xlane.f32.xlu0 %v2692
    %v2694 = vpop.xlane.xlu0 %2693
    %v2695 = vsel %vm318, %v2687, 0.0
    %2696 = vadd.xlane.f32.xlu0 %v2695
    %v2697 = vpop.xlane.xlu0 %2696
    %v2698 = vsel %vm318, %v2689, 0.0
    %2699 = vadd.xlane.f32.xlu0 %v2698
    %v2700 = vpop.xlane.xlu0 %2699
    %v2701 = vsel %vm318, %v2691, 0.0
    %2702 = vadd.xlane.f32.xlu0 %v2701
    %v2703 = vpop.xlane.xlu0 %2702
    %v2704 = vrcp.pop %v2694
    %v2705 = vmul.f32 %v2685, %v2704
    %v2706 = vrcp.pop %v2697
    %v2707 = vmul.f32 %v2687, %v2706
    %v2708 = vrcp.pop %v2700
    %v2709 = vmul.f32 %v2689, %v2708
    %v2710 = vrcp.pop %v2703
    %v2711 = vmul.f32 %v2691, %v2710
    %v2712 = vpack.c.bf16 %v2705, %v2705
    %v2713 = vpack.c.bf16 %v2707, %v2707
    %v2714 = vpack.c.bf16 %v2709, %v2709
    %v2715 = vpack.c.bf16 %v2711, %v2711
    %2717 = vrot.lane.b32.xlu0 %v2480, 96
    %v2718 = vpop.permute.xlu0 %2717
    %v2720 = vsel %vm318, %v2712, 0
    %v2723 = vsel %vm566, %v2718, 0
    %2725 = vmatprep.subr.bf16.mxu0 0
    %2726 = vmatpush1.bf16.msra.mxu0 %v2723
    %2727 = vmatprep.subr.bf16.mxu0 0
    %2728 = vmatpush1.bf16.msra.mxu0 0
    %2729 = vmatprep.subr.bf16.mxu0 0
    %2730 = vmatpush1.bf16.msra.mxu0 0
    %2731 = vmatprep.subr.bf16.mxu0 0
    %2732 = vmatpush1.bf16.msra.mxu0 0
    %2733 = vmatprep.subr.bf16.mxu0 0
    %2734 = vmatpush1.bf16.msra.mxu0 0
    %2735 = vmatprep.subr.bf16.mxu0 0
    %2736 = vmatpush1.bf16.msra.mxu0 0
    %2737 = vmatprep.subr.bf16.mxu0 0
    %2738 = vmatpush1.bf16.msra.mxu0 0
    %2739 = vmatprep.subr.bf16.mxu0 0
    %2740 = vmatpush1.bf16.msra.mxu0 0
    %2741 = vmatprep.subr.bf16.mxu0 0
    %2742 = vmatpush1.bf16.msra.mxu0 0
    %2743 = vmatprep.subr.bf16.mxu0 0
    %2744 = vmatpush1.bf16.msra.mxu0 0
    %2745 = vmatprep.subr.bf16.mxu0 0
    %2746 = vmatpush1.bf16.msra.mxu0 0
    %2747 = vmatprep.subr.bf16.mxu0 0
    %2748 = vmatpush1.bf16.msra.mxu0 0
    %2749 = vmatprep.subr.bf16.mxu0 0
    %2750 = vmatpush1.bf16.msra.mxu0 0
    %2751 = vmatprep.subr.bf16.mxu0 0
    %2752 = vmatpush1.bf16.msra.mxu0 0
    %2753 = vmatprep.subr.bf16.mxu0 0
    %2754 = vmatpush1.bf16.msra.mxu0 0
    %2755 = vmatprep.subr.bf16.mxu0 0
    %2756 = vmatpush1.bf16.msra.mxu0 0
    %2757 = vmatprep.mubr.bf16.mxu0 0
    %2758 = vmatmul.mubr.bf16.gmra.mrb[0].mxu0 %v2720
    %v2759 = vpop.f32.mrb[0].mxu0
    %v2760 = vadd.f32 0.0, %v2759
    %v2761 = vpop.f32.mrb[0].mxu0
    %v2762 = vpop.f32.mrb[0].mxu0
    %v2763 = vpop.f32.mrb[0].mxu0
    %2764 = vdwg.mxu0
    %2766 = vrot.lane.b32.xlu0 %v2481, 96
    %v2767 = vpop.permute.xlu0 %2766
    %v2769 = vsel %vm318, %v2713, 0
    %v2772 = vsel %vm566, %v2767, 0
    %2774 = vmatprep.subr.bf16.mxu0 0
    %2775 = vmatpush1.bf16.msra.mxu0 %v2772
    %2776 = vmatprep.subr.bf16.mxu0 0
    %2777 = vmatpush1.bf16.msra.mxu0 0
    %2778 = vmatprep.subr.bf16.mxu0 0
    %2779 = vmatpush1.bf16.msra.mxu0 0
    %2780 = vmatprep.subr.bf16.mxu0 0
    %2781 = vmatpush1.bf16.msra.mxu0 0
    %2782 = vmatprep.subr.bf16.mxu0 0
    %2783 = vmatpush1.bf16.msra.mxu0 0
    %2784 = vmatprep.subr.bf16.mxu0 0
    %2785 = vmatpush1.bf16.msra.mxu0 0
    %2786 = vmatprep.subr.bf16.mxu0 0
    %2787 = vmatpush1.bf16.msra.mxu0 0
    %2788 = vmatprep.subr.bf16.mxu0 0
    %2789 = vmatpush1.bf16.msra.mxu0 0
    %2790 = vmatprep.subr.bf16.mxu0 0
    %2791 = vmatpush1.bf16.msra.mxu0 0
    %2792 = vmatprep.subr.bf16.mxu0 0
    %2793 = vmatpush1.bf16.msra.mxu0 0
    %2794 = vmatprep.subr.bf16.mxu0 0
    %2795 = vmatpush1.bf16.msra.mxu0 0
    %2796 = vmatprep.subr.bf16.mxu0 0
    %2797 = vmatpush1.bf16.msra.mxu0 0
    %2798 = vmatprep.subr.bf16.mxu0 0
    %2799 = vmatpush1.bf16.msra.mxu0 0
    %2800 = vmatprep.subr.bf16.mxu0 0
    %2801 = vmatpush1.bf16.msra.mxu0 0
    %2802 = vmatprep.subr.bf16.mxu0 0
    %2803 = vmatpush1.bf16.msra.mxu0 0
    %2804 = vmatprep.subr.bf16.mxu0 0
    %2805 = vmatpush1.bf16.msra.mxu0 0
    %2806 = vmatprep.mubr.bf16.mxu0 0
    %2807 = vmatmul.mubr.bf16.gmra.mrb[0].mxu0 %v2769
    %v2808 = vpop.f32.mrb[0].mxu0
    %v2809 = vadd.f32 0.0, %v2808
    %v2810 = vpop.f32.mrb[0].mxu0
    %v2811 = vpop.f32.mrb[0].mxu0
    %v2812 = vpop.f32.mrb[0].mxu0
    %2813 = vdwg.mxu0
    %2815 = vrot.lane.b32.xlu0 %v2482, 96
    %v2816 = vpop.permute.xlu0 %2815
    %v2818 = vsel %vm318, %v2714, 0
    %v2821 = vsel %vm566, %v2816, 0
    %2823 = vmatprep.subr.bf16.mxu0 0
    %2824 = vmatpush1.bf16.msra.mxu0 %v2821
    %2825 = vmatprep.subr.bf16.mxu0 0
    %2826 = vmatpush1.bf16.msra.mxu0 0
    %2827 = vmatprep.subr.bf16.mxu0 0
    %2828 = vmatpush1.bf16.msra.mxu0 0
    %2829 = vmatprep.subr.bf16.mxu0 0
    %2830 = vmatpush1.bf16.msra.mxu0 0
    %2831 = vmatprep.subr.bf16.mxu0 0
    %2832 = vmatpush1.bf16.msra.mxu0 0
    %2833 = vmatprep.subr.bf16.mxu0 0
    %2834 = vmatpush1.bf16.msra.mxu0 0
    %2835 = vmatprep.subr.bf16.mxu0 0
    %2836 = vmatpush1.bf16.msra.mxu0 0
    %2837 = vmatprep.subr.bf16.mxu0 0
    %2838 = vmatpush1.bf16.msra.mxu0 0
    %2839 = vmatprep.subr.bf16.mxu0 0
    %2840 = vmatpush1.bf16.msra.mxu0 0
    %2841 = vmatprep.subr.bf16.mxu0 0
    %2842 = vmatpush1.bf16.msra.mxu0 0
    %2843 = vmatprep.subr.bf16.mxu0 0
    %2844 = vmatpush1.bf16.msra.mxu0 0
    %2845 = vmatprep.subr.bf16.mxu0 0
    %2846 = vmatpush1.bf16.msra.mxu0 0
    %2847 = vmatprep.subr.bf16.mxu0 0
    %2848 = vmatpush1.bf16.msra.mxu0 0
    %2849 = vmatprep.subr.bf16.mxu0 0
    %2850 = vmatpush1.bf16.msra.mxu0 0
    %2851 = vmatprep.subr.bf16.mxu0 0
    %2852 = vmatpush1.bf16.msra.mxu0 0
    %2853 = vmatprep.subr.bf16.mxu0 0
    %2854 = vmatpush1.bf16.msra.mxu0 0
    %2855 = vmatprep.mubr.bf16.mxu0 0
    %2856 = vmatmul.mubr.bf16.gmra.mrb[0].mxu0 %v2818
    %v2857 = vpop.f32.mrb[0].mxu0
    %v2858 = vadd.f32 0.0, %v2857
    %v2859 = vpop.f32.mrb[0].mxu0
    %v2860 = vpop.f32.mrb[0].mxu0
    %v2861 = vpop.f32.mrb[0].mxu0
    %2862 = vdwg.mxu0
    %2864 = vrot.lane.b32.xlu0 %v2483, 96
    %v2865 = vpop.permute.xlu0 %2864
    %v2867 = vsel %vm318, %v2715, 0
    %v2870 = vsel %vm566, %v2865, 0
    %2872 = vmatprep.subr.bf16.mxu0 0
    %2873 = vmatpush1.bf16.msra.mxu0 %v2870
    %2874 = vmatprep.subr.bf16.mxu0 0
    %2875 = vmatpush1.bf16.msra.mxu0 0
    %2876 = vmatprep.subr.bf16.mxu0 0
    %2877 = vmatpush1.bf16.msra.mxu0 0
    %2878 = vmatprep.subr.bf16.mxu0 0
    %2879 = vmatpush1.bf16.msra.mxu0 0
    %2880 = vmatprep.subr.bf16.mxu0 0
    %2881 = vmatpush1.bf16.msra.mxu0 0
    %2882 = vmatprep.subr.bf16.mxu0 0
    %2883 = vmatpush1.bf16.msra.mxu0 0
    %2884 = vmatprep.subr.bf16.mxu0 0
    %2885 = vmatpush1.bf16.msra.mxu0 0
    %2886 = vmatprep.subr.bf16.mxu0 0
    %2887 = vmatpush1.bf16.msra.mxu0 0
    %2888 = vmatprep.subr.bf16.mxu0 0
    %2889 = vmatpush1.bf16.msra.mxu0 0
    %2890 = vmatprep.subr.bf16.mxu0 0
    %2891 = vmatpush1.bf16.msra.mxu0 0
    %2892 = vmatprep.subr.bf16.mxu0 0
    %2893 = vmatpush1.bf16.msra.mxu0 0
    %2894 = vmatprep.subr.bf16.mxu0 0
    %2895 = vmatpush1.bf16.msra.mxu0 0
    %2896 = vmatprep.subr.bf16.mxu0 0
    %2897 = vmatpush1.bf16.msra.mxu0 0
    %2898 = vmatprep.subr.bf16.mxu0 0
    %2899 = vmatpush1.bf16.msra.mxu0 0
    %2900 = vmatprep.subr.bf16.mxu0 0
    %2901 = vmatpush1.bf16.msra.mxu0 0
    %2902 = vmatprep.subr.bf16.mxu0 0
    %2903 = vmatpush1.bf16.msra.mxu0 0
    %2904 = vmatprep.mubr.bf16.mxu0 0
    %2905 = vmatmul.mubr.bf16.gmra.mrb[0].mxu0 %v2867
    %v2906 = vpop.f32.mrb[0].mxu0
    %v2907 = vadd.f32 0.0, %v2906
    %v2908 = vpop.f32.mrb[0].mxu0
    %v2909 = vpop.f32.mrb[0].mxu0
    %v2910 = vpop.f32.mrb[0].mxu0
    %2911 = vdwg.mxu0
    %2912 = vst.msk [vmem:[#allocation2] sm:$0xff] %vm318, %v2760
    %2913 = vst.msk [vmem:[#allocation2 + $0x8] sm:$0xff] %vm318, %v2809
    %2914 = vst.msk [vmem:[#allocation2 + $0x10] sm:$0xff] %vm318, %v2858
    %2915 = vst.msk [vmem:[#allocation2 + $0x18] sm:$0xff] %vm318, %v2907
    %2917 = vrot.lane.b32.xlu0 %v2472, 120
    %v2918 = vpop.permute.xlu0 %2917
    %2920 = vrot.lane.b32.xlu0 %v2476, 120
    %v2921 = vpop.permute.xlu0 %2920
    %v2923 = vsel %vm318, %v2918, 0
    %v2926 = vsel %vm318, %v2921, 0
    %2928 = vmatprep.subr.bf16.mxu0 0
    %2929 = vmatpush1.bf16.xpose.msra.mxu0 %v2926
    %2930 = vmatprep.subr.bf16.mxu0 0
    %2931 = vmatpush1.bf16.xpose.msra.mxu0 0
    %2932 = vmatprep.subr.bf16.mxu0 0
    %2933 = vmatpush1.bf16.xpose.msra.mxu0 0
    %2934 = vmatprep.subr.bf16.mxu0 0
    %2935 = vmatpush1.bf16.xpose.msra.mxu0 0
    %2936 = vmatprep.subr.bf16.mxu0 0
    %2937 = vmatpush1.bf16.xpose.msra.mxu0 0
    %2938 = vmatprep.subr.bf16.mxu0 0
    %2939 = vmatpush1.bf16.xpose.msra.mxu0 0
    %2940 = vmatprep.subr.bf16.mxu0 0
    %2941 = vmatpush1.bf16.xpose.msra.mxu0 0
    %2942 = vmatprep.subr.bf16.mxu0 0
    %2943 = vmatpush1.bf16.xpose.msra.mxu0 0
    %2944 = vmatprep.subr.bf16.mxu0 0
    %2945 = vmatpush1.bf16.xpose.msra.mxu0 0
    %2946 = vmatprep.subr.bf16.mxu0 0
    %2947 = vmatpush1.bf16.xpose.msra.mxu0 0
    %2948 = vmatprep.subr.bf16.mxu0 0
    %2949 = vmatpush1.bf16.xpose.msra.mxu0 0
    %2950 = vmatprep.subr.bf16.mxu0 0
    %2951 = vmatpush1.bf16.xpose.msra.mxu0 0
    %2952 = vmatprep.subr.bf16.mxu0 0
    %2953 = vmatpush1.bf16.xpose.msra.mxu0 0
    %2954 = vmatprep.subr.bf16.mxu0 0
    %2955 = vmatpush1.bf16.xpose.msra.mxu0 0
    %2956 = vmatprep.subr.bf16.mxu0 0
    %2957 = vmatpush1.bf16.xpose.msra.mxu0 0
    %2958 = vmatprep.subr.bf16.mxu0 0
    %2959 = vmatpush1.bf16.xpose.msra.mxu0 0
    %2960 = vmatprep.mubr.bf16.mxu0 0
    %2961 = vmatmul.mubr.bf16.gmra.mrb[0].mxu0 %v2923
    %v2962 = vpop.f32.mrb[0].mxu0
    %v2963 = vadd.f32 %v195, %v2962
    %v2964 = vpop.f32.mrb[0].mxu0
    %v2965 = vpop.f32.mrb[0].mxu0
    %v2966 = vpop.f32.mrb[0].mxu0
    %2967 = vdwg.mxu0
    %2969 = vrot.lane.b32.xlu0 %v2473, 120
    %v2970 = vpop.permute.xlu0 %2969
    %2972 = vrot.lane.b32.xlu0 %v2477, 120
    %v2973 = vpop.permute.xlu0 %2972
    %v2975 = vsel %vm318, %v2970, 0
    %v2978 = vsel %vm318, %v2973, 0
    %2980 = vmatprep.subr.bf16.mxu0 0
    %2981 = vmatpush1.bf16.xpose.msra.mxu0 %v2978
    %2982 = vmatprep.subr.bf16.mxu0 0
    %2983 = vmatpush1.bf16.xpose.msra.mxu0 0
    %2984 = vmatprep.subr.bf16.mxu0 0
    %2985 = vmatpush1.bf16.xpose.msra.mxu0 0
    %2986 = vmatprep.subr.bf16.mxu0 0
    %2987 = vmatpush1.bf16.xpose.msra.mxu0 0
    %2988 = vmatprep.subr.bf16.mxu0 0
    %2989 = vmatpush1.bf16.xpose.msra.mxu0 0
    %2990 = vmatprep.subr.bf16.mxu0 0
    %2991 = vmatpush1.bf16.xpose.msra.mxu0 0
    %2992 = vmatprep.subr.bf16.mxu0 0
    %2993 = vmatpush1.bf16.xpose.msra.mxu0 0
    %2994 = vmatprep.subr.bf16.mxu0 0
    %2995 = vmatpush1.bf16.xpose.msra.mxu0 0
    %2996 = vmatprep.subr.bf16.mxu0 0
    %2997 = vmatpush1.bf16.xpose.msra.mxu0 0
    %2998 = vmatprep.subr.bf16.mxu0 0
    %2999 = vmatpush1.bf16.xpose.msra.mxu0 0
    %3000 = vmatprep.subr.bf16.mxu0 0
    %3001 = vmatpush1.bf16.xpose.msra.mxu0 0
    %3002 = vmatprep.subr.bf16.mxu0 0
    %3003 = vmatpush1.bf16.xpose.msra.mxu0 0
    %3004 = vmatprep.subr.bf16.mxu0 0
    %3005 = vmatpush1.bf16.xpose.msra.mxu0 0
    %3006 = vmatprep.subr.bf16.mxu0 0
    %3007 = vmatpush1.bf16.xpose.msra.mxu0 0
    %3008 = vmatprep.subr.bf16.mxu0 0
    %3009 = vmatpush1.bf16.xpose.msra.mxu0 0
    %3010 = vmatprep.subr.bf16.mxu0 0
    %3011 = vmatpush1.bf16.xpose.msra.mxu0 0
    %3012 = vmatprep.mubr.bf16.mxu0 0
    %3013 = vmatmul.mubr.bf16.gmra.mrb[0].mxu0 %v2975
    %v3014 = vpop.f32.mrb[0].mxu0
    %v3015 = vadd.f32 %v196, %v3014
    %v3016 = vpop.f32.mrb[0].mxu0
    %v3017 = vpop.f32.mrb[0].mxu0
    %v3018 = vpop.f32.mrb[0].mxu0
    %3019 = vdwg.mxu0
    %3021 = vrot.lane.b32.xlu0 %v2474, 120
    %v3022 = vpop.permute.xlu0 %3021
    %3024 = vrot.lane.b32.xlu0 %v2478, 120
    %v3025 = vpop.permute.xlu0 %3024
    %v3027 = vsel %vm318, %v3022, 0
    %v3030 = vsel %vm318, %v3025, 0
    %3032 = vmatprep.subr.bf16.mxu0 0
    %3033 = vmatpush1.bf16.xpose.msra.mxu0 %v3030
    %3034 = vmatprep.subr.bf16.mxu0 0
    %3035 = vmatpush1.bf16.xpose.msra.mxu0 0
    %3036 = vmatprep.subr.bf16.mxu0 0
    %3037 = vmatpush1.bf16.xpose.msra.mxu0 0
    %3038 = vmatprep.subr.bf16.mxu0 0
    %3039 = vmatpush1.bf16.xpose.msra.mxu0 0
    %3040 = vmatprep.subr.bf16.mxu0 0
    %3041 = vmatpush1.bf16.xpose.msra.mxu0 0
    %3042 = vmatprep.subr.bf16.mxu0 0
    %3043 = vmatpush1.bf16.xpose.msra.mxu0 0
    %3044 = vmatprep.subr.bf16.mxu0 0
    %3045 = vmatpush1.bf16.xpose.msra.mxu0 0
    %3046 = vmatprep.subr.bf16.mxu0 0
    %3047 = vmatpush1.bf16.xpose.msra.mxu0 0
    %3048 = vmatprep.subr.bf16.mxu0 0
    %3049 = vmatpush1.bf16.xpose.msra.mxu0 0
    %3050 = vmatprep.subr.bf16.mxu0 0
    %3051 = vmatpush1.bf16.xpose.msra.mxu0 0
    %3052 = vmatprep.subr.bf16.mxu0 0
    %3053 = vmatpush1.bf16.xpose.msra.mxu0 0
    %3054 = vmatprep.subr.bf16.mxu0 0
    %3055 = vmatpush1.bf16.xpose.msra.mxu0 0
    %3056 = vmatprep.subr.bf16.mxu0 0
    %3057 = vmatpush1.bf16.xpose.msra.mxu0 0
    %3058 = vmatprep.subr.bf16.mxu0 0
    %3059 = vmatpush1.bf16.xpose.msra.mxu0 0
    %3060 = vmatprep.subr.bf16.mxu0 0
    %3061 = vmatpush1.bf16.xpose.msra.mxu0 0
    %3062 = vmatprep.subr.bf16.mxu0 0
    %3063 = vmatpush1.bf16.xpose.msra.mxu0 0
    %3064 = vmatprep.mubr.bf16.mxu0 0
    %3065 = vmatmul.mubr.bf16.gmra.mrb[0].mxu0 %v3027
    %v3066 = vpop.f32.mrb[0].mxu0
    %v3067 = vadd.f32 %v195, %v3066
    %v3068 = vpop.f32.mrb[0].mxu0
    %v3069 = vpop.f32.mrb[0].mxu0
    %v3070 = vpop.f32.mrb[0].mxu0
    %3071 = vdwg.mxu0
    %3073 = vrot.lane.b32.xlu0 %v2475, 120
    %v3074 = vpop.permute.xlu0 %3073
    %3076 = vrot.lane.b32.xlu0 %v2479, 120
    %v3077 = vpop.permute.xlu0 %3076
    %v3079 = vsel %vm318, %v3074, 0
    %v3082 = vsel %vm318, %v3077, 0
    %3084 = vmatprep.subr.bf16.mxu0 0
    %3085 = vmatpush1.bf16.xpose.msra.mxu0 %v3082
    %3086 = vmatprep.subr.bf16.mxu0 0
    %3087 = vmatpush1.bf16.xpose.msra.mxu0 0
    %3088 = vmatprep.subr.bf16.mxu0 0
    %3089 = vmatpush1.bf16.xpose.msra.mxu0 0
    %3090 = vmatprep.subr.bf16.mxu0 0
    %3091 = vmatpush1.bf16.xpose.msra.mxu0 0
    %3092 = vmatprep.subr.bf16.mxu0 0
    %3093 = vmatpush1.bf16.xpose.msra.mxu0 0
    %3094 = vmatprep.subr.bf16.mxu0 0
    %3095 = vmatpush1.bf16.xpose.msra.mxu0 0
    %3096 = vmatprep.subr.bf16.mxu0 0
    %3097 = vmatpush1.bf16.xpose.msra.mxu0 0
    %3098 = vmatprep.subr.bf16.mxu0 0
    %3099 = vmatpush1.bf16.xpose.msra.mxu0 0
    %3100 = vmatprep.subr.bf16.mxu0 0
    %3101 = vmatpush1.bf16.xpose.msra.mxu0 0
    %3102 = vmatprep.subr.bf16.mxu0 0
    %3103 = vmatpush1.bf16.xpose.msra.mxu0 0
    %3104 = vmatprep.subr.bf16.mxu0 0
    %3105 = vmatpush1.bf16.xpose.msra.mxu0 0
    %3106 = vmatprep.subr.bf16.mxu0 0
    %3107 = vmatpush1.bf16.xpose.msra.mxu0 0
    %3108 = vmatprep.subr.bf16.mxu0 0
    %3109 = vmatpush1.bf16.xpose.msra.mxu0 0
    %3110 = vmatprep.subr.bf16.mxu0 0
    %3111 = vmatpush1.bf16.xpose.msra.mxu0 0
    %3112 = vmatprep.subr.bf16.mxu0 0
    %3113 = vmatpush1.bf16.xpose.msra.mxu0 0
    %3114 = vmatprep.subr.bf16.mxu0 0
    %3115 = vmatpush1.bf16.xpose.msra.mxu0 0
    %3116 = vmatprep.mubr.bf16.mxu0 0
    %3117 = vmatmul.mubr.bf16.gmra.mrb[0].mxu0 %v3079
    %v3118 = vpop.f32.mrb[0].mxu0
    %v3119 = vadd.f32 %v196, %v3118
    %v3120 = vpop.f32.mrb[0].mxu0
    %v3121 = vpop.f32.mrb[0].mxu0
    %v3122 = vpop.f32.mrb[0].mxu0
    %3123 = vdwg.mxu0
    %v3124 = vsel %vm318, %v2963, -inf
    %3125 = vmax.xlane.f32.xlu0 %v3124
    %v3126 = vpop.xlane.xlu0 %3125
    %v3127 = vsel %vm318, %v3015, -inf
    %3128 = vmax.xlane.f32.xlu0 %v3127
    %v3129 = vpop.xlane.xlu0 %3128
    %v3130 = vsel %vm318, %v3067, -inf
    %3131 = vmax.xlane.f32.xlu0 %v3130
    %v3132 = vpop.xlane.xlu0 %3131
    %v3133 = vsel %vm318, %v3119, -inf
    %3134 = vmax.xlane.f32.xlu0 %v3133
    %v3135 = vpop.xlane.xlu0 %3134
    %v3136 = vsub.f32 %v2963, %v3126
    %v3137 = vsub.f32 %v3015, %v3129
    %v3138 = vsub.f32 %v3067, %v3132
    %v3139 = vsub.f32 %v3119, %v3135
    %v3140 = vmul.f32 %v3136, 1.442695
    %v3141 = vpow.pop %v3140
    %v3142 = vmul.f32 %v3137, 1.442695
    %v3143 = vpow.pop %v3142
    %v3144 = vmul.f32 %v3138, 1.442695
    %v3145 = vpow.pop %v3144
    %v3146 = vmul.f32 %v3139, 1.442695
    %v3147 = vpow.pop %v3146
    %v3148 = vsel %vm318, %v3141, 0.0
    %3149 = vadd.xlane.f32.xlu0 %v3148
    %v3150 = vpop.xlane.xlu0 %3149
    %v3151 = vsel %vm318, %v3143, 0.0
    %3152 = vadd.xlane.f32.xlu0 %v3151
    %v3153 = vpop.xlane.xlu0 %3152
    %v3154 = vsel %vm318, %v3145, 0.0
    %3155 = vadd.xlane.f32.xlu0 %v3154
    %v3156 = vpop.xlane.xlu0 %3155
    %v3157 = vsel %vm318, %v3147, 0.0
    %3158 = vadd.xlane.f32.xlu0 %v3157
    %v3159 = vpop.xlane.xlu0 %3158
    %v3160 = vrcp.pop %v3150
    %v3161 = vmul.f32 %v3141, %v3160
    %v3162 = vrcp.pop %v3153
    %v3163 = vmul.f32 %v3143, %v3162
    %v3164 = vrcp.pop %v3156
    %v3165 = vmul.f32 %v3145, %v3164
    %v3166 = vrcp.pop %v3159
    %v3167 = vmul.f32 %v3147, %v3166
    %v3168 = vpack.c.bf16 %v3161, %v3161
    %v3169 = vpack.c.bf16 %v3163, %v3163
    %v3170 = vpack.c.bf16 %v3165, %v3165
    %v3171 = vpack.c.bf16 %v3167, %v3167
    %3172 = vrot.lane.b32.xlu0 %v2480, 88
    %v3173 = vpop.permute.xlu0 %3172
    %v3175 = vsel %vm318, %v3168, 0
    %v3178 = vsel %vm566, %v3173, 0
    %3180 = vmatprep.subr.bf16.mxu0 0
    %3181 = vmatpush1.bf16.msra.mxu0 %v3178
    %3182 = vmatprep.subr.bf16.mxu0 0
    %3183 = vmatpush1.bf16.msra.mxu0 0
    %3184 = vmatprep.subr.bf16.mxu0 0
    %3185 = vmatpush1.bf16.msra.mxu0 0
    %3186 = vmatprep.subr.bf16.mxu0 0
    %3187 = vmatpush1.bf16.msra.mxu0 0
    %3188 = vmatprep.subr.bf16.mxu0 0
    %3189 = vmatpush1.bf16.msra.mxu0 0
    %3190 = vmatprep.subr.bf16.mxu0 0
    %3191 = vmatpush1.bf16.msra.mxu0 0
    %3192 = vmatprep.subr.bf16.mxu0 0
    %3193 = vmatpush1.bf16.msra.mxu0 0
    %3194 = vmatprep.subr.bf16.mxu0 0
    %3195 = vmatpush1.bf16.msra.mxu0 0
    %3196 = vmatprep.subr.bf16.mxu0 0
    %3197 = vmatpush1.bf16.msra.mxu0 0
    %3198 = vmatprep.subr.bf16.mxu0 0
    %3199 = vmatpush1.bf16.msra.mxu0 0
    %3200 = vmatprep.subr.bf16.mxu0 0
    %3201 = vmatpush1.bf16.msra.mxu0 0
    %3202 = vmatprep.subr.bf16.mxu0 0
    %3203 = vmatpush1.bf16.msra.mxu0 0
    %3204 = vmatprep.subr.bf16.mxu0 0
    %3205 = vmatpush1.bf16.msra.mxu0 0
    %3206 = vmatprep.subr.bf16.mxu0 0
    %3207 = vmatpush1.bf16.msra.mxu0 0
    %3208 = vmatprep.subr.bf16.mxu0 0
    %3209 = vmatpush1.bf16.msra.mxu0 0
    %3210 = vmatprep.subr.bf16.mxu0 0
    %3211 = vmatpush1.bf16.msra.mxu0 0
    %3212 = vmatprep.mubr.bf16.mxu0 0
    %3213 = vmatmul.mubr.bf16.gmra.mrb[0].mxu0 %v3175
    %v3214 = vpop.f32.mrb[0].mxu0
    %v3215 = vadd.f32 0.0, %v3214
    %v3216 = vpop.f32.mrb[0].mxu0
    %v3217 = vpop.f32.mrb[0].mxu0
    %v3218 = vpop.f32.mrb[0].mxu0
    %3219 = vdwg.mxu0
    %3220 = vrot.lane.b32.xlu0 %v2481, 88
    %v3221 = vpop.permute.xlu0 %3220
    %v3223 = vsel %vm318, %v3169, 0
    %v3226 = vsel %vm566, %v3221, 0
    %3228 = vmatprep.subr.bf16.mxu0 0
    %3229 = vmatpush1.bf16.msra.mxu0 %v3226
    %3230 = vmatprep.subr.bf16.mxu0 0
    %3231 = vmatpush1.bf16.msra.mxu0 0
    %3232 = vmatprep.subr.bf16.mxu0 0
    %3233 = vmatpush1.bf16.msra.mxu0 0
    %3234 = vmatprep.subr.bf16.mxu0 0
    %3235 = vmatpush1.bf16.msra.mxu0 0
    %3236 = vmatprep.subr.bf16.mxu0 0
    %3237 = vmatpush1.bf16.msra.mxu0 0
    %3238 = vmatprep.subr.bf16.mxu0 0
    %3239 = vmatpush1.bf16.msra.mxu0 0
    %3240 = vmatprep.subr.bf16.mxu0 0
    %3241 = vmatpush1.bf16.msra.mxu0 0
    %3242 = vmatprep.subr.bf16.mxu0 0
    %3243 = vmatpush1.bf16.msra.mxu0 0
    %3244 = vmatprep.subr.bf16.mxu0 0
    %3245 = vmatpush1.bf16.msra.mxu0 0
    %3246 = vmatprep.subr.bf16.mxu0 0
    %3247 = vmatpush1.bf16.msra.mxu0 0
    %3248 = vmatprep.subr.bf16.mxu0 0
    %3249 = vmatpush1.bf16.msra.mxu0 0
    %3250 = vmatprep.subr.bf16.mxu0 0
    %3251 = vmatpush1.bf16.msra.mxu0 0
    %3252 = vmatprep.subr.bf16.mxu0 0
    %3253 = vmatpush1.bf16.msra.mxu0 0
    %3254 = vmatprep.subr.bf16.mxu0 0
    %3255 = vmatpush1.bf16.msra.mxu0 0
    %3256 = vmatprep.subr.bf16.mxu0 0
    %3257 = vmatpush1.bf16.msra.mxu0 0
    %3258 = vmatprep.subr.bf16.mxu0 0
    %3259 = vmatpush1.bf16.msra.mxu0 0
    %3260 = vmatprep.mubr.bf16.mxu0 0
    %3261 = vmatmul.mubr.bf16.gmra.mrb[0].mxu0 %v3223
    %v3262 = vpop.f32.mrb[0].mxu0
    %v3263 = vadd.f32 0.0, %v3262
    %v3264 = vpop.f32.mrb[0].mxu0
    %v3265 = vpop.f32.mrb[0].mxu0
    %v3266 = vpop.f32.mrb[0].mxu0
    %3267 = vdwg.mxu0
    %3268 = vrot.lane.b32.xlu0 %v2482, 88
    %v3269 = vpop.permute.xlu0 %3268
    %v3271 = vsel %vm318, %v3170, 0
    %v3274 = vsel %vm566, %v3269, 0
    %3276 = vmatprep.subr.bf16.mxu0 0
    %3277 = vmatpush1.bf16.msra.mxu0 %v3274
    %3278 = vmatprep.subr.bf16.mxu0 0
    %3279 = vmatpush1.bf16.msra.mxu0 0
    %3280 = vmatprep.subr.bf16.mxu0 0
    %3281 = vmatpush1.bf16.msra.mxu0 0
    %3282 = vmatprep.subr.bf16.mxu0 0
    %3283 = vmatpush1.bf16.msra.mxu0 0
    %3284 = vmatprep.subr.bf16.mxu0 0
    %3285 = vmatpush1.bf16.msra.mxu0 0
    %3286 = vmatprep.subr.bf16.mxu0 0
    %3287 = vmatpush1.bf16.msra.mxu0 0
    %3288 = vmatprep.subr.bf16.mxu0 0
    %3289 = vmatpush1.bf16.msra.mxu0 0
    %3290 = vmatprep.subr.bf16.mxu0 0
    %3291 = vmatpush1.bf16.msra.mxu0 0
    %3292 = vmatprep.subr.bf16.mxu0 0
    %3293 = vmatpush1.bf16.msra.mxu0 0
    %3294 = vmatprep.subr.bf16.mxu0 0
    %3295 = vmatpush1.bf16.msra.mxu0 0
    %3296 = vmatprep.subr.bf16.mxu0 0
    %3297 = vmatpush1.bf16.msra.mxu0 0
    %3298 = vmatprep.subr.bf16.mxu0 0
    %3299 = vmatpush1.bf16.msra.mxu0 0
    %3300 = vmatprep.subr.bf16.mxu0 0
    %3301 = vmatpush1.bf16.msra.mxu0 0
    %3302 = vmatprep.subr.bf16.mxu0 0
    %3303 = vmatpush1.bf16.msra.mxu0 0
    %3304 = vmatprep.subr.bf16.mxu0 0
    %3305 = vmatpush1.bf16.msra.mxu0 0
    %3306 = vmatprep.subr.bf16.mxu0 0
    %3307 = vmatpush1.bf16.msra.mxu0 0
    %3308 = vmatprep.mubr.bf16.mxu0 0
    %3309 = vmatmul.mubr.bf16.gmra.mrb[0].mxu0 %v3271
    %v3310 = vpop.f32.mrb[0].mxu0
    %v3311 = vadd.f32 0.0, %v3310
    %v3312 = vpop.f32.mrb[0].mxu0
    %v3313 = vpop.f32.mrb[0].mxu0
    %v3314 = vpop.f32.mrb[0].mxu0
    %3315 = vdwg.mxu0
    %3316 = vrot.lane.b32.xlu0 %v2483, 88
    %v3317 = vpop.permute.xlu0 %3316
    %v3319 = vsel %vm318, %v3171, 0
    %v3322 = vsel %vm566, %v3317, 0
    %3324 = vmatprep.subr.bf16.mxu0 0
    %3325 = vmatpush1.bf16.msra.mxu0 %v3322
    %3326 = vmatprep.subr.bf16.mxu0 0
    %3327 = vmatpush1.bf16.msra.mxu0 0
    %3328 = vmatprep.subr.bf16.mxu0 0
    %3329 = vmatpush1.bf16.msra.mxu0 0
    %3330 = vmatprep.subr.bf16.mxu0 0
    %3331 = vmatpush1.bf16.msra.mxu0 0
    %3332 = vmatprep.subr.bf16.mxu0 0
    %3333 = vmatpush1.bf16.msra.mxu0 0
    %3334 = vmatprep.subr.bf16.mxu0 0
    %3335 = vmatpush1.bf16.msra.mxu0 0
    %3336 = vmatprep.subr.bf16.mxu0 0
    %3337 = vmatpush1.bf16.msra.mxu0 0
    %3338 = vmatprep.subr.bf16.mxu0 0
    %3339 = vmatpush1.bf16.msra.mxu0 0
    %3340 = vmatprep.subr.bf16.mxu0 0
    %3341 = vmatpush1.bf16.msra.mxu0 0
    %3342 = vmatprep.subr.bf16.mxu0 0
    %3343 = vmatpush1.bf16.msra.mxu0 0
    %3344 = vmatprep.subr.bf16.mxu0 0
    %3345 = vmatpush1.bf16.msra.mxu0 0
    %3346 = vmatprep.subr.bf16.mxu0 0
    %3347 = vmatpush1.bf16.msra.mxu0 0
    %3348 = vmatprep.subr.bf16.mxu0 0
    %3349 = vmatpush1.bf16.msra.mxu0 0
    %3350 = vmatprep.subr.bf16.mxu0 0
    %3351 = vmatpush1.bf16.msra.mxu0 0
    %3352 = vmatprep.subr.bf16.mxu0 0
    %3353 = vmatpush1.bf16.msra.mxu0 0
    %3354 = vmatprep.subr.bf16.mxu0 0
    %3355 = vmatpush1.bf16.msra.mxu0 0
    %3356 = vmatprep.mubr.bf16.mxu0 0
    %3357 = vmatmul.mubr.bf16.gmra.mrb[0].mxu0 %v3319
    %v3358 = vpop.f32.mrb[0].mxu0
    %v3359 = vadd.f32 0.0, %v3358
    %v3360 = vpop.f32.mrb[0].mxu0
    %v3361 = vpop.f32.mrb[0].mxu0
    %v3362 = vpop.f32.mrb[0].mxu0
    %3363 = vdwg.mxu0
    %3368 = vrot.lane.b32.xlu0 %v3215, 8
    %v3369 = vpop.permute.xlu0 %3368
    %3370 = vrot.lane.b32.xlu0 %v3263, 8
    %v3371 = vpop.permute.xlu0 %3370
    %3372 = vrot.lane.b32.xlu0 %v3311, 8
    %v3373 = vpop.permute.xlu0 %3372
    %3374 = vrot.lane.b32.xlu0 %v3359, 8
    %v3375 = vpop.permute.xlu0 %3374
    %3380 = vst.msk [vmem:[#allocation2] sm:$0xff] %vm1221, %v3369
    %3381 = vst.msk [vmem:[#allocation2 + $0x8] sm:$0xff] %vm1221, %v3371
    %3382 = vst.msk [vmem:[#allocation2 + $0x10] sm:$0xff] %vm1221, %v3373
    %3383 = vst.msk [vmem:[#allocation2 + $0x18] sm:$0xff] %vm1221, %v3375
    %3384 = vrot.lane.b32.xlu0 %v2472, 112
    %v3385 = vpop.permute.xlu0 %3384
    %3386 = vrot.lane.b32.xlu0 %v2476, 112
    %v3387 = vpop.permute.xlu0 %3386
    %v3389 = vsel %vm318, %v3385, 0
    %v3392 = vsel %vm318, %v3387, 0
    %3394 = vmatprep.subr.bf16.mxu0 0
    %3395 = vmatpush1.bf16.xpose.msra.mxu0 %v3392
    %3396 = vmatprep.subr.bf16.mxu0 0
    %3397 = vmatpush1.bf16.xpose.msra.mxu0 0
    %3398 = vmatprep.subr.bf16.mxu0 0
    %3399 = vmatpush1.bf16.xpose.msra.mxu0 0
    %3400 = vmatprep.subr.bf16.mxu0 0
    %3401 = vmatpush1.bf16.xpose.msra.mxu0 0
    %3402 = vmatprep.subr.bf16.mxu0 0
    %3403 = vmatpush1.bf16.xpose.msra.mxu0 0
    %3404 = vmatprep.subr.bf16.mxu0 0
    %3405 = vmatpush1.bf16.xpose.msra.mxu0 0
    %3406 = vmatprep.subr.bf16.mxu0 0
    %3407 = vmatpush1.bf16.xpose.msra.mxu0 0
    %3408 = vmatprep.subr.bf16.mxu0 0
    %3409 = vmatpush1.bf16.xpose.msra.mxu0 0
    %3410 = vmatprep.subr.bf16.mxu0 0
    %3411 = vmatpush1.bf16.xpose.msra.mxu0 0
    %3412 = vmatprep.subr.bf16.mxu0 0
    %3413 = vmatpush1.bf16.xpose.msra.mxu0 0
    %3414 = vmatprep.subr.bf16.mxu0 0
    %3415 = vmatpush1.bf16.xpose.msra.mxu0 0
    %3416 = vmatprep.subr.bf16.mxu0 0
    %3417 = vmatpush1.bf16.xpose.msra.mxu0 0
    %3418 = vmatprep.subr.bf16.mxu0 0
    %3419 = vmatpush1.bf16.xpose.msra.mxu0 0
    %3420 = vmatprep.subr.bf16.mxu0 0
    %3421 = vmatpush1.bf16.xpose.msra.mxu0 0
    %3422 = vmatprep.subr.bf16.mxu0 0
    %3423 = vmatpush1.bf16.xpose.msra.mxu0 0
    %3424 = vmatprep.subr.bf16.mxu0 0
    %3425 = vmatpush1.bf16.xpose.msra.mxu0 0
    %3426 = vmatprep.mubr.bf16.mxu0 0
    %3427 = vmatmul.mubr.bf16.gmra.mrb[0].mxu0 %v3389
    %v3428 = vpop.f32.mrb[0].mxu0
    %v3429 = vadd.f32 %v195, %v3428
    %v3430 = vpop.f32.mrb[0].mxu0
    %v3431 = vpop.f32.mrb[0].mxu0
    %v3432 = vpop.f32.mrb[0].mxu0
    %3433 = vdwg.mxu0
    %3434 = vrot.lane.b32.xlu0 %v2473, 112
    %v3435 = vpop.permute.xlu0 %3434
    %3436 = vrot.lane.b32.xlu0 %v2477, 112
    %v3437 = vpop.permute.xlu0 %3436
    %v3439 = vsel %vm318, %v3435, 0
    %v3442 = vsel %vm318, %v3437, 0
    %3444 = vmatprep.subr.bf16.mxu0 0
    %3445 = vmatpush1.bf16.xpose.msra.mxu0 %v3442
    %3446 = vmatprep.subr.bf16.mxu0 0
    %3447 = vmatpush1.bf16.xpose.msra.mxu0 0
    %3448 = vmatprep.subr.bf16.mxu0 0
    %3449 = vmatpush1.bf16.xpose.msra.mxu0 0
    %3450 = vmatprep.subr.bf16.mxu0 0
    %3451 = vmatpush1.bf16.xpose.msra.mxu0 0
    %3452 = vmatprep.subr.bf16.mxu0 0
    %3453 = vmatpush1.bf16.xpose.msra.mxu0 0
    %3454 = vmatprep.subr.bf16.mxu0 0
    %3455 = vmatpush1.bf16.xpose.msra.mxu0 0
    %3456 = vmatprep.subr.bf16.mxu0 0
    %3457 = vmatpush1.bf16.xpose.msra.mxu0 0
    %3458 = vmatprep.subr.bf16.mxu0 0
    %3459 = vmatpush1.bf16.xpose.msra.mxu0 0
    %3460 = vmatprep.subr.bf16.mxu0 0
    %3461 = vmatpush1.bf16.xpose.msra.mxu0 0
    %3462 = vmatprep.subr.bf16.mxu0 0
    %3463 = vmatpush1.bf16.xpose.msra.mxu0 0
    %3464 = vmatprep.subr.bf16.mxu0 0
    %3465 = vmatpush1.bf16.xpose.msra.mxu0 0
    %3466 = vmatprep.subr.bf16.mxu0 0
    %3467 = vmatpush1.bf16.xpose.msra.mxu0 0
    %3468 = vmatprep.subr.bf16.mxu0 0
    %3469 = vmatpush1.bf16.xpose.msra.mxu0 0
    %3470 = vmatprep.subr.bf16.mxu0 0
    %3471 = vmatpush1.bf16.xpose.msra.mxu0 0
    %3472 = vmatprep.subr.bf16.mxu0 0
    %3473 = vmatpush1.bf16.xpose.msra.mxu0 0
    %3474 = vmatprep.subr.bf16.mxu0 0
    %3475 = vmatpush1.bf16.xpose.msra.mxu0 0
    %3476 = vmatprep.mubr.bf16.mxu0 0
    %3477 = vmatmul.mubr.bf16.gmra.mrb[0].mxu0 %v3439
    %v3478 = vpop.f32.mrb[0].mxu0
    %v3479 = vadd.f32 %v196, %v3478
    %v3480 = vpop.f32.mrb[0].mxu0
    %v3481 = vpop.f32.mrb[0].mxu0
    %v3482 = vpop.f32.mrb[0].mxu0
    %3483 = vdwg.mxu0
    %3484 = vrot.lane.b32.xlu0 %v2474, 112
    %v3485 = vpop.permute.xlu0 %3484
    %3486 = vrot.lane.b32.xlu0 %v2478, 112
    %v3487 = vpop.permute.xlu0 %3486
    %v3489 = vsel %vm318, %v3485, 0
    %v3492 = vsel %vm318, %v3487, 0
    %3494 = vmatprep.subr.bf16.mxu0 0
    %3495 = vmatpush1.bf16.xpose.msra.mxu0 %v3492
    %3496 = vmatprep.subr.bf16.mxu0 0
    %3497 = vmatpush1.bf16.xpose.msra.mxu0 0
    %3498 = vmatprep.subr.bf16.mxu0 0
    %3499 = vmatpush1.bf16.xpose.msra.mxu0 0
    %3500 = vmatprep.subr.bf16.mxu0 0
    %3501 = vmatpush1.bf16.xpose.msra.mxu0 0
    %3502 = vmatprep.subr.bf16.mxu0 0
    %3503 = vmatpush1.bf16.xpose.msra.mxu0 0
    %3504 = vmatprep.subr.bf16.mxu0 0
    %3505 = vmatpush1.bf16.xpose.msra.mxu0 0
    %3506 = vmatprep.subr.bf16.mxu0 0
    %3507 = vmatpush1.bf16.xpose.msra.mxu0 0
    %3508 = vmatprep.subr.bf16.mxu0 0
    %3509 = vmatpush1.bf16.xpose.msra.mxu0 0
    %3510 = vmatprep.subr.bf16.mxu0 0
    %3511 = vmatpush1.bf16.xpose.msra.mxu0 0
    %3512 = vmatprep.subr.bf16.mxu0 0
    %3513 = vmatpush1.bf16.xpose.msra.mxu0 0
    %3514 = vmatprep.subr.bf16.mxu0 0
    %3515 = vmatpush1.bf16.xpose.msra.mxu0 0
    %3516 = vmatprep.subr.bf16.mxu0 0
    %3517 = vmatpush1.bf16.xpose.msra.mxu0 0
    %3518 = vmatprep.subr.bf16.mxu0 0
    %3519 = vmatpush1.bf16.xpose.msra.mxu0 0
    %3520 = vmatprep.subr.bf16.mxu0 0
    %3521 = vmatpush1.bf16.xpose.msra.mxu0 0
    %3522 = vmatprep.subr.bf16.mxu0 0
    %3523 = vmatpush1.bf16.xpose.msra.mxu0 0
    %3524 = vmatprep.subr.bf16.mxu0 0
    %3525 = vmatpush1.bf16.xpose.msra.mxu0 0
    %3526 = vmatprep.mubr.bf16.mxu0 0
    %3527 = vmatmul.mubr.bf16.gmra.mrb[0].mxu0 %v3489
    %v3528 = vpop.f32.mrb[0].mxu0
    %v3529 = vadd.f32 %v195, %v3528
    %v3530 = vpop.f32.mrb[0].mxu0
    %v3531 = vpop.f32.mrb[0].mxu0
    %v3532 = vpop.f32.mrb[0].mxu0
    %3533 = vdwg.mxu0
    %3534 = vrot.lane.b32.xlu0 %v2475, 112
    %v3535 = vpop.permute.xlu0 %3534
    %3536 = vrot.lane.b32.xlu0 %v2479, 112
    %v3537 = vpop.permute.xlu0 %3536
    %v3539 = vsel %vm318, %v3535, 0
    %v3542 = vsel %vm318, %v3537, 0
    %3544 = vmatprep.subr.bf16.mxu0 0
    %3545 = vmatpush1.bf16.xpose.msra.mxu0 %v3542
    %3546 = vmatprep.subr.bf16.mxu0 0
    %3547 = vmatpush1.bf16.xpose.msra.mxu0 0
    %3548 = vmatprep.subr.bf16.mxu0 0
    %3549 = vmatpush1.bf16.xpose.msra.mxu0 0
    %3550 = vmatprep.subr.bf16.mxu0 0
    %3551 = vmatpush1.bf16.xpose.msra.mxu0 0
    %3552 = vmatprep.subr.bf16.mxu0 0
    %3553 = vmatpush1.bf16.xpose.msra.mxu0 0
    %3554 = vmatprep.subr.bf16.mxu0 0
    %3555 = vmatpush1.bf16.xpose.msra.mxu0 0
    %3556 = vmatprep.subr.bf16.mxu0 0
    %3557 = vmatpush1.bf16.xpose.msra.mxu0 0
    %3558 = vmatprep.subr.bf16.mxu0 0
    %3559 = vmatpush1.bf16.xpose.msra.mxu0 0
    %3560 = vmatprep.subr.bf16.mxu0 0
    %3561 = vmatpush1.bf16.xpose.msra.mxu0 0
    %3562 = vmatprep.subr.bf16.mxu0 0
    %3563 = vmatpush1.bf16.xpose.msra.mxu0 0
    %3564 = vmatprep.subr.bf16.mxu0 0
    %3565 = vmatpush1.bf16.xpose.msra.mxu0 0
    %3566 = vmatprep.subr.bf16.mxu0 0
    %3567 = vmatpush1.bf16.xpose.msra.mxu0 0
    %3568 = vmatprep.subr.bf16.mxu0 0
    %3569 = vmatpush1.bf16.xpose.msra.mxu0 0
    %3570 = vmatprep.subr.bf16.mxu0 0
    %3571 = vmatpush1.bf16.xpose.msra.mxu0 0
    %3572 = vmatprep.subr.bf16.mxu0 0
    %3573 = vmatpush1.bf16.xpose.msra.mxu0 0
    %3574 = vmatprep.subr.bf16.mxu0 0
    %3575 = vmatpush1.bf16.xpose.msra.mxu0 0
    %3576 = vmatprep.mubr.bf16.mxu0 0
    %3577 = vmatmul.mubr.bf16.gmra.mrb[0].mxu0 %v3539
    %v3578 = vpop.f32.mrb[0].mxu0
    %v3579 = vadd.f32 %v196, %v3578
    %v3580 = vpop.f32.mrb[0].mxu0
    %v3581 = vpop.f32.mrb[0].mxu0
    %v3582 = vpop.f32.mrb[0].mxu0
    %3583 = vdwg.mxu0
    %v3584 = vsel %vm318, %v3429, -inf
    %3585 = vmax.xlane.f32.xlu0 %v3584
    %v3586 = vpop.xlane.xlu0 %3585
    %v3587 = vsel %vm318, %v3479, -inf
    %3588 = vmax.xlane.f32.xlu0 %v3587
    %v3589 = vpop.xlane.xlu0 %3588
    %v3590 = vsel %vm318, %v3529, -inf
    %3591 = vmax.xlane.f32.xlu0 %v3590
    %v3592 = vpop.xlane.xlu0 %3591
    %v3593 = vsel %vm318, %v3579, -inf
    %3594 = vmax.xlane.f32.xlu0 %v3593
    %v3595 = vpop.xlane.xlu0 %3594
    %v3596 = vsub.f32 %v3429, %v3586
    %v3597 = vsub.f32 %v3479, %v3589
    %v3598 = vsub.f32 %v3529, %v3592
    %v3599 = vsub.f32 %v3579, %v3595
    %v3600 = vmul.f32 %v3596, 1.442695
    %v3601 = vpow.pop %v3600
    %v3602 = vmul.f32 %v3597, 1.442695
    %v3603 = vpow.pop %v3602
    %v3604 = vmul.f32 %v3598, 1.442695
    %v3605 = vpow.pop %v3604
    %v3606 = vmul.f32 %v3599, 1.442695
    %v3607 = vpow.pop %v3606
    %v3608 = vsel %vm318, %v3601, 0.0
    %3609 = vadd.xlane.f32.xlu0 %v3608
    %v3610 = vpop.xlane.xlu0 %3609
    %v3611 = vsel %vm318, %v3603, 0.0
    %3612 = vadd.xlane.f32.xlu0 %v3611
    %v3613 = vpop.xlane.xlu0 %3612
    %v3614 = vsel %vm318, %v3605, 0.0
    %3615 = vadd.xlane.f32.xlu0 %v3614
    %v3616 = vpop.xlane.xlu0 %3615
    %v3617 = vsel %vm318, %v3607, 0.0
    %3618 = vadd.xlane.f32.xlu0 %v3617
    %v3619 = vpop.xlane.xlu0 %3618
    %v3620 = vrcp.pop %v3610
    %v3621 = vmul.f32 %v3601, %v3620
    %v3622 = vrcp.pop %v3613
    %v3623 = vmul.f32 %v3603, %v3622
    %v3624 = vrcp.pop %v3616
    %v3625 = vmul.f32 %v3605, %v3624
    %v3626 = vrcp.pop %v3619
    %v3627 = vmul.f32 %v3607, %v3626
    %v3628 = vpack.c.bf16 %v3621, %v3621
    %v3629 = vpack.c.bf16 %v3623, %v3623
    %v3630 = vpack.c.bf16 %v3625, %v3625
    %v3631 = vpack.c.bf16 %v3627, %v3627
    %3632 = vrot.lane.b32.xlu0 %v2480, 80
    %v3633 = vpop.permute.xlu0 %3632
    %v3635 = vsel %vm318, %v3628, 0
    %v3638 = vsel %vm566, %v3633, 0
    %3640 = vmatprep.subr.bf16.mxu0 0
    %3641 = vmatpush1.bf16.msra.mxu0 %v3638
    %3642 = vmatprep.subr.bf16.mxu0 0
    %3643 = vmatpush1.bf16.msra.mxu0 0
    %3644 = vmatprep.subr.bf16.mxu0 0
    %3645 = vmatpush1.bf16.msra.mxu0 0
    %3646 = vmatprep.subr.bf16.mxu0 0
    %3647 = vmatpush1.bf16.msra.mxu0 0
    %3648 = vmatprep.subr.bf16.mxu0 0
    %3649 = vmatpush1.bf16.msra.mxu0 0
    %3650 = vmatprep.subr.bf16.mxu0 0
    %3651 = vmatpush1.bf16.msra.mxu0 0
    %3652 = vmatprep.subr.bf16.mxu0 0
    %3653 = vmatpush1.bf16.msra.mxu0 0
    %3654 = vmatprep.subr.bf16.mxu0 0
    %3655 = vmatpush1.bf16.msra.mxu0 0
    %3656 = vmatprep.subr.bf16.mxu0 0
    %3657 = vmatpush1.bf16.msra.mxu0 0
    %3658 = vmatprep.subr.bf16.mxu0 0
    %3659 = vmatpush1.bf16.msra.mxu0 0
    %3660 = vmatprep.subr.bf16.mxu0 0
    %3661 = vmatpush1.bf16.msra.mxu0 0
    %3662 = vmatprep.subr.bf16.mxu0 0
    %3663 = vmatpush1.bf16.msra.mxu0 0
    %3664 = vmatprep.subr.bf16.mxu0 0
    %3665 = vmatpush1.bf16.msra.mxu0 0
    %3666 = vmatprep.subr.bf16.mxu0 0
    %3667 = vmatpush1.bf16.msra.mxu0 0
    %3668 = vmatprep.subr.bf16.mxu0 0
    %3669 = vmatpush1.bf16.msra.mxu0 0
    %3670 = vmatprep.subr.bf16.mxu0 0
    %3671 = vmatpush1.bf16.msra.mxu0 0
    %3672 = vmatprep.mubr.bf16.mxu0 0
    %3673 = vmatmul.mubr.bf16.gmra.mrb[0].mxu0 %v3635
    %v3674 = vpop.f32.mrb[0].mxu0
    %v3675 = vadd.f32 0.0, %v3674
    %v3676 = vpop.f32.mrb[0].mxu0
    %v3677 = vpop.f32.mrb[0].mxu0
    %v3678 = vpop.f32.mrb[0].mxu0
    %3679 = vdwg.mxu0
    %3680 = vrot.lane.b32.xlu0 %v2481, 80
    %v3681 = vpop.permute.xlu0 %3680
    %v3683 = vsel %vm318, %v3629, 0
    %v3686 = vsel %vm566, %v3681, 0
    %3688 = vmatprep.subr.bf16.mxu0 0
    %3689 = vmatpush1.bf16.msra.mxu0 %v3686
    %3690 = vmatprep.subr.bf16.mxu0 0
    %3691 = vmatpush1.bf16.msra.mxu0 0
    %3692 = vmatprep.subr.bf16.mxu0 0
    %3693 = vmatpush1.bf16.msra.mxu0 0
    %3694 = vmatprep.subr.bf16.mxu0 0
    %3695 = vmatpush1.bf16.msra.mxu0 0
    %3696 = vmatprep.subr.bf16.mxu0 0
    %3697 = vmatpush1.bf16.msra.mxu0 0
    %3698 = vmatprep.subr.bf16.mxu0 0
    %3699 = vmatpush1.bf16.msra.mxu0 0
    %3700 = vmatprep.subr.bf16.mxu0 0
    %3701 = vmatpush1.bf16.msra.mxu0 0
    %3702 = vmatprep.subr.bf16.mxu0 0
    %3703 = vmatpush1.bf16.msra.mxu0 0
    %3704 = vmatprep.subr.bf16.mxu0 0
    %3705 = vmatpush1.bf16.msra.mxu0 0
    %3706 = vmatprep.subr.bf16.mxu0 0
    %3707 = vmatpush1.bf16.msra.mxu0 0
    %3708 = vmatprep.subr.bf16.mxu0 0
    %3709 = vmatpush1.bf16.msra.mxu0 0
    %3710 = vmatprep.subr.bf16.mxu0 0
    %3711 = vmatpush1.bf16.msra.mxu0 0
    %3712 = vmatprep.subr.bf16.mxu0 0
    %3713 = vmatpush1.bf16.msra.mxu0 0
    %3714 = vmatprep.subr.bf16.mxu0 0
    %3715 = vmatpush1.bf16.msra.mxu0 0
    %3716 = vmatprep.subr.bf16.mxu0 0
    %3717 = vmatpush1.bf16.msra.mxu0 0
    %3718 = vmatprep.subr.bf16.mxu0 0
    %3719 = vmatpush1.bf16.msra.mxu0 0
    %3720 = vmatprep.mubr.bf16.mxu0 0
    %3721 = vmatmul.mubr.bf16.gmra.mrb[0].mxu0 %v3683
    %v3722 = vpop.f32.mrb[0].mxu0
    %v3723 = vadd.f32 0.0, %v3722
    %v3724 = vpop.f32.mrb[0].mxu0
    %v3725 = vpop.f32.mrb[0].mxu0
    %v3726 = vpop.f32.mrb[0].mxu0
    %3727 = vdwg.mxu0
    %3728 = vrot.lane.b32.xlu0 %v2482, 80
    %v3729 = vpop.permute.xlu0 %3728
    %v3731 = vsel %vm318, %v3630, 0
    %v3734 = vsel %vm566, %v3729, 0
    %3736 = vmatprep.subr.bf16.mxu0 0
    %3737 = vmatpush1.bf16.msra.mxu0 %v3734
    %3738 = vmatprep.subr.bf16.mxu0 0
    %3739 = vmatpush1.bf16.msra.mxu0 0
    %3740 = vmatprep.subr.bf16.mxu0 0
    %3741 = vmatpush1.bf16.msra.mxu0 0
    %3742 = vmatprep.subr.bf16.mxu0 0
    %3743 = vmatpush1.bf16.msra.mxu0 0
    %3744 = vmatprep.subr.bf16.mxu0 0
    %3745 = vmatpush1.bf16.msra.mxu0 0
    %3746 = vmatprep.subr.bf16.mxu0 0
    %3747 = vmatpush1.bf16.msra.mxu0 0
    %3748 = vmatprep.subr.bf16.mxu0 0
    %3749 = vmatpush1.bf16.msra.mxu0 0
    %3750 = vmatprep.subr.bf16.mxu0 0
    %3751 = vmatpush1.bf16.msra.mxu0 0
    %3752 = vmatprep.subr.bf16.mxu0 0
    %3753 = vmatpush1.bf16.msra.mxu0 0
    %3754 = vmatprep.subr.bf16.mxu0 0
    %3755 = vmatpush1.bf16.msra.mxu0 0
    %3756 = vmatprep.subr.bf16.mxu0 0
    %3757 = vmatpush1.bf16.msra.mxu0 0
    %3758 = vmatprep.subr.bf16.mxu0 0
    %3759 = vmatpush1.bf16.msra.mxu0 0
    %3760 = vmatprep.subr.bf16.mxu0 0
    %3761 = vmatpush1.bf16.msra.mxu0 0
    %3762 = vmatprep.subr.bf16.mxu0 0
    %3763 = vmatpush1.bf16.msra.mxu0 0
    %3764 = vmatprep.subr.bf16.mxu0 0
    %3765 = vmatpush1.bf16.msra.mxu0 0
    %3766 = vmatprep.subr.bf16.mxu0 0
    %3767 = vmatpush1.bf16.msra.mxu0 0
    %3768 = vmatprep.mubr.bf16.mxu0 0
    %3769 = vmatmul.mubr.bf16.gmra.mrb[0].mxu0 %v3731
    %v3770 = vpop.f32.mrb[0].mxu0
    %v3771 = vadd.f32 0.0, %v3770
    %v3772 = vpop.f32.mrb[0].mxu0
    %v3773 = vpop.f32.mrb[0].mxu0
    %v3774 = vpop.f32.mrb[0].mxu0
    %3775 = vdwg.mxu0
    %3776 = vrot.lane.b32.xlu0 %v2483, 80
    %v3777 = vpop.permute.xlu0 %3776
    %v3779 = vsel %vm318, %v3631, 0
    %v3782 = vsel %vm566, %v3777, 0
    %3784 = vmatprep.subr.bf16.mxu0 0
    %3785 = vmatpush1.bf16.msra.mxu0 %v3782
    %3786 = vmatprep.subr.bf16.mxu0 0
    %3787 = vmatpush1.bf16.msra.mxu0 0
    %3788 = vmatprep.subr.bf16.mxu0 0
    %3789 = vmatpush1.bf16.msra.mxu0 0
    %3790 = vmatprep.subr.bf16.mxu0 0
    %3791 = vmatpush1.bf16.msra.mxu0 0
    %3792 = vmatprep.subr.bf16.mxu0 0
    %3793 = vmatpush1.bf16.msra.mxu0 0
    %3794 = vmatprep.subr.bf16.mxu0 0
    %3795 = vmatpush1.bf16.msra.mxu0 0
    %3796 = vmatprep.subr.bf16.mxu0 0
    %3797 = vmatpush1.bf16.msra.mxu0 0
    %3798 = vmatprep.subr.bf16.mxu0 0
    %3799 = vmatpush1.bf16.msra.mxu0 0
    %3800 = vmatprep.subr.bf16.mxu0 0
    %3801 = vmatpush1.bf16.msra.mxu0 0
    %3802 = vmatprep.subr.bf16.mxu0 0
    %3803 = vmatpush1.bf16.msra.mxu0 0
    %3804 = vmatprep.subr.bf16.mxu0 0
    %3805 = vmatpush1.bf16.msra.mxu0 0
    %3806 = vmatprep.subr.bf16.mxu0 0
    %3807 = vmatpush1.bf16.msra.mxu0 0
    %3808 = vmatprep.subr.bf16.mxu0 0
    %3809 = vmatpush1.bf16.msra.mxu0 0
    %3810 = vmatprep.subr.bf16.mxu0 0
    %3811 = vmatpush1.bf16.msra.mxu0 0
    %3812 = vmatprep.subr.bf16.mxu0 0
    %3813 = vmatpush1.bf16.msra.mxu0 0
    %3814 = vmatprep.subr.bf16.mxu0 0
    %3815 = vmatpush1.bf16.msra.mxu0 0
    %3816 = vmatprep.mubr.bf16.mxu0 0
    %3817 = vmatmul.mubr.bf16.gmra.mrb[0].mxu0 %v3779
    %v3818 = vpop.f32.mrb[0].mxu0
    %v3819 = vadd.f32 0.0, %v3818
    %v3820 = vpop.f32.mrb[0].mxu0
    %v3821 = vpop.f32.mrb[0].mxu0
    %v3822 = vpop.f32.mrb[0].mxu0
    %3823 = vdwg.mxu0
    %3828 = vrot.lane.b32.xlu0 %v3675, 16
    %v3829 = vpop.permute.xlu0 %3828
    %3830 = vrot.lane.b32.xlu0 %v3723, 16
    %v3831 = vpop.permute.xlu0 %3830
    %3832 = vrot.lane.b32.xlu0 %v3771, 16
    %v3833 = vpop.permute.xlu0 %3832
    %3834 = vrot.lane.b32.xlu0 %v3819, 16
    %v3835 = vpop.permute.xlu0 %3834
    %3840 = vst.msk [vmem:[#allocation2] sm:$0xff] %vm1682, %v3829
    %3841 = vst.msk [vmem:[#allocation2 + $0x8] sm:$0xff] %vm1682, %v3831
    %3842 = vst.msk [vmem:[#allocation2 + $0x10] sm:$0xff] %vm1682, %v3833
    %3843 = vst.msk [vmem:[#allocation2 + $0x18] sm:$0xff] %vm1682, %v3835
    %3844 = vrot.lane.b32.xlu0 %v2472, 104
    %v3845 = vpop.permute.xlu0 %3844
    %3846 = vrot.lane.b32.xlu0 %v2476, 104
    %v3847 = vpop.permute.xlu0 %3846
    %v3849 = vsel %vm318, %v3845, 0
    %v3852 = vsel %vm318, %v3847, 0
    %3854 = vmatprep.subr.bf16.mxu0 0
    %3855 = vmatpush1.bf16.xpose.msra.mxu0 %v3852
    %3856 = vmatprep.subr.bf16.mxu0 0
    %3857 = vmatpush1.bf16.xpose.msra.mxu0 0
    %3858 = vmatprep.subr.bf16.mxu0 0
    %3859 = vmatpush1.bf16.xpose.msra.mxu0 0
    %3860 = vmatprep.subr.bf16.mxu0 0
    %3861 = vmatpush1.bf16.xpose.msra.mxu0 0
    %3862 = vmatprep.subr.bf16.mxu0 0
    %3863 = vmatpush1.bf16.xpose.msra.mxu0 0
    %3864 = vmatprep.subr.bf16.mxu0 0
    %3865 = vmatpush1.bf16.xpose.msra.mxu0 0
    %3866 = vmatprep.subr.bf16.mxu0 0
    %3867 = vmatpush1.bf16.xpose.msra.mxu0 0
    %3868 = vmatprep.subr.bf16.mxu0 0
    %3869 = vmatpush1.bf16.xpose.msra.mxu0 0
    %3870 = vmatprep.subr.bf16.mxu0 0
    %3871 = vmatpush1.bf16.xpose.msra.mxu0 0
    %3872 = vmatprep.subr.bf16.mxu0 0
    %3873 = vmatpush1.bf16.xpose.msra.mxu0 0
    %3874 = vmatprep.subr.bf16.mxu0 0
    %3875 = vmatpush1.bf16.xpose.msra.mxu0 0
    %3876 = vmatprep.subr.bf16.mxu0 0
    %3877 = vmatpush1.bf16.xpose.msra.mxu0 0
    %3878 = vmatprep.subr.bf16.mxu0 0
    %3879 = vmatpush1.bf16.xpose.msra.mxu0 0
    %3880 = vmatprep.subr.bf16.mxu0 0
    %3881 = vmatpush1.bf16.xpose.msra.mxu0 0
    %3882 = vmatprep.subr.bf16.mxu0 0
    %3883 = vmatpush1.bf16.xpose.msra.mxu0 0
    %3884 = vmatprep.subr.bf16.mxu0 0
    %3885 = vmatpush1.bf16.xpose.msra.mxu0 0
    %3886 = vmatprep.mubr.bf16.mxu0 0
    %3887 = vmatmul.mubr.bf16.gmra.mrb[0].mxu0 %v3849
    %v3888 = vpop.f32.mrb[0].mxu0
    %v3889 = vadd.f32 %v195, %v3888
    %v3890 = vpop.f32.mrb[0].mxu0
    %v3891 = vpop.f32.mrb[0].mxu0
    %v3892 = vpop.f32.mrb[0].mxu0
    %3893 = vdwg.mxu0
    %3894 = vrot.lane.b32.xlu0 %v2473, 104
    %v3895 = vpop.permute.xlu0 %3894
    %3896 = vrot.lane.b32.xlu0 %v2477, 104
    %v3897 = vpop.permute.xlu0 %3896
    %v3899 = vsel %vm318, %v3895, 0
    %v3902 = vsel %vm318, %v3897, 0
    %3904 = vmatprep.subr.bf16.mxu0 0
    %3905 = vmatpush1.bf16.xpose.msra.mxu0 %v3902
    %3906 = vmatprep.subr.bf16.mxu0 0
    %3907 = vmatpush1.bf16.xpose.msra.mxu0 0
    %3908 = vmatprep.subr.bf16.mxu0 0
    %3909 = vmatpush1.bf16.xpose.msra.mxu0 0
    %3910 = vmatprep.subr.bf16.mxu0 0
    %3911 = vmatpush1.bf16.xpose.msra.mxu0 0
    %3912 = vmatprep.subr.bf16.mxu0 0
    %3913 = vmatpush1.bf16.xpose.msra.mxu0 0
    %3914 = vmatprep.subr.bf16.mxu0 0
    %3915 = vmatpush1.bf16.xpose.msra.mxu0 0
    %3916 = vmatprep.subr.bf16.mxu0 0
    %3917 = vmatpush1.bf16.xpose.msra.mxu0 0
    %3918 = vmatprep.subr.bf16.mxu0 0
    %3919 = vmatpush1.bf16.xpose.msra.mxu0 0
    %3920 = vmatprep.subr.bf16.mxu0 0
    %3921 = vmatpush1.bf16.xpose.msra.mxu0 0
    %3922 = vmatprep.subr.bf16.mxu0 0
    %3923 = vmatpush1.bf16.xpose.msra.mxu0 0
    %3924 = vmatprep.subr.bf16.mxu0 0
    %3925 = vmatpush1.bf16.xpose.msra.mxu0 0
    %3926 = vmatprep.subr.bf16.mxu0 0
    %3927 = vmatpush1.bf16.xpose.msra.mxu0 0
    %3928 = vmatprep.subr.bf16.mxu0 0
    %3929 = vmatpush1.bf16.xpose.msra.mxu0 0
    %3930 = vmatprep.subr.bf16.mxu0 0
    %3931 = vmatpush1.bf16.xpose.msra.mxu0 0
    %3932 = vmatprep.subr.bf16.mxu0 0
    %3933 = vmatpush1.bf16.xpose.msra.mxu0 0
    %3934 = vmatprep.subr.bf16.mxu0 0
    %3935 = vmatpush1.bf16.xpose.msra.mxu0 0
    %3936 = vmatprep.mubr.bf16.mxu0 0
    %3937 = vmatmul.mubr.bf16.gmra.mrb[0].mxu0 %v3899
    %v3938 = vpop.f32.mrb[0].mxu0
    %v3939 = vadd.f32 %v196, %v3938
    %v3940 = vpop.f32.mrb[0].mxu0
    %v3941 = vpop.f32.mrb[0].mxu0
    %v3942 = vpop.f32.mrb[0].mxu0
    %3943 = vdwg.mxu0
    %3944 = vrot.lane.b32.xlu0 %v2474, 104
    %v3945 = vpop.permute.xlu0 %3944
    %3946 = vrot.lane.b32.xlu0 %v2478, 104
    %v3947 = vpop.permute.xlu0 %3946
    %v3949 = vsel %vm318, %v3945, 0
    %v3952 = vsel %vm318, %v3947, 0
    %3954 = vmatprep.subr.bf16.mxu0 0
    %3955 = vmatpush1.bf16.xpose.msra.mxu0 %v3952
    %3956 = vmatprep.subr.bf16.mxu0 0
    %3957 = vmatpush1.bf16.xpose.msra.mxu0 0
    %3958 = vmatprep.subr.bf16.mxu0 0
    %3959 = vmatpush1.bf16.xpose.msra.mxu0 0
    %3960 = vmatprep.subr.bf16.mxu0 0
    %3961 = vmatpush1.bf16.xpose.msra.mxu0 0
    %3962 = vmatprep.subr.bf16.mxu0 0
    %3963 = vmatpush1.bf16.xpose.msra.mxu0 0
    %3964 = vmatprep.subr.bf16.mxu0 0
    %3965 = vmatpush1.bf16.xpose.msra.mxu0 0
    %3966 = vmatprep.subr.bf16.mxu0 0
    %3967 = vmatpush1.bf16.xpose.msra.mxu0 0
    %3968 = vmatprep.subr.bf16.mxu0 0
    %3969 = vmatpush1.bf16.xpose.msra.mxu0 0
    %3970 = vmatprep.subr.bf16.mxu0 0
    %3971 = vmatpush1.bf16.xpose.msra.mxu0 0
    %3972 = vmatprep.subr.bf16.mxu0 0
    %3973 = vmatpush1.bf16.xpose.msra.mxu0 0
    %3974 = vmatprep.subr.bf16.mxu0 0
    %3975 = vmatpush1.bf16.xpose.msra.mxu0 0
    %3976 = vmatprep.subr.bf16.mxu0 0
    %3977 = vmatpush1.bf16.xpose.msra.mxu0 0
    %3978 = vmatprep.subr.bf16.mxu0 0
    %3979 = vmatpush1.bf16.xpose.msra.mxu0 0
    %3980 = vmatprep.subr.bf16.mxu0 0
    %3981 = vmatpush1.bf16.xpose.msra.mxu0 0
    %3982 = vmatprep.subr.bf16.mxu0 0
    %3983 = vmatpush1.bf16.xpose.msra.mxu0 0
    %3984 = vmatprep.subr.bf16.mxu0 0
    %3985 = vmatpush1.bf16.xpose.msra.mxu0 0
    %3986 = vmatprep.mubr.bf16.mxu0 0
    %3987 = vmatmul.mubr.bf16.gmra.mrb[0].mxu0 %v3949
    %v3988 = vpop.f32.mrb[0].mxu0
    %v3989 = vadd.f32 %v195, %v3988
    %v3990 = vpop.f32.mrb[0].mxu0
    %v3991 = vpop.f32.mrb[0].mxu0
    %v3992 = vpop.f32.mrb[0].mxu0
    %3993 = vdwg.mxu0
    %3994 = vrot.lane.b32.xlu0 %v2475, 104
    %v3995 = vpop.permute.xlu0 %3994
    %3996 = vrot.lane.b32.xlu0 %v2479, 104
    %v3997 = vpop.permute.xlu0 %3996
    %v3999 = vsel %vm318, %v3995, 0
    %v4002 = vsel %vm318, %v3997, 0
    %4004 = vmatprep.subr.bf16.mxu0 0
    %4005 = vmatpush1.bf16.xpose.msra.mxu0 %v4002
    %4006 = vmatprep.subr.bf16.mxu0 0
    %4007 = vmatpush1.bf16.xpose.msra.mxu0 0
    %4008 = vmatprep.subr.bf16.mxu0 0
    %4009 = vmatpush1.bf16.xpose.msra.mxu0 0
    %4010 = vmatprep.subr.bf16.mxu0 0
    %4011 = vmatpush1.bf16.xpose.msra.mxu0 0
    %4012 = vmatprep.subr.bf16.mxu0 0
    %4013 = vmatpush1.bf16.xpose.msra.mxu0 0
    %4014 = vmatprep.subr.bf16.mxu0 0
    %4015 = vmatpush1.bf16.xpose.msra.mxu0 0
    %4016 = vmatprep.subr.bf16.mxu0 0
    %4017 = vmatpush1.bf16.xpose.msra.mxu0 0
    %4018 = vmatprep.subr.bf16.mxu0 0
    %4019 = vmatpush1.bf16.xpose.msra.mxu0 0
    %4020 = vmatprep.subr.bf16.mxu0 0
    %4021 = vmatpush1.bf16.xpose.msra.mxu0 0
    %4022 = vmatprep.subr.bf16.mxu0 0
    %4023 = vmatpush1.bf16.xpose.msra.mxu0 0
    %4024 = vmatprep.subr.bf16.mxu0 0
    %4025 = vmatpush1.bf16.xpose.msra.mxu0 0
    %4026 = vmatprep.subr.bf16.mxu0 0
    %4027 = vmatpush1.bf16.xpose.msra.mxu0 0
    %4028 = vmatprep.subr.bf16.mxu0 0
    %4029 = vmatpush1.bf16.xpose.msra.mxu0 0
    %4030 = vmatprep.subr.bf16.mxu0 0
    %4031 = vmatpush1.bf16.xpose.msra.mxu0 0
    %4032 = vmatprep.subr.bf16.mxu0 0
    %4033 = vmatpush1.bf16.xpose.msra.mxu0 0
    %4034 = vmatprep.subr.bf16.mxu0 0
    %4035 = vmatpush1.bf16.xpose.msra.mxu0 0
    %4036 = vmatprep.mubr.bf16.mxu0 0
    %4037 = vmatmul.mubr.bf16.gmra.mrb[0].mxu0 %v3999
    %v4038 = vpop.f32.mrb[0].mxu0
    %v4039 = vadd.f32 %v196, %v4038
    %v4040 = vpop.f32.mrb[0].mxu0
    %v4041 = vpop.f32.mrb[0].mxu0
    %v4042 = vpop.f32.mrb[0].mxu0
    %4043 = vdwg.mxu0
    %v4044 = vsel %vm318, %v3889, -inf
    %4045 = vmax.xlane.f32.xlu0 %v4044
    %v4046 = vpop.xlane.xlu0 %4045
    %v4047 = vsel %vm318, %v3939, -inf
    %4048 = vmax.xlane.f32.xlu0 %v4047
    %v4049 = vpop.xlane.xlu0 %4048
    %v4050 = vsel %vm318, %v3989, -inf
    %4051 = vmax.xlane.f32.xlu0 %v4050
    %v4052 = vpop.xlane.xlu0 %4051
    %v4053 = vsel %vm318, %v4039, -inf
    %4054 = vmax.xlane.f32.xlu0 %v4053
    %v4055 = vpop.xlane.xlu0 %4054
    %v4056 = vsub.f32 %v3889, %v4046
    %v4057 = vsub.f32 %v3939, %v4049
    %v4058 = vsub.f32 %v3989, %v4052
    %v4059 = vsub.f32 %v4039, %v4055
    %v4060 = vmul.f32 %v4056, 1.442695
    %v4061 = vpow.pop %v4060
    %v4062 = vmul.f32 %v4057, 1.442695
    %v4063 = vpow.pop %v4062
    %v4064 = vmul.f32 %v4058, 1.442695
    %v4065 = vpow.pop %v4064
    %v4066 = vmul.f32 %v4059, 1.442695
    %v4067 = vpow.pop %v4066
    %v4068 = vsel %vm318, %v4061, 0.0
    %4069 = vadd.xlane.f32.xlu0 %v4068
    %v4070 = vpop.xlane.xlu0 %4069
    %v4071 = vsel %vm318, %v4063, 0.0
    %4072 = vadd.xlane.f32.xlu0 %v4071
    %v4073 = vpop.xlane.xlu0 %4072
    %v4074 = vsel %vm318, %v4065, 0.0
    %4075 = vadd.xlane.f32.xlu0 %v4074
    %v4076 = vpop.xlane.xlu0 %4075
    %v4077 = vsel %vm318, %v4067, 0.0
    %4078 = vadd.xlane.f32.xlu0 %v4077
    %v4079 = vpop.xlane.xlu0 %4078
    %v4080 = vrcp.pop %v4070
    %v4081 = vmul.f32 %v4061, %v4080
    %v4082 = vrcp.pop %v4073
    %v4083 = vmul.f32 %v4063, %v4082
    %v4084 = vrcp.pop %v4076
    %v4085 = vmul.f32 %v4065, %v4084
    %v4086 = vrcp.pop %v4079
    %v4087 = vmul.f32 %v4067, %v4086
    %v4088 = vpack.c.bf16 %v4081, %v4081
    %v4089 = vpack.c.bf16 %v4083, %v4083
    %v4090 = vpack.c.bf16 %v4085, %v4085
    %v4091 = vpack.c.bf16 %v4087, %v4087
    %4092 = vrot.lane.b32.xlu0 %v2480, 72
    %v4093 = vpop.permute.xlu0 %4092
    %v4095 = vsel %vm318, %v4088, 0
    %v4098 = vsel %vm566, %v4093, 0
    %4100 = vmatprep.subr.bf16.mxu0 0
    %4101 = vmatpush1.bf16.msra.mxu0 %v4098
    %4102 = vmatprep.subr.bf16.mxu0 0
    %4103 = vmatpush1.bf16.msra.mxu0 0
    %4104 = vmatprep.subr.bf16.mxu0 0
    %4105 = vmatpush1.bf16.msra.mxu0 0
    %4106 = vmatprep.subr.bf16.mxu0 0
    %4107 = vmatpush1.bf16.msra.mxu0 0
    %4108 = vmatprep.subr.bf16.mxu0 0
    %4109 = vmatpush1.bf16.msra.mxu0 0
    %4110 = vmatprep.subr.bf16.mxu0 0
    %4111 = vmatpush1.bf16.msra.mxu0 0
    %4112 = vmatprep.subr.bf16.mxu0 0
    %4113 = vmatpush1.bf16.msra.mxu0 0
    %4114 = vmatprep.subr.bf16.mxu0 0
    %4115 = vmatpush1.bf16.msra.mxu0 0
    %4116 = vmatprep.subr.bf16.mxu0 0
    %4117 = vmatpush1.bf16.msra.mxu0 0
    %4118 = vmatprep.subr.bf16.mxu0 0
    %4119 = vmatpush1.bf16.msra.mxu0 0
    %4120 = vmatprep.subr.bf16.mxu0 0
    %4121 = vmatpush1.bf16.msra.mxu0 0
    %4122 = vmatprep.subr.bf16.mxu0 0
    %4123 = vmatpush1.bf16.msra.mxu0 0
    %4124 = vmatprep.subr.bf16.mxu0 0
    %4125 = vmatpush1.bf16.msra.mxu0 0
    %4126 = vmatprep.subr.bf16.mxu0 0
    %4127 = vmatpush1.bf16.msra.mxu0 0
    %4128 = vmatprep.subr.bf16.mxu0 0
    %4129 = vmatpush1.bf16.msra.mxu0 0
    %4130 = vmatprep.subr.bf16.mxu0 0
    %4131 = vmatpush1.bf16.msra.mxu0 0
    %4132 = vmatprep.mubr.bf16.mxu0 0
    %4133 = vmatmul.mubr.bf16.gmra.mrb[0].mxu0 %v4095
    %v4134 = vpop.f32.mrb[0].mxu0
    %v4135 = vadd.f32 0.0, %v4134
    %v4136 = vpop.f32.mrb[0].mxu0
    %v4137 = vpop.f32.mrb[0].mxu0
    %v4138 = vpop.f32.mrb[0].mxu0
    %4139 = vdwg.mxu0
    %4140 = vrot.lane.b32.xlu0 %v2481, 72
    %v4141 = vpop.permute.xlu0 %4140
    %v4143 = vsel %vm318, %v4089, 0
    %v4146 = vsel %vm566, %v4141, 0
    %4148 = vmatprep.subr.bf16.mxu0 0
    %4149 = vmatpush1.bf16.msra.mxu0 %v4146
    %4150 = vmatprep.subr.bf16.mxu0 0
    %4151 = vmatpush1.bf16.msra.mxu0 0
    %4152 = vmatprep.subr.bf16.mxu0 0
    %4153 = vmatpush1.bf16.msra.mxu0 0
    %4154 = vmatprep.subr.bf16.mxu0 0
    %4155 = vmatpush1.bf16.msra.mxu0 0
    %4156 = vmatprep.subr.bf16.mxu0 0
    %4157 = vmatpush1.bf16.msra.mxu0 0
    %4158 = vmatprep.subr.bf16.mxu0 0
    %4159 = vmatpush1.bf16.msra.mxu0 0
    %4160 = vmatprep.subr.bf16.mxu0 0
    %4161 = vmatpush1.bf16.msra.mxu0 0
    %4162 = vmatprep.subr.bf16.mxu0 0
    %4163 = vmatpush1.bf16.msra.mxu0 0
    %4164 = vmatprep.subr.bf16.mxu0 0
    %4165 = vmatpush1.bf16.msra.mxu0 0
    %4166 = vmatprep.subr.bf16.mxu0 0
    %4167 = vmatpush1.bf16.msra.mxu0 0
    %4168 = vmatprep.subr.bf16.mxu0 0
    %4169 = vmatpush1.bf16.msra.mxu0 0
    %4170 = vmatprep.subr.bf16.mxu0 0
    %4171 = vmatpush1.bf16.msra.mxu0 0
    %4172 = vmatprep.subr.bf16.mxu0 0
    %4173 = vmatpush1.bf16.msra.mxu0 0
    %4174 = vmatprep.subr.bf16.mxu0 0
    %4175 = vmatpush1.bf16.msra.mxu0 0
    %4176 = vmatprep.subr.bf16.mxu0 0
    %4177 = vmatpush1.bf16.msra.mxu0 0
    %4178 = vmatprep.subr.bf16.mxu0 0
    %4179 = vmatpush1.bf16.msra.mxu0 0
    %4180 = vmatprep.mubr.bf16.mxu0 0
    %4181 = vmatmul.mubr.bf16.gmra.mrb[0].mxu0 %v4143
    %v4182 = vpop.f32.mrb[0].mxu0
    %v4183 = vadd.f32 0.0, %v4182
    %v4184 = vpop.f32.mrb[0].mxu0
    %v4185 = vpop.f32.mrb[0].mxu0
    %v4186 = vpop.f32.mrb[0].mxu0
    %4187 = vdwg.mxu0
    %4188 = vrot.lane.b32.xlu0 %v2482, 72
    %v4189 = vpop.permute.xlu0 %4188
    %v4191 = vsel %vm318, %v4090, 0
    %v4194 = vsel %vm566, %v4189, 0
    %4196 = vmatprep.subr.bf16.mxu0 0
    %4197 = vmatpush1.bf16.msra.mxu0 %v4194
    %4198 = vmatprep.subr.bf16.mxu0 0
    %4199 = vmatpush1.bf16.msra.mxu0 0
    %4200 = vmatprep.subr.bf16.mxu0 0
    %4201 = vmatpush1.bf16.msra.mxu0 0
    %4202 = vmatprep.subr.bf16.mxu0 0
    %4203 = vmatpush1.bf16.msra.mxu0 0
    %4204 = vmatprep.subr.bf16.mxu0 0
    %4205 = vmatpush1.bf16.msra.mxu0 0
    %4206 = vmatprep.subr.bf16.mxu0 0
    %4207 = vmatpush1.bf16.msra.mxu0 0
    %4208 = vmatprep.subr.bf16.mxu0 0
    %4209 = vmatpush1.bf16.msra.mxu0 0
    %4210 = vmatprep.subr.bf16.mxu0 0
    %4211 = vmatpush1.bf16.msra.mxu0 0
    %4212 = vmatprep.subr.bf16.mxu0 0
    %4213 = vmatpush1.bf16.msra.mxu0 0
    %4214 = vmatprep.subr.bf16.mxu0 0
    %4215 = vmatpush1.bf16.msra.mxu0 0
    %4216 = vmatprep.subr.bf16.mxu0 0
    %4217 = vmatpush1.bf16.msra.mxu0 0
    %4218 = vmatprep.subr.bf16.mxu0 0
    %4219 = vmatpush1.bf16.msra.mxu0 0
    %4220 = vmatprep.subr.bf16.mxu0 0
    %4221 = vmatpush1.bf16.msra.mxu0 0
    %4222 = vmatprep.subr.bf16.mxu0 0
    %4223 = vmatpush1.bf16.msra.mxu0 0
    %4224 = vmatprep.subr.bf16.mxu0 0
    %4225 = vmatpush1.bf16.msra.mxu0 0
    %4226 = vmatprep.subr.bf16.mxu0 0
    %4227 = vmatpush1.bf16.msra.mxu0 0
    %4228 = vmatprep.mubr.bf16.mxu0 0
    %4229 = vmatmul.mubr.bf16.gmra.mrb[0].mxu0 %v4191
    %v4230 = vpop.f32.mrb[0].mxu0
    %v4231 = vadd.f32 0.0, %v4230
    %v4232 = vpop.f32.mrb[0].mxu0
    %v4233 = vpop.f32.mrb[0].mxu0
    %v4234 = vpop.f32.mrb[0].mxu0
    %4235 = vdwg.mxu0
    %4236 = vrot.lane.b32.xlu0 %v2483, 72
    %v4237 = vpop.permute.xlu0 %4236
    %v4239 = vsel %vm318, %v4091, 0
    %v4242 = vsel %vm566, %v4237, 0
    %4244 = vmatprep.subr.bf16.mxu0 0
    %4245 = vmatpush1.bf16.msra.mxu0 %v4242
    %4246 = vmatprep.subr.bf16.mxu0 0
    %4247 = vmatpush1.bf16.msra.mxu0 0
    %4248 = vmatprep.subr.bf16.mxu0 0
    %4249 = vmatpush1.bf16.msra.mxu0 0
    %4250 = vmatprep.subr.bf16.mxu0 0
    %4251 = vmatpush1.bf16.msra.mxu0 0
    %4252 = vmatprep.subr.bf16.mxu0 0
    %4253 = vmatpush1.bf16.msra.mxu0 0
    %4254 = vmatprep.subr.bf16.mxu0 0
    %4255 = vmatpush1.bf16.msra.mxu0 0
    %4256 = vmatprep.subr.bf16.mxu0 0
    %4257 = vmatpush1.bf16.msra.mxu0 0
    %4258 = vmatprep.subr.bf16.mxu0 0
    %4259 = vmatpush1.bf16.msra.mxu0 0
    %4260 = vmatprep.subr.bf16.mxu0 0
    %4261 = vmatpush1.bf16.msra.mxu0 0
    %4262 = vmatprep.subr.bf16.mxu0 0
    %4263 = vmatpush1.bf16.msra.mxu0 0
    %4264 = vmatprep.subr.bf16.mxu0 0
    %4265 = vmatpush1.bf16.msra.mxu0 0
    %4266 = vmatprep.subr.bf16.mxu0 0
    %4267 = vmatpush1.bf16.msra.mxu0 0
    %4268 = vmatprep.subr.bf16.mxu0 0
    %4269 = vmatpush1.bf16.msra.mxu0 0
    %4270 = vmatprep.subr.bf16.mxu0 0
    %4271 = vmatpush1.bf16.msra.mxu0 0
    %4272 = vmatprep.subr.bf16.mxu0 0
    %4273 = vmatpush1.bf16.msra.mxu0 0
    %4274 = vmatprep.subr.bf16.mxu0 0
    %4275 = vmatpush1.bf16.msra.mxu0 0
    %4276 = vmatprep.mubr.bf16.mxu0 0
    %4277 = vmatmul.mubr.bf16.gmra.mrb[0].mxu0 %v4239
    %v4278 = vpop.f32.mrb[0].mxu0
    %v4279 = vadd.f32 0.0, %v4278
    %v4280 = vpop.f32.mrb[0].mxu0
    %v4281 = vpop.f32.mrb[0].mxu0
    %v4282 = vpop.f32.mrb[0].mxu0
    %4283 = vdwg.mxu0
    %4288 = vrot.lane.b32.xlu0 %v4135, 24
    %v4289 = vpop.permute.xlu0 %4288
    %4290 = vrot.lane.b32.xlu0 %v4183, 24
    %v4291 = vpop.permute.xlu0 %4290
    %4292 = vrot.lane.b32.xlu0 %v4231, 24
    %v4293 = vpop.permute.xlu0 %4292
    %4294 = vrot.lane.b32.xlu0 %v4279, 24
    %v4295 = vpop.permute.xlu0 %4294
    %4300 = vst.msk [vmem:[#allocation2] sm:$0xff] %vm2143, %v4289
    %4301 = vst.msk [vmem:[#allocation2 + $0x8] sm:$0xff] %vm2143, %v4291
    %4302 = vst.msk [vmem:[#allocation2 + $0x10] sm:$0xff] %vm2143, %v4293
    %4303 = vst.msk [vmem:[#allocation2 + $0x18] sm:$0xff] %vm2143, %v4295
    %v4304 = vld [vmem:[#allocation2] sm:$0xff]
    %v4305 = vld [vmem:[#allocation2 + $0x8] sm:$0xff]
    %v4306 = vld [vmem:[#allocation2 + $0x10] sm:$0xff]
    %v4307 = vld [vmem:[#allocation2 + $0x18] sm:$0xff]
    %v4308 = vpack.c.bf16 %v4305, %v4304
    %v4309 = vpack.c.bf16 %v4307, %v4306
    %v4310 = vld [vmem:[#allocation12] sm:$0xf]
    %v4311 = vld [vmem:[#allocation12 + $0x4] sm:$0xf]
    %v4312 = vld [vmem:[#allocation12 + $0x8] sm:$0xf]
    %v4313 = vld [vmem:[#allocation12 + $0xc] sm:$0xf]
    %v4314 = vlaneseq
    %v4315 = vshrl.u32 %v4314, 7
    %v4316 = vsub.s32 7, %v4315
    %v4317 = vrot.slane %v175, %v4316
    %v4322 = vunpack.c.l.b16 %v4310
    %v4323 = vunpack.c.l.b16 %v4311
    %v4324 = vunpack.c.l.b16 %v4312
    %v4325 = vunpack.c.l.b16 %v4313
    %v4326 = vpack.c.b16 %v4323, %v4322
    %v4327 = vpack.c.b16 %v4325, %v4324
    %v4331 = vsel %vm215, %v4308, 0
    %v4334 = vsel %vm215, %v4309, 0
    %4336 = vmatprep.subr.bf16.mxu0 0
    %4337 = vmatpush1.bf16.msra.mxu0 %v4326
    %4338 = vmatprep.subr.bf16.mxu0 0
    %4339 = vmatpush1.bf16.msra.mxu0 %v4327
    %4340 = vmatprep.subr.bf16.mxu0 0
    %4341 = vmatpush1.bf16.msra.mxu0 0
    %4342 = vmatprep.subr.bf16.mxu0 0
    %4343 = vmatpush1.bf16.msra.mxu0 0
    %4344 = vmatprep.subr.bf16.mxu0 0
    %4345 = vmatpush1.bf16.msra.mxu0 0
    %4346 = vmatprep.subr.bf16.mxu0 0
    %4347 = vmatpush1.bf16.msra.mxu0 0
    %4348 = vmatprep.subr.bf16.mxu0 0
    %4349 = vmatpush1.bf16.msra.mxu0 0
    %4350 = vmatprep.subr.bf16.mxu0 0
    %4351 = vmatpush1.bf16.msra.mxu0 0
    %4352 = vmatprep.subr.bf16.mxu0 0
    %4353 = vmatpush1.bf16.msra.mxu0 0
    %4354 = vmatprep.subr.bf16.mxu0 0
    %4355 = vmatpush1.bf16.msra.mxu0 0
    %4356 = vmatprep.subr.bf16.mxu0 0
    %4357 = vmatpush1.bf16.msra.mxu0 0
    %4358 = vmatprep.subr.bf16.mxu0 0
    %4359 = vmatpush1.bf16.msra.mxu0 0
    %4360 = vmatprep.subr.bf16.mxu0 0
    %4361 = vmatpush1.bf16.msra.mxu0 0
    %4362 = vmatprep.subr.bf16.mxu0 0
    %4363 = vmatpush1.bf16.msra.mxu0 0
    %4364 = vmatprep.subr.bf16.mxu0 0
    %4365 = vmatpush1.bf16.msra.mxu0 0
    %4366 = vmatprep.subr.bf16.mxu0 0
    %4367 = vmatpush1.bf16.msra.mxu0 0
    %4368 = vmatprep.mubr.bf16.mxu0 0
    %4369 = vmatmul.mubr.bf16.gmra.mrb[0].mxu0 %v4331
    %v4370 = vpop.f32.mrb[0].mxu0
    %v4371 = vadd.f32 %v4317, %v4370
    %v4372 = vpop.f32.mrb[0].mxu0
    %v4373 = vpop.f32.mrb[0].mxu0
    %v4374 = vadd.f32 %v4317, %v4373
    %v4375 = vpop.f32.mrb[0].mxu0
    %4376 = vmatprep.mubr.bf16.mxu0 0
    %4377 = vmatmul.mubr.bf16.gmra.mrb[0].mxu0 %v4334
    %v4378 = vpop.f32.mrb[0].mxu0
    %v4379 = vadd.f32 %v4317, %v4378
    %v4380 = vpop.f32.mrb[0].mxu0
    %v4381 = vpop.f32.mrb[0].mxu0
    %v4382 = vadd.f32 %v4317, %v4381
    %v4383 = vpop.f32.mrb[0].mxu0
    %4384 = vdwg.mxu0
    %v4385 = vadd.f32 %v2298, %v4371
    %v4386 = vadd.f32 %v2299, %v4374
    %v4387 = vadd.f32 %v2300, %v4379
    %v4388 = vadd.f32 %v2301, %v4382
    %v4389 = vsel %vm215, %v4385, 0.0
    %4390 = vadd.xlane.f32.xlu0 %v4389
    %v4391 = vpop.xlane.xlu0 %4390
    %v4392 = vsel %vm215, %v4386, 0.0
    %4393 = vadd.xlane.f32.xlu0 %v4392
    %v4394 = vpop.xlane.xlu0 %4393
    %v4395 = vsel %vm215, %v4387, 0.0
    %4396 = vadd.xlane.f32.xlu0 %v4395
    %v4397 = vpop.xlane.xlu0 %4396
    %v4398 = vsel %vm215, %v4388, 0.0
    %4399 = vadd.xlane.f32.xlu0 %v4398
    %v4400 = vpop.xlane.xlu0 %4399
    %v4401 = vmul.f32 %v4391, %v2245
    %v4402 = vmul.f32 %v4394, %v2245
    %v4403 = vmul.f32 %v4397, %v2245
    %v4404 = vmul.f32 %v4400, %v2245
    %v4405 = vsub.f32 %v4385, %v4401
    %v4406 = vsub.f32 %v4386, %v4402
    %v4407 = vsub.f32 %v4387, %v4403
    %v4408 = vsub.f32 %v4388, %v4404
    %v4409 = vmul.f32 %v4405, %v4405
    %v4410 = vmul.f32 %v4406, %v4406
    %v4411 = vmul.f32 %v4407, %v4407
    %v4412 = vmul.f32 %v4408, %v4408
    %v4413 = vsel %vm215, %v4409, 0.0
    %4414 = vadd.xlane.f32.xlu0 %v4413
    %v4415 = vpop.xlane.xlu0 %4414
    %v4416 = vsel %vm215, %v4410, 0.0
    %4417 = vadd.xlane.f32.xlu0 %v4416
    %v4418 = vpop.xlane.xlu0 %4417
    %v4419 = vsel %vm215, %v4411, 0.0
    %4420 = vadd.xlane.f32.xlu0 %v4419
    %v4421 = vpop.xlane.xlu0 %4420
    %v4422 = vsel %vm215, %v4412, 0.0
    %4423 = vadd.xlane.f32.xlu0 %v4422
    %v4424 = vpop.xlane.xlu0 %4423
    %v4425 = vmul.f32 %v4415, %v2245
    %v4426 = vmul.f32 %v4418, %v2245
    %v4427 = vmul.f32 %v4421, %v2245
    %v4428 = vmul.f32 %v4424, %v2245
    %v4429 = vadd.f32 %v4425, 1e-05
    %v4430 = vadd.f32 %v4426, 1e-05
    %v4431 = vadd.f32 %v4427, 1e-05
    %v4432 = vadd.f32 %v4428, 1e-05
    %v4433 = vrsqrt.pop %v4429
    %v4434 = vrsqrt.pop %v4430
    %v4435 = vrsqrt.pop %v4431
    %v4436 = vrsqrt.pop %v4432
    %v4437 = vmul.f32 %v4405, %v4433
    %v4438 = vmul.f32 %v4406, %v4434
    %v4439 = vmul.f32 %v4407, %v4435
    %v4440 = vmul.f32 %v4408, %v4436
    %v4441 = vlaneseq
    %v4442 = vshrl.u32 %v4441, 7
    %v4443 = vsub.s32 3, %v4442
    %v4444 = vrot.slane %v176, %v4443
    %v4445 = vmul.f32 %v4437, %v4444
    %v4446 = vmul.f32 %v4438, %v4444
    %v4447 = vmul.f32 %v4439, %v4444
    %v4448 = vmul.f32 %v4440, %v4444
    %v4449 = vlaneseq
    %v4450 = vshrl.u32 %v4449, 7
    %v4451 = vsub.s32 4, %v4450
    %v4452 = vrot.slane %v176, %v4451
    %v4453 = vadd.f32 %v4445, %v4452
    %v4454 = vadd.f32 %v4446, %v4452
    %v4455 = vadd.f32 %v4447, %v4452
    %v4456 = vadd.f32 %v4448, %v4452
    %v4457 = vpack.c.bf16 %v4454, %v4453
    %v4458 = vpack.c.bf16 %v4456, %v4455
    %v4459 = vld [vmem:[#allocation14] sm:$0xf]
    %v4460 = vld [vmem:[#allocation14 + $0x4] sm:$0xf]
    %v4461 = vld [vmem:[#allocation14 + $0x8] sm:$0xf]
    %v4462 = vld [vmem:[#allocation14 + $0xc] sm:$0xf]
    %v4463 = vld [vmem:[#allocation15] sm:$0x1]
    %v4465 = vlaneseq
    %v4466 = vshrl.u32 %v4465, 7
    %v4467 = vsub.s32 0, %v4466
    %v4468 = vrot.slane %v4463, %v4467
    %v4474 = vunpack.c.l.b16 %v4459
    %v4475 = vunpack.c.l.b16 %v4460
    %v4476 = vunpack.c.l.b16 %v4461
    %v4477 = vunpack.c.l.b16 %v4462
    %v4478 = vpack.c.b16 %v4475, %v4474
    %v4479 = vpack.c.b16 %v4477, %v4476
    %v4483 = vsel %vm215, %v4457, 0
    %v4486 = vsel %vm215, %v4458, 0
    %4488 = vmatprep.subr.bf16.mxu0 0
    %4489 = vmatpush1.bf16.msra.mxu0 %v4478
    %4490 = vmatprep.subr.bf16.mxu0 0
    %4491 = vmatpush1.bf16.msra.mxu0 %v4479
    %4492 = vmatprep.subr.bf16.mxu0 0
    %4493 = vmatpush1.bf16.msra.mxu0 0
    %4494 = vmatprep.subr.bf16.mxu0 0
    %4495 = vmatpush1.bf16.msra.mxu0 0
    %4496 = vmatprep.subr.bf16.mxu0 0
    %4497 = vmatpush1.bf16.msra.mxu0 0
    %4498 = vmatprep.subr.bf16.mxu0 0
    %4499 = vmatpush1.bf16.msra.mxu0 0
    %4500 = vmatprep.subr.bf16.mxu0 0
    %4501 = vmatpush1.bf16.msra.mxu0 0
    %4502 = vmatprep.subr.bf16.mxu0 0
    %4503 = vmatpush1.bf16.msra.mxu0 0
    %4504 = vmatprep.subr.bf16.mxu0 0
    %4505 = vmatpush1.bf16.msra.mxu0 0
    %4506 = vmatprep.subr.bf16.mxu0 0
    %4507 = vmatpush1.bf16.msra.mxu0 0
    %4508 = vmatprep.subr.bf16.mxu0 0
    %4509 = vmatpush1.bf16.msra.mxu0 0
    %4510 = vmatprep.subr.bf16.mxu0 0
    %4511 = vmatpush1.bf16.msra.mxu0 0
    %4512 = vmatprep.subr.bf16.mxu0 0
    %4513 = vmatpush1.bf16.msra.mxu0 0
    %4514 = vmatprep.subr.bf16.mxu0 0
    %4515 = vmatpush1.bf16.msra.mxu0 0
    %4516 = vmatprep.subr.bf16.mxu0 0
    %4517 = vmatpush1.bf16.msra.mxu0 0
    %4518 = vmatprep.subr.bf16.mxu0 0
    %4519 = vmatpush1.bf16.msra.mxu0 0
    %4520 = vmatprep.mubr.bf16.mxu0 0
    %4521 = vmatmul.mubr.bf16.gmra.mrb[0].mxu0 %v4483
    %v4522 = vpop.f32.mrb[0].mxu0
    %v4523 = vadd.f32 %v4468, %v4522
    %v4524 = vpop.f32.mrb[0].mxu0
    %v4525 = vpop.f32.mrb[0].mxu0
    %v4526 = vadd.f32 %v4468, %v4525
    %v4527 = vpop.f32.mrb[0].mxu0
    %4528 = vmatprep.mubr.bf16.mxu0 0
    %4529 = vmatmul.mubr.bf16.gmra.mrb[0].mxu0 %v4486
    %v4530 = vpop.f32.mrb[0].mxu0
    %v4531 = vadd.f32 %v4468, %v4530
    %v4532 = vpop.f32.mrb[0].mxu0
    %v4533 = vpop.f32.mrb[0].mxu0
    %v4534 = vadd.f32 %v4468, %v4533
    %v4535 = vpop.f32.mrb[0].mxu0
    %4536 = vdwg.mxu0
    %v4537 = vmax.f32 %v4523, 0.0
    %v4538 = vmax.f32 %v4526, 0.0
    %v4539 = vmax.f32 %v4531, 0.0
    %v4540 = vmax.f32 %v4534, 0.0
    %v4541 = vpack.c.bf16 %v4538, %v4537
    %v4542 = vpack.c.bf16 %v4540, %v4539
    %v4543 = vld [vmem:[%s12] sm:$0xf]
    %v4544 = vld [vmem:[%s12 + $0x4] sm:$0xf]
    %v4545 = vld [vmem:[%s12 + $0x8] sm:$0xf]
    %v4546 = vld [vmem:[%s12 + $0xc] sm:$0xf]
    %v4547 = vld [vmem:[%s12 + $0x10] sm:$0xf]
    %v4548 = vld [vmem:[%s12 + $0x14] sm:$0xf]
    %v4549 = vld [vmem:[%s12 + $0x18] sm:$0xf]
    %v4550 = vld [vmem:[%s12 + $0x1c] sm:$0xf]
    %v4551 = vlaneseq
    %v4552 = vshrl.u32 %v4551, 7
    %v4553 = vsub.s32 0, %v4552
    %v4554 = vrot.slane %v176, %v4553
    %v4563 = vunpack.c.l.b16 %v4543
    %v4564 = vunpack.c.l.b16 %v4544
    %v4565 = vunpack.c.l.b16 %v4545
    %v4566 = vunpack.c.l.b16 %v4546
    %v4567 = vunpack.c.l.b16 %v4547
    %v4568 = vunpack.c.l.b16 %v4548
    %v4569 = vunpack.c.l.b16 %v4549
    %v4570 = vunpack.c.l.b16 %v4550
    %v4571 = vpack.c.b16 %v4564, %v4563
    %v4572 = vpack.c.b16 %v4566, %v4565
    %v4573 = vpack.c.b16 %v4568, %v4567
    %v4574 = vpack.c.b16 %v4570, %v4569
    %vm4579 = vcmask 523264
    %v4581 = vsel %vm4579, %v4541, 0
    %v4584 = vsel %vm4579, %v4542, 0
    %4586 = vmatprep.subr.bf16.mxu0 0
    %4587 = vmatpush1.bf16.msra.mxu0 %v4571
    %4588 = vmatprep.subr.bf16.mxu0 0
    %4589 = vmatpush1.bf16.msra.mxu0 %v4572
    %4590 = vmatprep.subr.bf16.mxu0 0
    %4591 = vmatpush1.bf16.msra.mxu0 %v4573
    %4592 = vmatprep.subr.bf16.mxu0 0
    %4593 = vmatpush1.bf16.msra.mxu0 %v4574
    %4594 = vmatprep.subr.bf16.mxu0 0
    %4595 = vmatpush1.bf16.msra.mxu0 0
    %4596 = vmatprep.subr.bf16.mxu0 0
    %4597 = vmatpush1.bf16.msra.mxu0 0
    %4598 = vmatprep.subr.bf16.mxu0 0
    %4599 = vmatpush1.bf16.msra.mxu0 0
    %4600 = vmatprep.subr.bf16.mxu0 0
    %4601 = vmatpush1.bf16.msra.mxu0 0
    %4602 = vmatprep.subr.bf16.mxu0 0
    %4603 = vmatpush1.bf16.msra.mxu0 0
    %4604 = vmatprep.subr.bf16.mxu0 0
    %4605 = vmatpush1.bf16.msra.mxu0 0
    %4606 = vmatprep.subr.bf16.mxu0 0
    %4607 = vmatpush1.bf16.msra.mxu0 0
    %4608 = vmatprep.subr.bf16.mxu0 0
    %4609 = vmatpush1.bf16.msra.mxu0 0
    %4610 = vmatprep.subr.bf16.mxu0 0
    %4611 = vmatpush1.bf16.msra.mxu0 0
    %4612 = vmatprep.subr.bf16.mxu0 0
    %4613 = vmatpush1.bf16.msra.mxu0 0
    %4614 = vmatprep.subr.bf16.mxu0 0
    %4615 = vmatpush1.bf16.msra.mxu0 0
    %4616 = vmatprep.subr.bf16.mxu0 0
    %4617 = vmatpush1.bf16.msra.mxu0 0
    %4618 = vmatprep.mubr.bf16.mxu0 0
    %4619 = vmatmul.mubr.bf16.gmra.mrb[0].mxu0 %v4581
    %v4620 = vpop.f32.mrb[0].mxu0
    %v4621 = vadd.f32 %v4554, %v4620
    %v4622 = vpop.f32.mrb[0].mxu0
    %v4623 = vpop.f32.mrb[0].mxu0
    %v4624 = vadd.f32 %v4554, %v4623
    %v4625 = vpop.f32.mrb[0].mxu0
    %4626 = vmatprep.mubr.bf16.mxu0 0
    %4627 = vmatmul.mubr.bf16.gmra.mrb[0].mxu0 %v4584
    %v4628 = vpop.f32.mrb[0].mxu0
    %v4629 = vadd.f32 %v4554, %v4628
    %v4630 = vpop.f32.mrb[0].mxu0
    %v4631 = vpop.f32.mrb[0].mxu0
    %v4632 = vadd.f32 %v4554, %v4631
    %v4633 = vpop.f32.mrb[0].mxu0
    %4634 = vdwg.mxu0
    %v4635 = vadd.f32 %v4453, %v4621
    %v4636 = vadd.f32 %v4454, %v4624
    %v4637 = vadd.f32 %v4455, %v4629
    %v4638 = vadd.f32 %v4456, %v4632
    %v4639 = vsel %vm215, %v4635, 0.0
    %4640 = vadd.xlane.f32.xlu0 %v4639
    %v4641 = vpop.xlane.xlu0 %4640
    %v4642 = vsel %vm215, %v4636, 0.0
    %4643 = vadd.xlane.f32.xlu0 %v4642
    %v4644 = vpop.xlane.xlu0 %4643
    %v4645 = vsel %vm215, %v4637, 0.0
    %4646 = vadd.xlane.f32.xlu0 %v4645
    %v4647 = vpop.xlane.xlu0 %4646
    %v4648 = vsel %vm215, %v4638, 0.0
    %4649 = vadd.xlane.f32.xlu0 %v4648
    %v4650 = vpop.xlane.xlu0 %4649
    %v4651 = vmul.f32 %v4641, %v2245
    %v4652 = vmul.f32 %v4644, %v2245
    %v4653 = vmul.f32 %v4647, %v2245
    %v4654 = vmul.f32 %v4650, %v2245
    %v4655 = vsub.f32 %v4635, %v4651
    %v4656 = vsub.f32 %v4636, %v4652
    %v4657 = vsub.f32 %v4637, %v4653
    %v4658 = vsub.f32 %v4638, %v4654
    %v4659 = vmul.f32 %v4655, %v4655
    %v4660 = vmul.f32 %v4656, %v4656
    %v4661 = vmul.f32 %v4657, %v4657
    %v4662 = vmul.f32 %v4658, %v4658
    %v4663 = vsel %vm215, %v4659, 0.0
    %4664 = vadd.xlane.f32.xlu0 %v4663
    %v4665 = vpop.xlane.xlu0 %4664
    %v4666 = vsel %vm215, %v4660, 0.0
    %4667 = vadd.xlane.f32.xlu0 %v4666
    %v4668 = vpop.xlane.xlu0 %4667
    %v4669 = vsel %vm215, %v4661, 0.0
    %4670 = vadd.xlane.f32.xlu0 %v4669
    %v4671 = vpop.xlane.xlu0 %4670
    %v4672 = vsel %vm215, %v4662, 0.0
    %4673 = vadd.xlane.f32.xlu0 %v4672
    %v4674 = vpop.xlane.xlu0 %4673
    %v4675 = vmul.f32 %v4665, %v2245
    %v4676 = vmul.f32 %v4668, %v2245
    %v4677 = vmul.f32 %v4671, %v2245
    %v4678 = vmul.f32 %v4674, %v2245
    %v4679 = vadd.f32 %v4675, 1e-05
    %v4680 = vadd.f32 %v4676, 1e-05
    %v4681 = vadd.f32 %v4677, 1e-05
    %v4682 = vadd.f32 %v4678, 1e-05
    %v4683 = vrsqrt.pop %v4679
    %v4684 = vrsqrt.pop %v4680
    %v4685 = vrsqrt.pop %v4681
    %v4686 = vrsqrt.pop %v4682
    %v4687 = vmul.f32 %v4655, %v4683
    %v4688 = vmul.f32 %v4656, %v4684
    %v4689 = vmul.f32 %v4657, %v4685
    %v4690 = vmul.f32 %v4658, %v4686
    %v4691 = vlaneseq
    %v4692 = vshrl.u32 %v4691, 7
    %v4693 = vsub.s32 5, %v4692
    %v4694 = vrot.slane %v176, %v4693
    %v4695 = vmul.f32 %v4687, %v4694
    %v4696 = vmul.f32 %v4688, %v4694
    %v4697 = vmul.f32 %v4689, %v4694
    %v4698 = vmul.f32 %v4690, %v4694
    %v4699 = vlaneseq
    %v4700 = vshrl.u32 %v4699, 7
    %v4701 = vsub.s32 6, %v4700
    %v4702 = vrot.slane %v176, %v4701
    %v4703 = vadd.f32 %v4695, %v4702
    %v4704 = vadd.f32 %v4696, %v4702
    %v4705 = vadd.f32 %v4697, %v4702
    %v4706 = vadd.f32 %v4698, %v4702
    %4707 = vst.msk [vmem:[#allocation18] sm:$0xff] %vm215, %v4703
    %4708 = vst.msk [vmem:[#allocation18 + $0x8] sm:$0xff] %vm215, %v4704
    %4709 = vst.msk [vmem:[#allocation19] sm:$0xff] %vm215, %v4705
    %4710 = vst.msk [vmem:[#allocation19 + $0x8] sm:$0xff] %vm215, %v4706
    // Predicated region
    $region98: #{decoder_layer.1} parent=1 // pred_check
      _
    $region99: #{decoder_layer.1} parent=1 // pred_check_branch
      %4712 = sbr.rel (0) target = $region101
    $region100: #{decoder_layer.1} parent=1 // pred_region
      %s4714 = ssub.s32 256, 256
      %4715 = vsyncadd [#allocation5], %s4714
      %s4716 = sshll.u32 [#allocation18], 4
      %s4717 = int_to_ptr.vmem [resolvable:$true] %s4716
      %4722 = dma.vmem_to_hbm [thread:$0]  %s4717, 256, %s15, [#allocation5], 128, 128, 8
    $region101: #{decoder_layer.1} parent=1 // pred_fallthru
      _
    // Predicated region
    $region102: #{decoder_layer.1} parent=1 // pred_check
      _
    $region103: #{decoder_layer.1} parent=1 // pred_check_branch
      %4724 = sbr.rel (0) target = $region105
    $region104: #{decoder_layer.1} parent=1 // pred_region
      %s4726 = ssub.s32 256, 256
      %4727 = vsyncadd [#allocation20], %s4726
      %s4728 = sshll.u32 [#allocation19], 4
      %s4729 = int_to_ptr.vmem [resolvable:$true] %s4728
      %4734 = dma.vmem_to_hbm [thread:$0]  %s4729, 256, %s16, [#allocation20], 128, 128, 8
    $region105: #{decoder_layer.1} parent=1 // pred_fallthru
      _
    // Predicated region
    $region106: #{decoder_layer.1} parent=1 // pred_check
      _
    $region107: #{decoder_layer.1} parent=1 // pred_check_branch
      %4736 = sbr.rel (0) target = $region109
    $region108: #{decoder_layer.1} parent=1 // pred_region
      %4737 = dma.done [#allocation5], 256
    $region109: #{decoder_layer.1} parent=1 // pred_fallthru
      _
    // Predicated region
    $region110: #{decoder_layer.1} parent=1 // pred_check
      _
    $region111: #{decoder_layer.1} parent=1 // pred_check_branch
      %4739 = sbr.rel (0) target = $region113
    $region112: #{decoder_layer.1} parent=1 // pred_region
      %4740 = dma.done [#allocation20], 256
    $region113: #{decoder_layer.1} parent=1 // pred_fallthru
      _
    %4741 = vsyncpa [#allocation4], 1
    %4742 = vsyncpa [#allocation7], 1
    %4743 = vsyncpa [#allocation10], 1
    %4744 = vsyncpa [#allocation13], 1
    %4745 = vsyncpa [#allocation16], 1
    %4746 = vsyncpa [#allocation5], 1
    %4747 = vsyncpa [#allocation20], 1

</llo_original>
